<compile_context>
chip_gen: v7x
topology: tpu7x:2x2x1
jax: 0.10.0
libtpu: 0.0.40
codegen_flags: <defaults>
</compile_context>

<pallas_src>
import jax
import jax.numpy as jnp
from jax.experimental import pallas as pl
from jax.experimental.pallas import tpu as pltpu

EPS = 1e-5  # nn.BatchNorm2d default


def _cparams(sem):
    return pltpu.CompilerParams(dimension_semantics=sem,
                                vmem_limit_bytes=64 * 1024 * 1024)


# ---------------- Pallas kernels (hot path) ----------------

def _make_conv_stats_kernel(W, TH, CK, CP, k):
    rows = TH * W

    def kernel(xp_ref, w_ref, acc_ref, stats_ref, acc_scr):
        # xp_ref:    (1, Hp, Wp, CK) bf16 -- whole spatially padded image (resident)
        # w_ref:     (k*k, CK, CP)   bf16 -- taps, channel-padded (resident)
        # acc_ref:   (TH*W, CP)      bf16 -- conv output rows for this H-tile
        # stats_ref: (1, 16, CP)     f32  -- rows 0:8 partial sum, 8:16 partial sumsq
        # acc_scr:   (TH*W, CP)      f32  -- VMEM accumulator (scratch)
        j = pl.program_id(1)
        h0 = j * TH
        acc_scr[...] = jnp.zeros_like(acc_scr)
        # 9 shifted-tap GEMMs; the kh window is a dynamic slice of the resident
        # image block, the kw shift is a static slice of the loaded rows.
        for kh in range(k):
            blk = xp_ref[0, pl.ds(h0 + kh, TH), :, :]            # (TH, Wp, CK)
            for kw in range(k):
                lhs = blk[:, kw:kw + W, :].reshape(rows, CK)      # (TH*W, CK)
                acc_scr[...] += jnp.dot(lhs, w_ref[kh * k + kw],
                                        preferred_element_type=jnp.float32)
        # bf16 round-trip to HBM; BN stats below are taken from the f32 scratch.
        acc_ref[...] = acc_scr[...].astype(acc_ref.dtype)
        # Sublane-partial BN stats, 8 rows at a time (low vreg pressure).
        s = jnp.zeros((8, CP), jnp.float32)
        sq = jnp.zeros((8, CP), jnp.float32)
        for i in range(rows // 8):
            a = acc_scr[i * 8:(i + 1) * 8, :]
            s = s + a
            sq = sq + a * a
        stats_ref[0, 0:8, :] = s
        stats_ref[0, 8:16, :] = sq

    return kernel


def _affine_relu_kernel(acc_ref, scale_ref, shift_ref, o_ref):
    # y = relu(acc * scale + shift); acc is bf16, upcast on load.
    y = acc_ref[...].astype(jnp.float32) * scale_ref[...] + shift_ref[...]
    o_ref[...] = jnp.maximum(y, 0.0).astype(o_ref.dtype)


def _affine_skip_relu_kernel(acc_ref, scale_ref, shift_ref, xs_ref, ws_ref, bs_ref, o_ref):
    # BN2 affine + 1x1-conv skip (with bias) + residual add + ReLU.
    skip = jnp.dot(xs_ref[...], ws_ref[...], preferred_element_type=jnp.float32) + bs_ref[...]
    y = acc_ref[...].astype(jnp.float32) * scale_ref[...] + shift_ref[...] + skip
    o_ref[...] = jnp.maximum(y, 0.0).astype(o_ref.dtype)


# ---------------- pallas_call builders ----------------

def _conv3x3_stats(xp, wt, N, H, W, TH, CP, k):
    _, Hp, Wp, CK = xp.shape
    n_h = H // TH
    rows = TH * W
    M = N * H * W
    nT = N * n_h
    kernel = _make_conv_stats_kernel(W, TH, CK, CP, k)
    flops = 2 * M * (k * k * CK) * CP + 3 * M * CP
    bytes_accessed = xp.size * 2 + wt.size * 2 + M * CP * 2 + nT * 16 * CP * 4
    return pl.pallas_call(
        kernel,
        out_shape=(jax.ShapeDtypeStruct((M, CP), jnp.bfloat16),
                   jax.ShapeDtypeStruct((nT, 16, CP), jnp.float32)),
        grid=(N, n_h),
        in_specs=[pl.BlockSpec((1, Hp, Wp, CK), lambda n, j: (n, 0, 0, 0)),
                  pl.BlockSpec((k * k, CK, CP), lambda n, j: (0, 0, 0))],
        out_specs=(pl.BlockSpec((rows, CP), lambda n, j: (n * n_h + j, 0)),
                   pl.BlockSpec((1, 16, CP), lambda n, j: (n * n_h + j, 0, 0))),
        scratch_shapes=[pltpu.VMEM((rows, CP), jnp.float32)],
        compiler_params=_cparams(("parallel", "parallel")),
        cost_estimate=pl.CostEstimate(flops=flops, transcendentals=0,
                                      bytes_accessed=bytes_accessed),
    )(xp, wt)


def _bn_act(acc, scale, shift, tile_m, out_dtype):
    M, CP = acc.shape
    nT = M // tile_m
    bytes_accessed = (M * CP * acc.dtype.itemsize + 2 * CP * 4
                      + M * CP * jnp.dtype(out_dtype).itemsize)
    return pl.pallas_call(
        _affine_relu_kernel,
        out_shape=jax.ShapeDtypeStruct((M, CP), out_dtype),
        grid=(nT,),
        in_specs=[pl.BlockSpec((tile_m, CP), lambda i: (i, 0)),
                  pl.BlockSpec((1, CP), lambda i: (0, 0)),
                  pl.BlockSpec((1, CP), lambda i: (0, 0))],
        out_specs=pl.BlockSpec((tile_m, CP), lambda i: (i, 0)),
        compiler_params=_cparams(("parallel",)),
        cost_estimate=pl.CostEstimate(flops=3 * M * CP, transcendentals=0,
                                      bytes_accessed=bytes_accessed),
    )(acc, scale, shift)


def _bn_skip_act(acc, scale, shift, xs, ws, bs, tile_m, out_dtype):
    M, CP = acc.shape
    CinP = xs.shape[1]
    nT = M // tile_m
    bytes_accessed = (M * CP * acc.dtype.itemsize + 3 * CP * 4 + xs.size * 2
                      + ws.size * 2 + M * CP * jnp.dtype(out_dtype).itemsize)
    return pl.pallas_call(
        _affine_skip_relu_kernel,
        out_shape=jax.ShapeDtypeStruct((M, CP), out_dtype),
        grid=(nT,),
        in_specs=[pl.BlockSpec((tile_m, CP), lambda i: (i, 0)),
                  pl.BlockSpec((1, CP), lambda i: (0, 0)),
                  pl.BlockSpec((1, CP), lambda i: (0, 0)),
                  pl.BlockSpec((tile_m, CinP), lambda i: (i, 0)),
                  pl.BlockSpec((CinP, CP), lambda i: (0, 0)),
                  pl.BlockSpec((1, CP), lambda i: (0, 0))],
        out_specs=pl.BlockSpec((tile_m, CP), lambda i: (i, 0)),
        compiler_params=_cparams(("parallel",)),
        cost_estimate=pl.CostEstimate(flops=2 * M * CinP * CP + 6 * M * CP,
                                      transcendentals=0,
                                      bytes_accessed=bytes_accessed),
    )(acc, scale, shift, xs, ws, bs)


# ---------------- glue (plain JAX: layout, padding, tiny reductions) ----------------

def _round_up(x, m):
    return (x + m - 1) // m * m


def _pick_th(N, H, W):
    # Largest H-tile with TH | H, (TH*W) % 8 == 0 and TH*W <= 512 GEMM rows;
    # prefer the largest that still yields >= 4 total tiles (pipelining + megacore).
    best = None
    for th in range(H, 0, -1):
        if H % th:
            continue
        rows = th * W
        if rows > 512 or rows % 8:
            continue
        if best is None:
            best = th
        if N * (H // th) >= 4:
            return th
    return best if best is not None else H


def _pick_tile_e(M):
    # Elementwise passes are pure HBM bandwidth: big tiles, but keep >= 4 grid steps.
    cands = (4096, 2048, 1024, 512, 256, 128, 64, 32, 16, 8)
    for t in cands:
        if M % t == 0 and M // t >= 4:
            return t
    for t in cands:
        if M % t == 0 and M // t >= 2:
            return t
    return M


def _pad_last(a, target):
    pad = target - a.shape[-1]
    if pad == 0:
        return a
    return jnp.pad(a, [(0, 0)] * (a.ndim - 1) + [(0, pad)])


def _pad2(a, rows, cols):
    return jnp.pad(a, ((0, rows - a.shape[0]), (0, cols - a.shape[1])))


def _bn_scale_shift(stats, gamma_p, beta_p, m_total):
    # stats: (nT, 16, CP); rows 0:8 per-tile sublane-partial sums, 8:16 sumsq.
    s = jnp.sum(stats[:, :8, :], axis=(0, 1))             # (CP,)
    sq = jnp.sum(stats[:, 8:, :], axis=(0, 1))            # (CP,)
    mean = s / m_total
    var = jnp.maximum(sq / m_total - mean * mean, 0.0)     # biased (train-mode BN)
    # TODO(synk): E[x^2]-E[x]^2 in f32 can cancel for very large, high-mean batches;
    # switch to mean-subtracted per-tile partials (Welford merge) if training at scale.
    scale = gamma_p * jax.lax.rsqrt(var[None, :] + EPS)    # (1, CP)
    shift = beta_p - mean[None, :] * scale                 # (1, CP)
    return scale, shift


def residual_block(x_nchw, params, k=3):
    N, Cin, H, W = x_nchw.shape
    Cout = params["w1"].shape[-1]
    pad = k // 2
    M = N * H * W

    CP = _round_up(max(Cout, 128), 128)     # lane-dense padded out-channel dim
    CK1 = _round_up(max(Cin, 128), 128)     # padded in-channel dim (conv1 + skip K)
    TH = _pick_th(N, H, W)
    assert H % TH == 0 and (TH * W) % 8 == 0
    TE = _pick_tile_e(M)

    x_nhwc = jnp.transpose(x_nchw, (0, 2, 3, 1)).astype(jnp.float32)

    # ---- stage 1: conv1 (3x3, no bias) in-kernel 9-tap GEMM + BN1 partial stats ----
    xp1 = jnp.pad(x_nhwc, ((0, 0), (pad, pad), (pad, pad), (0, CK1 - Cin))
                  ).astype(jnp.bfloat16)                              # (N, Hp, Wp, CK1)
    w1t = jnp.pad(params["w1"].reshape(k * k, Cin, Cout),
                  ((0, 0), (0, CK1 - Cin), (0, CP - Cout))).astype(jnp.bfloat16)
    acc1, stats1 = _conv3x3_stats(xp1, w1t, N, H, W, TH, CP, k)        # bf16 / f32

    g1 = _pad_last(params["gamma1"], CP)
    b1 = _pad_last(params["beta1"], CP)
    scale1, shift1 = _bn_scale_shift(stats1, g1, b1, M)

    # BN1 affine + ReLU; h1 stays lane-dense bf16 (exactly what conv2's MXU consumes).
    h1 = _bn_act(acc1, scale1, shift1, TE, jnp.bfloat16)               # (M, CP)

    # ---- stage 2: conv2 (3x3, no bias) in-kernel 9-tap GEMM + BN2 partial stats ----
    xp2 = jnp.pad(h1.reshape(N, H, W, CP),
                  ((0, 0), (pad, pad), (pad, pad), (0, 0)))            # bf16
    w2t = jnp.pad(params["w2"].reshape(k * k, Cout, Cout),
                  ((0, 0), (0, CP - Cout), (0, CP - Cout))).astype(jnp.bfloat16)
    acc2, stats2 = _conv3x3_stats(xp2, w2t, N, H, W, TH, CP, k)

    g2 = _pad_last(params["gamma2"], CP)
    b2 = _pad_last(params["beta2"], CP)
    scale2, shift2 = _bn_scale_shift(stats2, g2, b2, M)

    # ---- BN2 affine + skip (1x1 conv with bias, Cin padded to 128) + add + ReLU ----
    xs = _pad_last(x_nhwc.reshape(M, Cin), CK1).astype(jnp.bfloat16)
    wsp = _pad2(params["wskip"], CK1, CP).astype(jnp.bfloat16)
    bsp = _pad_last(params["bskip"], CP)
    out = _bn_skip_act(acc2, scale2, shift2, xs, wsp, bsp, TE, jnp.float32)

    out = out[:, :Cout].reshape(N, H, W, Cout)
    return jnp.transpose(out, (0, 3, 1, 2))


# ---------------- pure-jnp reference ----------------

def _reference(x_nchw, params, k=3, matched=False):
    # matched=False -> full-f32 module semantics (PyTorch train-mode BN).
    # matched=True  -> same precision policy as the Pallas path: bf16 MXU feeds,
    #                  f32 accumulation, BN stats from f32, affine applied to the
    #                  bf16-rounded accumulator, bf16 h1 round-trip.
    N, Cin, H, W = x_nchw.shape
    pad = k // 2
    x = jnp.transpose(x_nchw, (0, 2, 3, 1)).astype(jnp.float32)
    cast = (lambda a: a.astype(jnp.bfloat16)) if matched else (lambda a: a)

    def conv3x3(a, w):
        ap = jnp.pad(cast(a), ((0, 0), (pad, pad), (pad, pad), (0, 0)))
        out = jnp.zeros((N, H, W, w.shape[-1]), jnp.float32)
        for kh in range(k):
            for kw in range(k):
                out = out + jnp.einsum("nhwc,cd->nhwd",
                                       ap[:, kh:kh + H, kw:kw + W, :], cast(w[kh, kw]),
                                       preferred_element_type=jnp.float32)
        return out

    def bn(a, g, b):
        mu = jnp.mean(a, axis=(0, 1, 2))
        var = jnp.mean(jnp.square(a - mu), axis=(0, 1, 2))
        scale = g.reshape(-1) * jax.lax.rsqrt(var + EPS)
        shift = b.reshape(-1) - mu * scale
        return cast(a).astype(jnp.float32) * scale + shift

    a1 = conv3x3(x, params["w1"])
    h1 = jnp.maximum(bn(a1, params["gamma1"], params["beta1"]), 0.0)
    a2 = conv3x3(h1, params["w2"])
    skip = jnp.einsum("nhwc,cd->nhwd", cast(x), cast(params["wskip"]),
                      preferred_element_type=jnp.float32) + params["bskip"].reshape(-1)
    y = jnp.maximum(bn(a2, params["gamma2"], params["beta2"]) + skip, 0.0)
    return jnp.transpose(y, (0, 3, 1, 2))


if __name__ == "__main__":
    # ResidualBlock(in_channels=4, out_channels=8, kernel_size=3, stride=1)
    # -> skip_conv (1x1, with bias) active because in_channels != out_channels.
    N, Cin, Cout, H, W, K = 2, 4, 8, 16, 16, 3

    keys = jax.random.split(jax.random.PRNGKey(0), 9)
    params = {
        # conv weights stored HWIO (PyTorch OIHW transposed to (kh, kw, in, out))
        "w1": 0.1 * jax.random.normal(keys[0], (K, K, Cin, Cout), jnp.float32),
        "w2": 0.1 * jax.random.normal(keys[1], (K, K, Cout, Cout), jnp.float32),
        "gamma1": jax.random.uniform(keys[2], (1, Cout), jnp.float32, 0.5, 1.5),
        "beta1": 0.1 * jax.random.normal(keys[3], (1, Cout), jnp.float32),
        "gamma2": jax.random.uniform(keys[4], (1, Cout), jnp.float32, 0.5, 1.5),
        "beta2": 0.1 * jax.random.normal(keys[5], (1, Cout), jnp.float32),
        "wskip": 0.1 * jax.random.normal(keys[6], (Cin, Cout), jnp.float32),  # 1x1 conv
        "bskip": 0.1 * jax.random.normal(keys[7], (1, Cout), jnp.float32),
    }
    x = jax.random.normal(keys[8], (N, Cin, H, W), jnp.float32)

    fwd = jax.jit(residual_block, static_argnums=(2,))
    y = jax.block_until_ready(fwd(x, params, K))
    assert y.shape == (N, Cout, H, W)

    # 1) Precision-matched reference (bf16 MXU feeds, bf16 accumulator round-trip).
    y_ref_m = _reference(x, params, K, matched=True)
    assert bool(jnp.allclose(y, y_ref_m, atol=2e-2, rtol=2e-2)), \
        "mismatch vs precision-matched reference"

    # 2) Full-f32 module semantics -> loose check (bf16 MXU feeds, by design).
    y_ref = _reference(x, params, K, matched=False)
    assert bool(jnp.allclose(y, y_ref, atol=1e-1, rtol=1e-1)), \
        "mismatch vs f32 reference"

    print("KERNEL_OK")
</pallas_src>

<mosaic_0001>
module attributes {stable_mosaic.version = 11 : i64} {
  func.func @kernel(%arg0: i32, %arg1: i32, %arg2: memref<1x18x18x128xbf16, #tpu.memory_space<vmem>>, %arg3: memref<9x128x128xbf16, #tpu.memory_space<vmem>>, %arg4: memref<128x128xbf16, #tpu.memory_space<vmem>>, %arg5: memref<1x16x128xf32, #tpu.memory_space<vmem>>, %arg6: memref<128x128xf32, #tpu.memory_space<vmem>>) attributes {dimension_semantics = [#tpu.dimension_semantics<parallel>, #tpu.dimension_semantics<parallel>], iteration_bounds = array<i64: 2, 2>, scalar_prefetch = 0 : i64, scratch_operands = 1 : i64, tpu.core_type = #tpu.core_type<tc>, window_params = [{transform_indices = @transform_0, window_bounds = array<i64: 1, 18, 18, 128>}, {pipeline_mode = #tpu.pipeline_mode<synchronous>, transform_indices = @transform_1, window_bounds = array<i64: 9, 128, 128>}, {transform_indices = @transform_2, window_bounds = array<i64: 128, 128>}, {transform_indices = @transform_3, window_bounds = array<i64: 1, 16, 128>}]} {
    %c8_i32 = arith.constant 8 : i32
    %0 = arith.muli %arg1, %c8_i32 : i32
    %cst = arith.constant 0.000000e+00 : f32
    %1 = vector.broadcast %cst : f32 to vector<128x128xf32>
    %c0 = arith.constant 0 : index
    %c0_0 = arith.constant 0 : index
    %2 = vector.load %arg6[%c0, %c0_0] : memref<128x128xf32, #tpu.memory_space<vmem>>, vector<128x128xf32>
    tpu.vector_store %arg6[%c0, %c0_0], %1 {strides = array<i32>} : memref<128x128xf32, #tpu.memory_space<vmem>>, vector<128x128xf32>,
    %c0_i32 = arith.constant 0 : i32
    %3 = arith.addi %0, %c0_i32 : i32
    %c0_1 = arith.constant 0 : index
    %4 = arith.index_cast %3 : i32 to index
    %c0_2 = arith.constant 0 : index
    %c0_3 = arith.constant 0 : index
    %5 = vector.load %arg2[%c0_1, %4, %c0_2, %c0_3] : memref<1x18x18x128xbf16, #tpu.memory_space<vmem>>, vector<1x8x18x128xbf16>
    %6 = vector.shape_cast %5 : vector<1x8x18x128xbf16> to vector<8x18x128xbf16>
    %7 = vector.extract_strided_slice %6 {offsets = [0, 0, 0], sizes = [8, 16, 128], strides = [1, 1, 1]} : vector<8x18x128xbf16> to vector<8x16x128xbf16>
    %8 = vector.shape_cast %7 : vector<8x16x128xbf16> to vector<128x128xbf16>
    %c0_4 = arith.constant 0 : index
    %c0_5 = arith.constant 0 : index
    %9 = vector.load %arg6[%c0_4, %c0_5] : memref<128x128xf32, #tpu.memory_space<vmem>>, vector<128x128xf32>
    %c0_6 = arith.constant 0 : index
    %c0_7 = arith.constant 0 : index
    %c0_8 = arith.constant 0 : index
    %10 = vector.load %arg3[%c0_6, %c0_7, %c0_8] : memref<9x128x128xbf16, #tpu.memory_space<vmem>>, vector<1x128x128xbf16>
    %11 = vector.shape_cast %10 : vector<1x128x128xbf16> to vector<128x128xbf16>
    %cst_9 = arith.constant dense<0.000000e+00> : vector<128x128xf32>
    %12 = tpu.matmul %8, %11, %cst_9 {dimension_numbers = #tpu.dot_dimension_numbers<[1], [0], [0], [1], [0, 0, 1, 1], [], []>} : vector<128x128xbf16>, vector<128x128xbf16>, vector<128x128xf32> -> vector<128x128xf32>
    %13 = arith.addf %9, %12 : vector<128x128xf32>
    %c0_10 = arith.constant 0 : index
    %c0_11 = arith.constant 0 : index
    %14 = vector.load %arg6[%c0_10, %c0_11] : memref<128x128xf32, #tpu.memory_space<vmem>>, vector<128x128xf32>
    tpu.vector_store %arg6[%c0_10, %c0_11], %13 {strides = array<i32>} : memref<128x128xf32, #tpu.memory_space<vmem>>, vector<128x128xf32>,
    %15 = vector.extract_strided_slice %6 {offsets = [0, 1, 0], sizes = [8, 16, 128], strides = [1, 1, 1]} : vector<8x18x128xbf16> to vector<8x16x128xbf16>
    %16 = vector.shape_cast %15 : vector<8x16x128xbf16> to vector<128x128xbf16>
    %c0_12 = arith.constant 0 : index
    %c0_13 = arith.constant 0 : index
    %17 = vector.load %arg6[%c0_12, %c0_13] : memref<128x128xf32, #tpu.memory_space<vmem>>, vector<128x128xf32>
    %c1 = arith.constant 1 : index
    %c0_14 = arith.constant 0 : index
    %c0_15 = arith.constant 0 : index
    %18 = vector.load %arg3[%c1, %c0_14, %c0_15] : memref<9x128x128xbf16, #tpu.memory_space<vmem>>, vector<1x128x128xbf16>
    %19 = vector.shape_cast %18 : vector<1x128x128xbf16> to vector<128x128xbf16>
    %cst_16 = arith.constant dense<0.000000e+00> : vector<128x128xf32>
    %20 = tpu.matmul %16, %19, %cst_16 {dimension_numbers = #tpu.dot_dimension_numbers<[1], [0], [0], [1], [0, 0, 1, 1], [], []>} : vector<128x128xbf16>, vector<128x128xbf16>, vector<128x128xf32> -> vector<128x128xf32>
    %21 = arith.addf %17, %20 : vector<128x128xf32>
    %c0_17 = arith.constant 0 : index
    %c0_18 = arith.constant 0 : index
    %22 = vector.load %arg6[%c0_17, %c0_18] : memref<128x128xf32, #tpu.memory_space<vmem>>, vector<128x128xf32>
    tpu.vector_store %arg6[%c0_17, %c0_18], %21 {strides = array<i32>} : memref<128x128xf32, #tpu.memory_space<vmem>>, vector<128x128xf32>,
    %23 = vector.extract_strided_slice %6 {offsets = [0, 2, 0], sizes = [8, 16, 128], strides = [1, 1, 1]} : vector<8x18x128xbf16> to vector<8x16x128xbf16>
    %24 = vector.shape_cast %23 : vector<8x16x128xbf16> to vector<128x128xbf16>
    %c0_19 = arith.constant 0 : index
    %c0_20 = arith.constant 0 : index
    %25 = vector.load %arg6[%c0_19, %c0_20] : memref<128x128xf32, #tpu.memory_space<vmem>>, vector<128x128xf32>
    %c2 = arith.constant 2 : index
    %c0_21 = arith.constant 0 : index
    %c0_22 = arith.constant 0 : index
    %26 = vector.load %arg3[%c2, %c0_21, %c0_22] : memref<9x128x128xbf16, #tpu.memory_space<vmem>>, vector<1x128x128xbf16>
    %27 = vector.shape_cast %26 : vector<1x128x128xbf16> to vector<128x128xbf16>
    %cst_23 = arith.constant dense<0.000000e+00> : vector<128x128xf32>
    %28 = tpu.matmul %24, %27, %cst_23 {dimension_numbers = #tpu.dot_dimension_numbers<[1], [0], [0], [1], [0, 0, 1, 1], [], []>} : vector<128x128xbf16>, vector<128x128xbf16>, vector<128x128xf32> -> vector<128x128xf32>
    %29 = arith.addf %25, %28 : vector<128x128xf32>
    %c0_24 = arith.constant 0 : index
    %c0_25 = arith.constant 0 : index
    %30 = vector.load %arg6[%c0_24, %c0_25] : memref<128x128xf32, #tpu.memory_space<vmem>>, vector<128x128xf32>
    tpu.vector_store %arg6[%c0_24, %c0_25], %29 {strides = array<i32>} : memref<128x128xf32, #tpu.memory_space<vmem>>, vector<128x128xf32>,
    %c1_i32 = arith.constant 1 : i32
    %31 = arith.addi %0, %c1_i32 : i32
    %c0_26 = arith.constant 0 : index
    %32 = arith.index_cast %31 : i32 to index
    %c0_27 = arith.constant 0 : index
    %c0_28 = arith.constant 0 : index
    %33 = vector.load %arg2[%c0_26, %32, %c0_27, %c0_28] : memref<1x18x18x128xbf16, #tpu.memory_space<vmem>>, vector<1x8x18x128xbf16>
    %34 = vector.shape_cast %33 : vector<1x8x18x128xbf16> to vector<8x18x128xbf16>
    %35 = vector.extract_strided_slice %34 {offsets = [0, 0, 0], sizes = [8, 16, 128], strides = [1, 1, 1]} : vector<8x18x128xbf16> to vector<8x16x128xbf16>
    %36 = vector.shape_cast %35 : vector<8x16x128xbf16> to vector<128x128xbf16>
    %c0_29 = arith.constant 0 : index
    %c0_30 = arith.constant 0 : index
    %37 = vector.load %arg6[%c0_29, %c0_30] : memref<128x128xf32, #tpu.memory_space<vmem>>, vector<128x128xf32>
    %c3 = arith.constant 3 : index
    %c0_31 = arith.constant 0 : index
    %c0_32 = arith.constant 0 : index
    %38 = vector.load %arg3[%c3, %c0_31, %c0_32] : memref<9x128x128xbf16, #tpu.memory_space<vmem>>, vector<1x128x128xbf16>
    %39 = vector.shape_cast %38 : vector<1x128x128xbf16> to vector<128x128xbf16>
    %cst_33 = arith.constant dense<0.000000e+00> : vector<128x128xf32>
    %40 = tpu.matmul %36, %39, %cst_33 {dimension_numbers = #tpu.dot_dimension_numbers<[1], [0], [0], [1], [0, 0, 1, 1], [], []>} : vector<128x128xbf16>, vector<128x128xbf16>, vector<128x128xf32> -> vector<128x128xf32>
    %41 = arith.addf %37, %40 : vector<128x128xf32>
    %c0_34 = arith.constant 0 : index
    %c0_35 = arith.constant 0 : index
    %42 = vector.load %arg6[%c0_34, %c0_35] : memref<128x128xf32, #tpu.memory_space<vmem>>, vector<128x128xf32>
    tpu.vector_store %arg6[%c0_34, %c0_35], %41 {strides = array<i32>} : memref<128x128xf32, #tpu.memory_space<vmem>>, vector<128x128xf32>,
    %43 = vector.extract_strided_slice %34 {offsets = [0, 1, 0], sizes = [8, 16, 128], strides = [1, 1, 1]} : vector<8x18x128xbf16> to vector<8x16x128xbf16>
    %44 = vector.shape_cast %43 : vector<8x16x128xbf16> to vector<128x128xbf16>
    %c0_36 = arith.constant 0 : index
    %c0_37 = arith.constant 0 : index
    %45 = vector.load %arg6[%c0_36, %c0_37] : memref<128x128xf32, #tpu.memory_space<vmem>>, vector<128x128xf32>
    %c4 = arith.constant 4 : index
    %c0_38 = arith.constant 0 : index
    %c0_39 = arith.constant 0 : index
    %46 = vector.load %arg3[%c4, %c0_38, %c0_39] : memref<9x128x128xbf16, #tpu.memory_space<vmem>>, vector<1x128x128xbf16>
    %47 = vector.shape_cast %46 : vector<1x128x128xbf16> to vector<128x128xbf16>
    %cst_40 = arith.constant dense<0.000000e+00> : vector<128x128xf32>
    %48 = tpu.matmul %44, %47, %cst_40 {dimension_numbers = #tpu.dot_dimension_numbers<[1], [0], [0], [1], [0, 0, 1, 1], [], []>} : vector<128x128xbf16>, vector<128x128xbf16>, vector<128x128xf32> -> vector<128x128xf32>
    %49 = arith.addf %45, %48 : vector<128x128xf32>
    %c0_41 = arith.constant 0 : index
    %c0_42 = arith.constant 0 : index
    %50 = vector.load %arg6[%c0_41, %c0_42] : memref<128x128xf32, #tpu.memory_space<vmem>>, vector<128x128xf32>
    tpu.vector_store %arg6[%c0_41, %c0_42], %49 {strides = array<i32>} : memref<128x128xf32, #tpu.memory_space<vmem>>, vector<128x128xf32>,
    %51 = vector.extract_strided_slice %34 {offsets = [0, 2, 0], sizes = [8, 16, 128], strides = [1, 1, 1]} : vector<8x18x128xbf16> to vector<8x16x128xbf16>
    %52 = vector.shape_cast %51 : vector<8x16x128xbf16> to vector<128x128xbf16>
    %c0_43 = arith.constant 0 : index
    %c0_44 = arith.constant 0 : index
    %53 = vector.load %arg6[%c0_43, %c0_44] : memref<128x128xf32, #tpu.memory_space<vmem>>, vector<128x128xf32>
    %c5 = arith.constant 5 : index
    %c0_45 = arith.constant 0 : index
    %c0_46 = arith.constant 0 : index
    %54 = vector.load %arg3[%c5, %c0_45, %c0_46] : memref<9x128x128xbf16, #tpu.memory_space<vmem>>, vector<1x128x128xbf16>
    %55 = vector.shape_cast %54 : vector<1x128x128xbf16> to vector<128x128xbf16>
    %cst_47 = arith.constant dense<0.000000e+00> : vector<128x128xf32>
    %56 = tpu.matmul %52, %55, %cst_47 {dimension_numbers = #tpu.dot_dimension_numbers<[1], [0], [0], [1], [0, 0, 1, 1], [], []>} : vector<128x128xbf16>, vector<128x128xbf16>, vector<128x128xf32> -> vector<128x128xf32>
    %57 = arith.addf %53, %56 : vector<128x128xf32>
    %c0_48 = arith.constant 0 : index
    %c0_49 = arith.constant 0 : index
    %58 = vector.load %arg6[%c0_48, %c0_49] : memref<128x128xf32, #tpu.memory_space<vmem>>, vector<128x128xf32>
    tpu.vector_store %arg6[%c0_48, %c0_49], %57 {strides = array<i32>} : memref<128x128xf32, #tpu.memory_space<vmem>>, vector<128x128xf32>,
    %c2_i32 = arith.constant 2 : i32
    %59 = arith.addi %0, %c2_i32 : i32
    %c0_50 = arith.constant 0 : index
    %60 = arith.index_cast %59 : i32 to index
    %c0_51 = arith.constant 0 : index
    %c0_52 = arith.constant 0 : index
    %61 = vector.load %arg2[%c0_50, %60, %c0_51, %c0_52] : memref<1x18x18x128xbf16, #tpu.memory_space<vmem>>, vector<1x8x18x128xbf16>
    %62 = vector.shape_cast %61 : vector<1x8x18x128xbf16> to vector<8x18x128xbf16>
    %63 = vector.extract_strided_slice %62 {offsets = [0, 0, 0], sizes = [8, 16, 128], strides = [1, 1, 1]} : vector<8x18x128xbf16> to vector<8x16x128xbf16>
    %64 = vector.shape_cast %63 : vector<8x16x128xbf16> to vector<128x128xbf16>
    %c0_53 = arith.constant 0 : index
    %c0_54 = arith.constant 0 : index
    %65 = vector.load %arg6[%c0_53, %c0_54] : memref<128x128xf32, #tpu.memory_space<vmem>>, vector<128x128xf32>
    %c6 = arith.constant 6 : index
    %c0_55 = arith.constant 0 : index
    %c0_56 = arith.constant 0 : index
    %66 = vector.load %arg3[%c6, %c0_55, %c0_56] : memref<9x128x128xbf16, #tpu.memory_space<vmem>>, vector<1x128x128xbf16>
    %67 = vector.shape_cast %66 : vector<1x128x128xbf16> to vector<128x128xbf16>
    %cst_57 = arith.constant dense<0.000000e+00> : vector<128x128xf32>
    %68 = tpu.matmul %64, %67, %cst_57 {dimension_numbers = #tpu.dot_dimension_numbers<[1], [0], [0], [1], [0, 0, 1, 1], [], []>} : vector<128x128xbf16>, vector<128x128xbf16>, vector<128x128xf32> -> vector<128x128xf32>
    %69 = arith.addf %65, %68 : vector<128x128xf32>
    %c0_58 = arith.constant 0 : index
    %c0_59 = arith.constant 0 : index
    %70 = vector.load %arg6[%c0_58, %c0_59] : memref<128x128xf32, #tpu.memory_space<vmem>>, vector<128x128xf32>
    tpu.vector_store %arg6[%c0_58, %c0_59], %69 {strides = array<i32>} : memref<128x128xf32, #tpu.memory_space<vmem>>, vector<128x128xf32>,
    %71 = vector.extract_strided_slice %62 {offsets = [0, 1, 0], sizes = [8, 16, 128], strides = [1, 1, 1]} : vector<8x18x128xbf16> to vector<8x16x128xbf16>
    %72 = vector.shape_cast %71 : vector<8x16x128xbf16> to vector<128x128xbf16>
    %c0_60 = arith.constant 0 : index
    %c0_61 = arith.constant 0 : index
    %73 = vector.load %arg6[%c0_60, %c0_61] : memref<128x128xf32, #tpu.memory_space<vmem>>, vector<128x128xf32>
    %c7 = arith.constant 7 : index
    %c0_62 = arith.constant 0 : index
    %c0_63 = arith.constant 0 : index
    %74 = vector.load %arg3[%c7, %c0_62, %c0_63] : memref<9x128x128xbf16, #tpu.memory_space<vmem>>, vector<1x128x128xbf16>
    %75 = vector.shape_cast %74 : vector<1x128x128xbf16> to vector<128x128xbf16>
    %cst_64 = arith.constant dense<0.000000e+00> : vector<128x128xf32>
    %76 = tpu.matmul %72, %75, %cst_64 {dimension_numbers = #tpu.dot_dimension_numbers<[1], [0], [0], [1], [0, 0, 1, 1], [], []>} : vector<128x128xbf16>, vector<128x128xbf16>, vector<128x128xf32> -> vector<128x128xf32>
    %77 = arith.addf %73, %76 : vector<128x128xf32>
    %c0_65 = arith.constant 0 : index
    %c0_66 = arith.constant 0 : index
    %78 = vector.load %arg6[%c0_65, %c0_66] : memref<128x128xf32, #tpu.memory_space<vmem>>, vector<128x128xf32>
    tpu.vector_store %arg6[%c0_65, %c0_66], %77 {strides = array<i32>} : memref<128x128xf32, #tpu.memory_space<vmem>>, vector<128x128xf32>,
    %79 = vector.extract_strided_slice %62 {offsets = [0, 2, 0], sizes = [8, 16, 128], strides = [1, 1, 1]} : vector<8x18x128xbf16> to vector<8x16x128xbf16>
    %80 = vector.shape_cast %79 : vector<8x16x128xbf16> to vector<128x128xbf16>
    %c0_67 = arith.constant 0 : index
    %c0_68 = arith.constant 0 : index
    %81 = vector.load %arg6[%c0_67, %c0_68] : memref<128x128xf32, #tpu.memory_space<vmem>>, vector<128x128xf32>
    %c8 = arith.constant 8 : index
    %c0_69 = arith.constant 0 : index
    %c0_70 = arith.constant 0 : index
    %82 = vector.load %arg3[%c8, %c0_69, %c0_70] : memref<9x128x128xbf16, #tpu.memory_space<vmem>>, vector<1x128x128xbf16>
    %83 = vector.shape_cast %82 : vector<1x128x128xbf16> to vector<128x128xbf16>
    %cst_71 = arith.constant dense<0.000000e+00> : vector<128x128xf32>
    %84 = tpu.matmul %80, %83, %cst_71 {dimension_numbers = #tpu.dot_dimension_numbers<[1], [0], [0], [1], [0, 0, 1, 1], [], []>} : vector<128x128xbf16>, vector<128x128xbf16>, vector<128x128xf32> -> vector<128x128xf32>
    %85 = arith.addf %81, %84 : vector<128x128xf32>
    %c0_72 = arith.constant 0 : index
    %c0_73 = arith.constant 0 : index
    %86 = vector.load %arg6[%c0_72, %c0_73] : memref<128x128xf32, #tpu.memory_space<vmem>>, vector<128x128xf32>
    tpu.vector_store %arg6[%c0_72, %c0_73], %85 {strides = array<i32>} : memref<128x128xf32, #tpu.memory_space<vmem>>, vector<128x128xf32>,
    %c0_74 = arith.constant 0 : index
    %c0_75 = arith.constant 0 : index
    %87 = vector.load %arg6[%c0_74, %c0_75] : memref<128x128xf32, #tpu.memory_space<vmem>>, vector<128x128xf32>
    %88 = arith.truncf %87 : vector<128x128xf32> to vector<128x128xbf16>
    %c0_76 = arith.constant 0 : index
    %c0_77 = arith.constant 0 : index
    %89 = vector.load %arg4[%c0_76, %c0_77] : memref<128x128xbf16, #tpu.memory_space<vmem>>, vector<128x128xbf16>
    tpu.vector_store %arg4[%c0_76, %c0_77], %88 {strides = array<i32>} : memref<128x128xbf16, #tpu.memory_space<vmem>>, vector<128x128xbf16>,
    %cst_78 = arith.constant 0.000000e+00 : f32
    %90 = vector.broadcast %cst_78 : f32 to vector<8x128xf32>
    %cst_79 = arith.constant 0.000000e+00 : f32
    %91 = vector.broadcast %cst_79 : f32 to vector<8x128xf32>
    %c0_80 = arith.constant 0 : index
    %c0_81 = arith.constant 0 : index
    %92 = vector.load %arg6[%c0_80, %c0_81] : memref<128x128xf32, #tpu.memory_space<vmem>>, vector<8x128xf32>
    %93 = arith.addf %90, %92 : vector<8x128xf32>
    %94 = arith.mulf %92, %92 : vector<8x128xf32>
    %95 = arith.addf %91, %94 : vector<8x128xf32>
    %c8_82 = arith.constant 8 : index
    %c0_83 = arith.constant 0 : index
    %96 = vector.load %arg6[%c8_82, %c0_83] : memref<128x128xf32, #tpu.memory_space<vmem>>, vector<8x128xf32>
    %97 = arith.addf %93, %96 : vector<8x128xf32>
    %98 = arith.mulf %96, %96 : vector<8x128xf32>
    %99 = arith.addf %95, %98 : vector<8x128xf32>
    %c16 = arith.constant 16 : index
    %c0_84 = arith.constant 0 : index
    %100 = vector.load %arg6[%c16, %c0_84] : memref<128x128xf32, #tpu.memory_space<vmem>>, vector<8x128xf32>
    %101 = arith.addf %97, %100 : vector<8x128xf32>
    %102 = arith.mulf %100, %100 : vector<8x128xf32>
    %103 = arith.addf %99, %102 : vector<8x128xf32>
    %c24 = arith.constant 24 : index
    %c0_85 = arith.constant 0 : index
    %104 = vector.load %arg6[%c24, %c0_85] : memref<128x128xf32, #tpu.memory_space<vmem>>, vector<8x128xf32>
    %105 = arith.addf %101, %104 : vector<8x128xf32>
    %106 = arith.mulf %104, %104 : vector<8x128xf32>
    %107 = arith.addf %103, %106 : vector<8x128xf32>
    %c32 = arith.constant 32 : index
    %c0_86 = arith.constant 0 : index
    %108 = vector.load %arg6[%c32, %c0_86] : memref<128x128xf32, #tpu.memory_space<vmem>>, vector<8x128xf32>
    %109 = arith.addf %105, %108 : vector<8x128xf32>
    %110 = arith.mulf %108, %108 : vector<8x128xf32>
    %111 = arith.addf %107, %110 : vector<8x128xf32>
    %c40 = arith.constant 40 : index
    %c0_87 = arith.constant 0 : index
    %112 = vector.load %arg6[%c40, %c0_87] : memref<128x128xf32, #tpu.memory_space<vmem>>, vector<8x128xf32>
    %113 = arith.addf %109, %112 : vector<8x128xf32>
    %114 = arith.mulf %112, %112 : vector<8x128xf32>
    %115 = arith.addf %111, %114 : vector<8x128xf32>
    %c48 = arith.constant 48 : index
    %c0_88 = arith.constant 0 : index
    %116 = vector.load %arg6[%c48, %c0_88] : memref<128x128xf32, #tpu.memory_space<vmem>>, vector<8x128xf32>
    %117 = arith.addf %113, %116 : vector<8x128xf32>
    %118 = arith.mulf %116, %116 : vector<8x128xf32>
    %119 = arith.addf %115, %118 : vector<8x128xf32>
    %c56 = arith.constant 56 : index
    %c0_89 = arith.constant 0 : index
    %120 = vector.load %arg6[%c56, %c0_89] : memref<128x128xf32, #tpu.memory_space<vmem>>, vector<8x128xf32>
    %121 = arith.addf %117, %120 : vector<8x128xf32>
    %122 = arith.mulf %120, %120 : vector<8x128xf32>
    %123 = arith.addf %119, %122 : vector<8x128xf32>
    %c64 = arith.constant 64 : index
    %c0_90 = arith.constant 0 : index
    %124 = vector.load %arg6[%c64, %c0_90] : memref<128x128xf32, #tpu.memory_space<vmem>>, vector<8x128xf32>
    %125 = arith.addf %121, %124 : vector<8x128xf32>
    %126 = arith.mulf %124, %124 : vector<8x128xf32>
    %127 = arith.addf %123, %126 : vector<8x128xf32>
    %c72 = arith.constant 72 : index
    %c0_91 = arith.constant 0 : index
    %128 = vector.load %arg6[%c72, %c0_91] : memref<128x128xf32, #tpu.memory_space<vmem>>, vector<8x128xf32>
    %129 = arith.addf %125, %128 : vector<8x128xf32>
    %130 = arith.mulf %128, %128 : vector<8x128xf32>
    %131 = arith.addf %127, %130 : vector<8x128xf32>
    %c80 = arith.constant 80 : index
    %c0_92 = arith.constant 0 : index
    %132 = vector.load %arg6[%c80, %c0_92] : memref<128x128xf32, #tpu.memory_space<vmem>>, vector<8x128xf32>
    %133 = arith.addf %129, %132 : vector<8x128xf32>
    %134 = arith.mulf %132, %132 : vector<8x128xf32>
    %135 = arith.addf %131, %134 : vector<8x128xf32>
    %c88 = arith.constant 88 : index
    %c0_93 = arith.constant 0 : index
    %136 = vector.load %arg6[%c88, %c0_93] : memref<128x128xf32, #tpu.memory_space<vmem>>, vector<8x128xf32>
    %137 = arith.addf %133, %136 : vector<8x128xf32>
    %138 = arith.mulf %136, %136 : vector<8x128xf32>
    %139 = arith.addf %135, %138 : vector<8x128xf32>
    %c96 = arith.constant 96 : index
    %c0_94 = arith.constant 0 : index
    %140 = vector.load %arg6[%c96, %c0_94] : memref<128x128xf32, #tpu.memory_space<vmem>>, vector<8x128xf32>
    %141 = arith.addf %137, %140 : vector<8x128xf32>
    %142 = arith.mulf %140, %140 : vector<8x128xf32>
    %143 = arith.addf %139, %142 : vector<8x128xf32>
    %c104 = arith.constant 104 : index
    %c0_95 = arith.constant 0 : index
    %144 = vector.load %arg6[%c104, %c0_95] : memref<128x128xf32, #tpu.memory_space<vmem>>, vector<8x128xf32>
    %145 = arith.addf %141, %144 : vector<8x128xf32>
    %146 = arith.mulf %144, %144 : vector<8x128xf32>
    %147 = arith.addf %143, %146 : vector<8x128xf32>
    %c112 = arith.constant 112 : index
    %c0_96 = arith.constant 0 : index
    %148 = vector.load %arg6[%c112, %c0_96] : memref<128x128xf32, #tpu.memory_space<vmem>>, vector<8x128xf32>
    %149 = arith.addf %145, %148 : vector<8x128xf32>
    %150 = arith.mulf %148, %148 : vector<8x128xf32>
    %151 = arith.addf %147, %150 : vector<8x128xf32>
    %c120 = arith.constant 120 : index
    %c0_97 = arith.constant 0 : index
    %152 = vector.load %arg6[%c120, %c0_97] : memref<128x128xf32, #tpu.memory_space<vmem>>, vector<8x128xf32>
    %153 = arith.addf %149, %152 : vector<8x128xf32>
    %154 = arith.mulf %152, %152 : vector<8x128xf32>
    %155 = arith.addf %151, %154 : vector<8x128xf32>
    %c0_98 = arith.constant 0 : index
    %c0_99 = arith.constant 0 : index
    %c0_100 = arith.constant 0 : index
    %156 = vector.load %arg5[%c0_98, %c0_99, %c0_100] : memref<1x16x128xf32, #tpu.memory_space<vmem>>, vector<1x8x128xf32>
    %157 = vector.shape_cast %156 : vector<1x8x128xf32> to vector<8x128xf32>
    %158 = vector.shape_cast %153 : vector<8x128xf32> to vector<1x8x128xf32>
    tpu.vector_store %arg5[%c0_98, %c0_99, %c0_100], %158 {strides = array<i32>} : memref<1x16x128xf32, #tpu.memory_space<vmem>>, vector<1x8x128xf32>,
    %c0_101 = arith.constant 0 : index
    %c8_102 = arith.constant 8 : index
    %c0_103 = arith.constant 0 : index
    %159 = vector.load %arg5[%c0_101, %c8_102, %c0_103] : memref<1x16x128xf32, #tpu.memory_space<vmem>>, vector<1x8x128xf32>
    %160 = vector.shape_cast %159 : vector<1x8x128xf32> to vector<8x128xf32>
    %161 = vector.shape_cast %155 : vector<8x128xf32> to vector<1x8x128xf32>
    tpu.vector_store %arg5[%c0_101, %c8_102, %c0_103], %161 {strides = array<i32>} : memref<1x16x128xf32, #tpu.memory_space<vmem>>, vector<1x8x128xf32>,
    return
  }
  func.func @transform_0(%arg0: i32, %arg1: i32) -> (i32, i32, i32, i32) {
    %c0_i32 = arith.constant 0 : i32
    %c0_i32_0 = arith.constant 0 : i32
    %c0_i32_1 = arith.constant 0 : i32
    %c0_i32_2 = arith.constant 0 : i32
    return %arg0, %c0_i32, %c0_i32_0, %c0_i32_1 : i32, i32, i32, i32
  }
  func.func @transform_1(%arg0: i32, %arg1: i32) -> (i32, i32, i32) {
    %c0_i32 = arith.constant 0 : i32
    %c0_i32_0 = arith.constant 0 : i32
    %c0_i32_1 = arith.constant 0 : i32
    %c0_i32_2 = arith.constant 0 : i32
    return %c0_i32, %c0_i32_0, %c0_i32_1 : i32, i32, i32
  }
  func.func @transform_2(%arg0: i32, %arg1: i32) -> (i32, i32) {
    %c2_i32 = arith.constant 2 : i32
    %0 = arith.muli %arg0, %c2_i32 : i32
    %1 = arith.addi %0, %arg1 : i32
    %c0_i32 = arith.constant 0 : i32
    %c0_i32_0 = arith.constant 0 : i32
    return %1, %c0_i32 : i32, i32
  }
  func.func @transform_3(%arg0: i32, %arg1: i32) -> (i32, i32, i32) {
    %c2_i32 = arith.constant 2 : i32
    %0 = arith.muli %arg0, %c2_i32 : i32
    %1 = arith.addi %0, %arg1 : i32
    %c0_i32 = arith.constant 0 : i32
    %c0_i32_0 = arith.constant 0 : i32
    %c0_i32_1 = arith.constant 0 : i32
    return %1, %c0_i32, %c0_i32_0 : i32, i32, i32
  }
}

module attributes {stable_mosaic.version = 11 : i64} {
  func.func @_affine_relu_kernel(%arg0: i32, %arg1: memref<128x128xbf16, #tpu.memory_space<vmem>>, %arg2: memref<1x128xf32, #tpu.memory_space<vmem>>, %arg3: memref<1x128xf32, #tpu.memory_space<vmem>>, %arg4: memref<128x128xbf16, #tpu.memory_space<vmem>>) attributes {dimension_semantics = [#tpu.dimension_semantics<parallel>], iteration_bounds = array<i64: 4>, scalar_prefetch = 0 : i64, scratch_operands = 0 : i64, tpu.core_type = #tpu.core_type<tc>, window_params = [{transform_indices = @transform_0, window_bounds = array<i64: 128, 128>}, {pipeline_mode = #tpu.pipeline_mode<synchronous>, transform_indices = @transform_1, window_bounds = array<i64: 1, 128>}, {pipeline_mode = #tpu.pipeline_mode<synchronous>, transform_indices = @transform_2, window_bounds = array<i64: 1, 128>}, {transform_indices = @transform_3, window_bounds = array<i64: 128, 128>}]} {
    %c0 = arith.constant 0 : index
    %c0_0 = arith.constant 0 : index
    %0 = vector.load %arg1[%c0, %c0_0] : memref<128x128xbf16, #tpu.memory_space<vmem>>, vector<128x128xbf16>
    %1 = arith.extf %0 : vector<128x128xbf16> to vector<128x128xf32>
    %c0_1 = arith.constant 0 : index
    %c0_2 = arith.constant 0 : index
    %2 = vector.load %arg2[%c0_1, %c0_2] : memref<1x128xf32, #tpu.memory_space<vmem>>, vector<1x128xf32>
    %3 = vector.broadcast %2 : vector<1x128xf32> to vector<128x128xf32>
    %4 = arith.mulf %1, %3 : vector<128x128xf32>
    %c0_3 = arith.constant 0 : index
    %c0_4 = arith.constant 0 : index
    %5 = vector.load %arg3[%c0_3, %c0_4] : memref<1x128xf32, #tpu.memory_space<vmem>>, vector<1x128xf32>
    %6 = vector.broadcast %5 : vector<1x128xf32> to vector<128x128xf32>
    %7 = arith.addf %4, %6 : vector<128x128xf32>
    %cst = arith.constant 0.000000e+00 : f32
    %8 = vector.broadcast %cst : f32 to vector<128x128xf32>
    %9 = arith.maximumf %7, %8 : vector<128x128xf32>
    %10 = arith.truncf %9 : vector<128x128xf32> to vector<128x128xbf16>
    %c0_5 = arith.constant 0 : index
    %c0_6 = arith.constant 0 : index
    %11 = vector.load %arg4[%c0_5, %c0_6] : memref<128x128xbf16, #tpu.memory_space<vmem>>, vector<128x128xbf16>
    tpu.vector_store %arg4[%c0_5, %c0_6], %10 {strides = array<i32>} : memref<128x128xbf16, #tpu.memory_space<vmem>>, vector<128x128xbf16>,
    return
  }
  func.func @transform_0(%arg0: i32) -> (i32, i32) {
    %c0_i32 = arith.constant 0 : i32
    %c0_i32_0 = arith.constant 0 : i32
    return %arg0, %c0_i32 : i32, i32
  }
  func.func @transform_1(%arg0: i32) -> (i32, i32) {
    %c0_i32 = arith.constant 0 : i32
    %c0_i32_0 = arith.constant 0 : i32
    %c0_i32_1 = arith.constant 0 : i32
    return %c0_i32, %c0_i32_0 : i32, i32
  }
  func.func @transform_2(%arg0: i32) -> (i32, i32) {
    %c0_i32 = arith.constant 0 : i32
    %c0_i32_0 = arith.constant 0 : i32
    %c0_i32_1 = arith.constant 0 : i32
    return %c0_i32, %c0_i32_0 : i32, i32
  }
  func.func @transform_3(%arg0: i32) -> (i32, i32) {
    %c0_i32 = arith.constant 0 : i32
    %c0_i32_0 = arith.constant 0 : i32
    return %arg0, %c0_i32 : i32, i32
  }
}

module attributes {stable_mosaic.version = 11 : i64} {
  func.func @_affine_skip_relu_kernel(%arg0: i32, %arg1: memref<128x128xbf16, #tpu.memory_space<vmem>>, %arg2: memref<1x128xf32, #tpu.memory_space<vmem>>, %arg3: memref<1x128xf32, #tpu.memory_space<vmem>>, %arg4: memref<128x128xbf16, #tpu.memory_space<vmem>>, %arg5: memref<128x128xbf16, #tpu.memory_space<vmem>>, %arg6: memref<1x128xf32, #tpu.memory_space<vmem>>, %arg7: memref<128x128xf32, #tpu.memory_space<vmem>>) attributes {dimension_semantics = [#tpu.dimension_semantics<parallel>], iteration_bounds = array<i64: 4>, scalar_prefetch = 0 : i64, scratch_operands = 0 : i64, tpu.core_type = #tpu.core_type<tc>, window_params = [{transform_indices = @transform_0, window_bounds = array<i64: 128, 128>}, {pipeline_mode = #tpu.pipeline_mode<synchronous>, transform_indices = @transform_1, window_bounds = array<i64: 1, 128>}, {pipeline_mode = #tpu.pipeline_mode<synchronous>, transform_indices = @transform_2, window_bounds = array<i64: 1, 128>}, {transform_indices = @transform_3, window_bounds = array<i64: 128, 128>}, {pipeline_mode = #tpu.pipeline_mode<synchronous>, transform_indices = @transform_4, window_bounds = array<i64: 128, 128>}, {pipeline_mode = #tpu.pipeline_mode<synchronous>, transform_indices = @transform_5, window_bounds = array<i64: 1, 128>}, {transform_indices = @transform_6, window_bounds = array<i64: 128, 128>}]} {
    %c0 = arith.constant 0 : index
    %c0_0 = arith.constant 0 : index
    %0 = vector.load %arg4[%c0, %c0_0] : memref<128x128xbf16, #tpu.memory_space<vmem>>, vector<128x128xbf16>
    %c0_1 = arith.constant 0 : index
    %c0_2 = arith.constant 0 : index
    %1 = vector.load %arg5[%c0_1, %c0_2] : memref<128x128xbf16, #tpu.memory_space<vmem>>, vector<128x128xbf16>
    %cst = arith.constant dense<0.000000e+00> : vector<128x128xf32>
    %2 = tpu.matmul %0, %1, %cst {dimension_numbers = #tpu.dot_dimension_numbers<[1], [0], [0], [1], [0, 0, 1, 1], [], []>} : vector<128x128xbf16>, vector<128x128xbf16>, vector<128x128xf32> -> vector<128x128xf32>
    %c0_3 = arith.constant 0 : index
    %c0_4 = arith.constant 0 : index
    %3 = vector.load %arg6[%c0_3, %c0_4] : memref<1x128xf32, #tpu.memory_space<vmem>>, vector<1x128xf32>
    %4 = vector.broadcast %3 : vector<1x128xf32> to vector<128x128xf32>
    %5 = arith.addf %2, %4 : vector<128x128xf32>
    %c0_5 = arith.constant 0 : index
    %c0_6 = arith.constant 0 : index
    %6 = vector.load %arg1[%c0_5, %c0_6] : memref<128x128xbf16, #tpu.memory_space<vmem>>, vector<128x128xbf16>
    %7 = arith.extf %6 : vector<128x128xbf16> to vector<128x128xf32>
    %c0_7 = arith.constant 0 : index
    %c0_8 = arith.constant 0 : index
    %8 = vector.load %arg2[%c0_7, %c0_8] : memref<1x128xf32, #tpu.memory_space<vmem>>, vector<1x128xf32>
    %9 = vector.broadcast %8 : vector<1x128xf32> to vector<128x128xf32>
    %10 = arith.mulf %7, %9 : vector<128x128xf32>
    %c0_9 = arith.constant 0 : index
    %c0_10 = arith.constant 0 : index
    %11 = vector.load %arg3[%c0_9, %c0_10] : memref<1x128xf32, #tpu.memory_space<vmem>>, vector<1x128xf32>
    %12 = vector.broadcast %11 : vector<1x128xf32> to vector<128x128xf32>
    %13 = arith.addf %10, %12 : vector<128x128xf32>
    %14 = arith.addf %13, %5 : vector<128x128xf32>
    %cst_11 = arith.constant 0.000000e+00 : f32
    %15 = vector.broadcast %cst_11 : f32 to vector<128x128xf32>
    %16 = arith.maximumf %14, %15 : vector<128x128xf32>
    %c0_12 = arith.constant 0 : index
    %c0_13 = arith.constant 0 : index
    %17 = vector.load %arg7[%c0_12, %c0_13] : memref<128x128xf32, #tpu.memory_space<vmem>>, vector<128x128xf32>
    tpu.vector_store %arg7[%c0_12, %c0_13], %16 {strides = array<i32>} : memref<128x128xf32, #tpu.memory_space<vmem>>, vector<128x128xf32>,
    return
  }
  func.func @transform_0(%arg0: i32) -> (i32, i32) {
    %c0_i32 = arith.constant 0 : i32
    %c0_i32_0 = arith.constant 0 : i32
    return %arg0, %c0_i32 : i32, i32
  }
  func.func @transform_1(%arg0: i32) -> (i32, i32) {
    %c0_i32 = arith.constant 0 : i32
    %c0_i32_0 = arith.constant 0 : i32
    %c0_i32_1 = arith.constant 0 : i32
    return %c0_i32, %c0_i32_0 : i32, i32
  }
  func.func @transform_2(%arg0: i32) -> (i32, i32) {
    %c0_i32 = arith.constant 0 : i32
    %c0_i32_0 = arith.constant 0 : i32
    %c0_i32_1 = arith.constant 0 : i32
    return %c0_i32, %c0_i32_0 : i32, i32
  }
  func.func @transform_3(%arg0: i32) -> (i32, i32) {
    %c0_i32 = arith.constant 0 : i32
    %c0_i32_0 = arith.constant 0 : i32
    return %arg0, %c0_i32 : i32, i32
  }
  func.func @transform_4(%arg0: i32) -> (i32, i32) {
    %c0_i32 = arith.constant 0 : i32
    %c0_i32_0 = arith.constant 0 : i32
    %c0_i32_1 = arith.constant 0 : i32
    return %c0_i32, %c0_i32_0 : i32, i32
  }
  func.func @transform_5(%arg0: i32) -> (i32, i32) {
    %c0_i32 = arith.constant 0 : i32
    %c0_i32_0 = arith.constant 0 : i32
    %c0_i32_1 = arith.constant 0 : i32
    return %c0_i32, %c0_i32_0 : i32, i32
  }
  func.func @transform_6(%arg0: i32) -> (i32, i32) {
    %c0_i32 = arith.constant 0 : i32
    %c0_i32_0 = arith.constant 0 : i32
    return %arg0, %c0_i32 : i32, i32
  }
}

</mosaic_0001>

<llo_original>
// kernel: residual_block.5
$region0: #{residual_block.5}
  #allocation0 [shape = 'u32[]', space=smem, size = 0x4, offset = 0x4, fixed_abs, tag = 'smem constant byte address 0x4 - core index']
  #allocation1 [shape = 'u32[144,128]{1,0:T(1,128)}', space=vmem, size = 0x12000, scoped, tag = 'internal scratch']
  %s0 = inlined_call_operand.hbm [shape: bf16[512,128], index: 0, kind: input, shape index: {}]
  %s1 = inlined_call_operand.hbm [shape: f32[1,128], index: 1, kind: input, shape index: {}]
  %s2 = inlined_call_operand.hbm [shape: f32[1,128], index: 2, kind: input, shape index: {}]
  %s3 = inlined_call_operand.hbm [shape: bf16[512,128], index: 3, kind: output, shape index: {}]
  %s4 = sld [smem:[#allocation0]]
  $region57: #{residual_block.5} parent=0
    _
  %s6 = ssub.s32 1, %s4
  %s7 = scalar_select 0, %s6, %s4
  $region1: #{residual_block.5} parent=0
    #allocation2 [shape = 'u8[65536]{0}', space=vmem, size = 0x10000, scoped, tag = 'input window, operand 0']
    #allocation3 [shape = 's32[2]{0}', space=sflag, size = 0x8, scoped, tag = 'scoped memory for residual_block.5']
    #allocation4 [shape = 's32[2]{0}', space=sflag, size = 0x8, scoped, tag = 'scoped memory for residual_block.5']
    #allocation5 [shape = 'u8[512]{0}', space=vmem, size = 0x400, scoped, tag = 'input window, operand 1, single buffered']
    #allocation6 [shape = 's32[1]{0}', space=sflag, size = 0x4, scoped, tag = 'scoped memory for residual_block.5']
    #allocation7 [shape = 'u8[512]{0}', space=vmem, size = 0x400, scoped, tag = 'input window, operand 2, single buffered']
    #allocation8 [shape = 'u8[65536]{0}', space=vmem, size = 0x10000, scoped, tag = 'output window, operand 0']
    %8 = vsyncpa [#allocation3], 0
    %s9 = scalar_lea.sflag [#allocation3], 1
    %10 = vsyncpa %s9, 0
    %11 = vsyncpa [#allocation6], 0
    %12 = vsyncpa [#allocation4], 0
    %s13 = scalar_lea.sflag [#allocation4], 1
    %14 = vsyncpa %s13, 0
    loop: start=0, step=1, limit=6
    $region2: #{residual_block.5} parent=1 // loop_pre_header
      _
    $region3: #{residual_block.5} parent=1 // loop_header
      %s16 = sphi 0, %s20
      %p17 = scmp.ge.s32.totalorder %s16, 6
      %s26 = sphi 0, %s28
      %s29 = sphi 0, %s26
      %s30 = sphi 0, %s29
      %s46 = sphi 0, %s30
      %s50 = sphi 0, %s50
      %s52 = sphi 0, %s50
      %s53 = sphi 0, %s52
      %s67 = sphi 0, %s53
      %s71 = sphi 0, %s71
      %s73 = sphi 0, %s71
      %s74 = sphi 0, %s73
      %s88 = sphi 0, %s74
      %s94 = sphi 0, %s96
      %s97 = sphi 0, %s94
      %s98 = sphi 0, %s97
      %s114 = sphi 0, %s98
    $region4: #{residual_block.5} parent=1 // loop_header_branch
      %19 = sbr.rel (%p17) target = $region8
    $region5: #{residual_block.5} parent=1 // loop_body
      %s21 = ssub.s32 %s16, 1
      %s22 = ssub.s32 %s16, 2
      %s23 = sadd.s32 %s16, 1
      %s24 = ssub.s32 %s16, %s23
      %p25 = scmp.eq.s32.totalorder %s24, 0
      %s27 = sadd.s32 %s26, 1
      %s28 = scalar_select %p25, %s26, %s27
      %p31 = pneg %p25
      %p32 = scmp.eq.s32.totalorder %s16, 3
      %p33 = por %p31, %p32
      %p34 = scmp.ne.s32.totalorder %s26, %s29
      %p35 = scmp.eq.s32.totalorder %s16, 0
      %p36 = por %p34, %p35
      %p37 = scmp.ne.s32.totalorder %s26, %s29
      %p38 = scmp.eq.s32.totalorder %s21, 3
      %p39 = por %p37, %p38
      %p40 = scmp.ne.s32.totalorder %s29, %s30
      %p41 = scmp.eq.s32.totalorder %s21, 0
      %p42 = por %p40, %p41
      %p43 = scmp.ne.s32.totalorder %s29, %s30
      %p44 = scmp.eq.s32.totalorder %s22, 3
      %p45 = por %p43, %p44
      %p47 = scmp.ne.s32.totalorder %s30, %s46
      %p48 = scmp.eq.s32.totalorder %s22, 0
      %p49 = por %p47, %p48
      %s51 = sadd.s32 %s50, 1
      %p54 = scmp.eq.s32.totalorder %s16, 3
      %p55 = scmp.ne.s32.totalorder %s50, %s52
      %p56 = scmp.eq.s32.totalorder %s16, 0
      %p57 = por %p55, %p56
      %p58 = scmp.ne.s32.totalorder %s50, %s52
      %p59 = scmp.eq.s32.totalorder %s21, 3
      %p60 = por %p58, %p59
      %p61 = scmp.ne.s32.totalorder %s52, %s53
      %p62 = scmp.eq.s32.totalorder %s21, 0
      %p63 = por %p61, %p62
      %p64 = scmp.ne.s32.totalorder %s52, %s53
      %p65 = scmp.eq.s32.totalorder %s22, 3
      %p66 = por %p64, %p65
      %p68 = scmp.ne.s32.totalorder %s53, %s67
      %p69 = scmp.eq.s32.totalorder %s22, 0
      %p70 = por %p68, %p69
      %s72 = sadd.s32 %s71, 1
      %p75 = scmp.eq.s32.totalorder %s16, 3
      %p76 = scmp.ne.s32.totalorder %s71, %s73
      %p77 = scmp.eq.s32.totalorder %s16, 0
      %p78 = por %p76, %p77
      %p79 = scmp.ne.s32.totalorder %s71, %s73
      %p80 = scmp.eq.s32.totalorder %s21, 3
      %p81 = por %p79, %p80
      %p82 = scmp.ne.s32.totalorder %s73, %s74
      %p83 = scmp.eq.s32.totalorder %s21, 0
      %p84 = por %p82, %p83
      %p85 = scmp.ne.s32.totalorder %s73, %s74
      %p86 = scmp.eq.s32.totalorder %s22, 3
      %p87 = por %p85, %p86
      %p89 = scmp.ne.s32.totalorder %s74, %s88
      %p90 = scmp.eq.s32.totalorder %s22, 0
      %p91 = por %p89, %p90
      %s92 = ssub.s32 %s16, %s23
      %p93 = scmp.eq.s32.totalorder %s92, 0
      %s95 = sadd.s32 %s94, 1
      %s96 = scalar_select %p93, %s94, %s95
      %p99 = pneg %p93
      %p100 = scmp.eq.s32.totalorder %s16, 3
      %p101 = por %p99, %p100
      %p102 = scmp.ne.s32.totalorder %s94, %s97
      %p103 = scmp.eq.s32.totalorder %s16, 0
      %p104 = por %p102, %p103
      %p105 = scmp.ne.s32.totalorder %s94, %s97
      %p106 = scmp.eq.s32.totalorder %s21, 3
      %p107 = por %p105, %p106
      %p108 = scmp.ne.s32.totalorder %s97, %s98
      %p109 = scmp.eq.s32.totalorder %s21, 0
      %p110 = por %p108, %p109
      %p111 = scmp.ne.s32.totalorder %s97, %s98
      %p112 = scmp.eq.s32.totalorder %s22, 3
      %p113 = por %p111, %p112
      %p115 = scmp.ne.s32.totalorder %s98, %s114
      %p116 = scmp.eq.s32.totalorder %s22, 0
      %p117 = por %p115, %p116
      %p118 = scmp.le.s32.totalorder 1, %s16
      %p119 = scmp.lt.s32.totalorder %s16, 5
      %p120 = pnand %p118, %p119
      %p121 = pneg %p120
      // Predicated region
      $region9: #{residual_block.5} parent=5 // pred_check
        _
      $region10: #{residual_block.5} parent=5 // pred_check_branch
        %123 = sbr.rel (%p120) target = $region12
      $region11: #{residual_block.5} parent=5 // pred_region
        %s124 = ssub.s32 %s16, 1
        // Predicated region
        $region13: #{residual_block.5} parent=11 // pred_check
          %p125 = pneg %p63
        $region14: #{residual_block.5} parent=11 // pred_check_branch
          %127 = sbr.rel (%p125) target = $region16
        $region15: #{residual_block.5} parent=11 // pred_region
          %s129 = ssub.s32 16, 16
          %130 = vsyncadd [#allocation6], %s129
          %s132 = sshll.u32 [#allocation5], 4
          %s133 = int_to_ptr.vmem [resolvable:$true] %s132
          %135 = dma.hbm_to_vmem [thread:$0]  %s1, 16, %s133, [#allocation6]
        $region16: #{residual_block.5} parent=11 // pred_fallthru
          _
        // Predicated region
        $region17: #{residual_block.5} parent=11 // pred_check
          %p136 = pneg %p84
        $region18: #{residual_block.5} parent=11 // pred_check_branch
          %138 = sbr.rel (%p136) target = $region20
        $region19: #{residual_block.5} parent=11 // pred_region
          %s140 = ssub.s32 16, 16
          %141 = vsyncadd [#allocation6], %s140
          %s143 = sshll.u32 [#allocation7], 4
          %s144 = int_to_ptr.vmem [resolvable:$true] %s143
          %146 = dma.hbm_to_vmem [thread:$0]  %s2, 16, %s144, [#allocation6]
        $region20: #{residual_block.5} parent=11 // pred_fallthru
          _
      $region12: #{residual_block.5} parent=5 // pred_fallthru
        _
      %p147 = scmp.lt.s32.totalorder %s16, 4
      // Predicated region
      $region21: #{residual_block.5} parent=5 // pred_check
        %p148 = pneg %p147
      $region22: #{residual_block.5} parent=5 // pred_check_branch
        %150 = sbr.rel (%p148) target = $region24
      $region23: #{residual_block.5} parent=5 // pred_region
        // Predicated region
        $region25: #{residual_block.5} parent=23 // pred_check
          %p151 = pneg %p36
        $region26: #{residual_block.5} parent=23 // pred_check_branch
          %153 = sbr.rel (%p151) target = $region28
        $region27: #{residual_block.5} parent=23 // pred_region
          %s154 = sand.u32 %s26, 1
          %s155 = scalar_lea.sflag [#allocation3], %s154
          %s156 = sand.u32 %s26, 1
          %s157 = smul.addr %s156, 64
          %s158 = scalar_lea.vmem [#allocation2], %s157
          %s159 = smul.u32 16, %s16
          %s161 = ssub.s32 1024, 1024
          %162 = vsyncadd %s155, %s161
          %s163 = smul.addr %s159, 64
          %s164 = scalar_lea.hbm %s0, %s163
          %s165 = sshll.u32 %s158, 4
          %s166 = int_to_ptr.vmem [resolvable:$true] %s165
          %171 = dma.hbm_to_vmem [thread:$0]  %s164, 1024, %s166, %s155, 64, 64, 4
        $region28: #{residual_block.5} parent=23 // pred_fallthru
          _
      $region24: #{residual_block.5} parent=5 // pred_fallthru
        _
      %p172 = scmp.le.s32.totalorder 1, %s16
      %p173 = scmp.lt.s32.totalorder %s16, 5
      %p174 = pnand %p172, %p173
      %p175 = pneg %p174
      // Predicated region
      $region29: #{residual_block.5} parent=5 // pred_check
        _
      $region30: #{residual_block.5} parent=5 // pred_check_branch
        %177 = sbr.rel (%p174) target = $region32
      $region31: #{residual_block.5} parent=5 // pred_region
        %s178 = ssub.s32 %s16, 1
        %s179 = sand.u32 %s29, 1
        %s180 = scalar_lea.sflag [#allocation3], %s179
        %s181 = sand.u32 %s29, 1
        %s182 = smul.addr %s181, 64
        %s183 = scalar_lea.vmem [#allocation2], %s182
        // Predicated region
        $region33: #{residual_block.5} parent=31 // pred_check
          %p184 = pneg %p42
        $region34: #{residual_block.5} parent=31 // pred_check_branch
          %186 = sbr.rel (%p184) target = $region36
        $region35: #{residual_block.5} parent=31 // pred_region
          %187 = dma.done %s180, 1024
        $region36: #{residual_block.5} parent=31 // pred_fallthru
          _
        // Predicated region
        $region37: #{residual_block.5} parent=31 // pred_check
          %p188 = pneg %p63
        $region38: #{residual_block.5} parent=31 // pred_check_branch
          %190 = sbr.rel (%p188) target = $region40
        $region39: #{residual_block.5} parent=31 // pred_region
          %191 = dma.done [#allocation6], 16
        $region40: #{residual_block.5} parent=31 // pred_fallthru
          _
        // Predicated region
        $region41: #{residual_block.5} parent=31 // pred_check
          %p192 = pneg %p84
        $region42: #{residual_block.5} parent=31 // pred_check_branch
          %194 = sbr.rel (%p192) target = $region44
        $region43: #{residual_block.5} parent=31 // pred_region
          %195 = dma.done [#allocation6], 16
        $region44: #{residual_block.5} parent=31 // pred_fallthru
          _
        %s196 = sand.u32 %s29, 1
        %s197 = scalar_lea.sflag [#allocation3], %s196
        %s198 = sand.u32 %s29, 1
        %s199 = smul.addr %s198, 64
        %s200 = scalar_lea.vmem [#allocation2], %s199
        %p201 = pneg %p42
        %p202 = pneg %p39
        %p203 = pneg %p63
        %p204 = pneg %p60
        %p205 = pneg %p84
        %p206 = pneg %p81
        %p207 = pneg %p110
        %p208 = pneg %p107
        %s209 = sand.u32 %s97, 1
        %s210 = scalar_lea.sflag [#allocation4], %s209
        %s211 = sand.u32 %s97, 1
        %s212 = smul.addr %s211, 64
        %s213 = scalar_lea.vmem [#allocation8], %s212
        %s214 = smul.u32 16, %s21
        %s215 = smul.u32 16, %s21
        %v216 = vld [vmem:[%s183] sm:$0xf]
        %v217 = vld [vmem:[%s183 + $0x4] sm:$0xf]
        %v218 = vld [vmem:[%s183 + $0x8] sm:$0xf]
        %v219 = vld [vmem:[%s183 + $0xc] sm:$0xf]
        %v220 = vld [vmem:[%s183 + $0x10] sm:$0xf]
        %v221 = vld [vmem:[%s183 + $0x14] sm:$0xf]
        %v222 = vld [vmem:[%s183 + $0x18] sm:$0xf]
        %v223 = vld [vmem:[%s183 + $0x1c] sm:$0xf]
        %v224 = vld [vmem:[%s183 + $0x20] sm:$0xf]
        %v225 = vld [vmem:[%s183 + $0x24] sm:$0xf]
        %v226 = vld [vmem:[%s183 + $0x28] sm:$0xf]
        %v227 = vld [vmem:[%s183 + $0x2c] sm:$0xf]
        %v228 = vld [vmem:[%s183 + $0x30] sm:$0xf]
        %v229 = vld [vmem:[%s183 + $0x34] sm:$0xf]
        %v230 = vld [vmem:[%s183 + $0x38] sm:$0xf]
        %v231 = vld [vmem:[%s183 + $0x3c] sm:$0xf]
        %v232 = vunpack.c.l.bf16 %v216
        %v233 = vunpack.c.l.bf16 %v217
        %v234 = vunpack.c.l.bf16 %v218
        %v235 = vunpack.c.l.bf16 %v219
        %v236 = vunpack.c.l.bf16 %v220
        %v237 = vunpack.c.l.bf16 %v221
        %v238 = vunpack.c.l.bf16 %v222
        %v239 = vunpack.c.l.bf16 %v223
        %v240 = vunpack.c.l.bf16 %v224
        %v241 = vunpack.c.l.bf16 %v225
        %v242 = vunpack.c.l.bf16 %v226
        %v243 = vunpack.c.l.bf16 %v227
        %v244 = vunpack.c.l.bf16 %v228
        %v245 = vunpack.c.l.bf16 %v229
        %v246 = vunpack.c.l.bf16 %v230
        %v247 = vunpack.c.l.bf16 %v231
        %v248 = vld [vmem:[#allocation5] sm:$0x1]
        %v250 = vlaneseq
        %v251 = vshrl.u32 %v250, 7
        %v252 = vsub.s32 0, %v251
        %v253 = vrot.slane %v248, %v252
        %v255 = vmul.f32 %v232, %v253
        %v256 = vmul.f32 %v233, %v253
        %v257 = vmul.f32 %v234, %v253
        %v258 = vmul.f32 %v235, %v253
        %v259 = vmul.f32 %v236, %v253
        %v260 = vmul.f32 %v237, %v253
        %v261 = vmul.f32 %v238, %v253
        %v262 = vmul.f32 %v239, %v253
        %v263 = vmul.f32 %v240, %v253
        %v264 = vmul.f32 %v241, %v253
        %v265 = vmul.f32 %v242, %v253
        %v266 = vmul.f32 %v243, %v253
        %v267 = vmul.f32 %v244, %v253
        %v268 = vmul.f32 %v245, %v253
        %v269 = vmul.f32 %v246, %v253
        %v270 = vmul.f32 %v247, %v253
        %v271 = vld [vmem:[#allocation7] sm:$0x1]
        %v273 = vlaneseq
        %v274 = vshrl.u32 %v273, 7
        %v275 = vsub.s32 0, %v274
        %v276 = vrot.slane %v271, %v275
        %v278 = vadd.f32 %v255, %v276
        %v279 = vadd.f32 %v256, %v276
        %v280 = vadd.f32 %v257, %v276
        %v281 = vadd.f32 %v258, %v276
        %v282 = vadd.f32 %v259, %v276
        %v283 = vadd.f32 %v260, %v276
        %v284 = vadd.f32 %v261, %v276
        %v285 = vadd.f32 %v262, %v276
        %v286 = vadd.f32 %v263, %v276
        %v287 = vadd.f32 %v264, %v276
        %v288 = vadd.f32 %v265, %v276
        %v289 = vadd.f32 %v266, %v276
        %v290 = vadd.f32 %v267, %v276
        %v291 = vadd.f32 %v268, %v276
        %v292 = vadd.f32 %v269, %v276
        %v293 = vadd.f32 %v270, %v276
        %v294 = vmax.f32 %v278, 0.0
        %v295 = vmax.f32 %v279, 0.0
        %v296 = vmax.f32 %v280, 0.0
        %v297 = vmax.f32 %v281, 0.0
        %v298 = vmax.f32 %v282, 0.0
        %v299 = vmax.f32 %v283, 0.0
        %v300 = vmax.f32 %v284, 0.0
        %v301 = vmax.f32 %v285, 0.0
        %v302 = vmax.f32 %v286, 0.0
        %v303 = vmax.f32 %v287, 0.0
        %v304 = vmax.f32 %v288, 0.0
        %v305 = vmax.f32 %v289, 0.0
        %v306 = vmax.f32 %v290, 0.0
        %v307 = vmax.f32 %v291, 0.0
        %v308 = vmax.f32 %v292, 0.0
        %v309 = vmax.f32 %v293, 0.0
        %v310 = vpack.c.bf16 %v295, %v294
        %v311 = vpack.c.bf16 %v297, %v296
        %v312 = vpack.c.bf16 %v299, %v298
        %v313 = vpack.c.bf16 %v301, %v300
        %v314 = vpack.c.bf16 %v303, %v302
        %v315 = vpack.c.bf16 %v305, %v304
        %v316 = vpack.c.bf16 %v307, %v306
        %v317 = vpack.c.bf16 %v309, %v308
        %v326 = vunpack.c.l.b16 %v310
        %v327 = vunpack.c.h.b16 %v310
        %v328 = vunpack.c.l.b16 %v311
        %v329 = vunpack.c.h.b16 %v311
        %v330 = vunpack.c.l.b16 %v312
        %v331 = vunpack.c.h.b16 %v312
        %v332 = vunpack.c.l.b16 %v313
        %v333 = vunpack.c.h.b16 %v313
        %v334 = vunpack.c.l.b16 %v314
        %v335 = vunpack.c.h.b16 %v314
        %v336 = vunpack.c.l.b16 %v315
        %v337 = vunpack.c.h.b16 %v315
        %v338 = vunpack.c.l.b16 %v316
        %v339 = vunpack.c.h.b16 %v316
        %v340 = vunpack.c.l.b16 %v317
        %v341 = vunpack.c.h.b16 %v317
        %v342 = vpack.c.b16 %v326, %v326
        %v343 = vpack.c.b16 %v327, %v327
        %v344 = vpack.c.b16 %v328, %v328
        %v345 = vpack.c.b16 %v329, %v329
        %v346 = vpack.c.b16 %v330, %v330
        %v347 = vpack.c.b16 %v331, %v331
        %v348 = vpack.c.b16 %v332, %v332
        %v349 = vpack.c.b16 %v333, %v333
        %v350 = vpack.c.b16 %v334, %v334
        %v351 = vpack.c.b16 %v335, %v335
        %v352 = vpack.c.b16 %v336, %v336
        %v353 = vpack.c.b16 %v337, %v337
        %v354 = vpack.c.b16 %v338, %v338
        %v355 = vpack.c.b16 %v339, %v339
        %v356 = vpack.c.b16 %v340, %v340
        %v357 = vpack.c.b16 %v341, %v341
        %374 = vst [vmem:[%s213] sm:$0xf] %v342
        %375 = vst [vmem:[%s213 + $0x4] sm:$0xf] %v343
        %376 = vst [vmem:[%s213 + $0x8] sm:$0xf] %v344
        %377 = vst [vmem:[%s213 + $0xc] sm:$0xf] %v345
        %378 = vst [vmem:[%s213 + $0x10] sm:$0xf] %v346
        %379 = vst [vmem:[%s213 + $0x14] sm:$0xf] %v347
        %380 = vst [vmem:[%s213 + $0x18] sm:$0xf] %v348
        %381 = vst [vmem:[%s213 + $0x1c] sm:$0xf] %v349
        %382 = vst [vmem:[%s213 + $0x20] sm:$0xf] %v350
        %383 = vst [vmem:[%s213 + $0x24] sm:$0xf] %v351
        %384 = vst [vmem:[%s213 + $0x28] sm:$0xf] %v352
        %385 = vst [vmem:[%s213 + $0x2c] sm:$0xf] %v353
        %386 = vst [vmem:[%s213 + $0x30] sm:$0xf] %v354
        %387 = vst [vmem:[%s213 + $0x34] sm:$0xf] %v355
        %388 = vst [vmem:[%s213 + $0x38] sm:$0xf] %v356
        %389 = vst [vmem:[%s213 + $0x3c] sm:$0xf] %v357
        %s390 = sand.u32 %s97, 1
        %s391 = scalar_lea.sflag [#allocation4], %s390
        %s392 = sand.u32 %s97, 1
        %s393 = smul.addr %s392, 64
        %s394 = scalar_lea.vmem [#allocation8], %s393
        // Predicated region
        $region45: #{residual_block.5} parent=31 // pred_check
          %p395 = pneg %p107
        $region46: #{residual_block.5} parent=31 // pred_check_branch
          %397 = sbr.rel (%p395) target = $region48
        $region47: #{residual_block.5} parent=31 // pred_region
          %s398 = smul.u32 16, %s21
          %s400 = ssub.s32 1024, 1024
          %401 = vsyncadd %s391, %s400
          %s402 = smul.addr %s398, 64
          %s403 = scalar_lea.hbm %s3, %s402
          %s404 = sshll.u32 %s394, 4
          %s405 = int_to_ptr.vmem [resolvable:$true] %s404
          %410 = dma.vmem_to_hbm [thread:$0]  %s405, 1024, %s403, %s391, 64, 64, 4
        $region48: #{residual_block.5} parent=31 // pred_fallthru
          _
      $region32: #{residual_block.5} parent=5 // pred_fallthru
        _
      %p411 = scmp.le.s32.totalorder 2, %s16
      // Predicated region
      $region49: #{residual_block.5} parent=5 // pred_check
        %p412 = pneg %p411
      $region50: #{residual_block.5} parent=5 // pred_check_branch
        %414 = sbr.rel (%p412) target = $region52
      $region51: #{residual_block.5} parent=5 // pred_region
        %s415 = ssub.s32 %s16, 2
        // Predicated region
        $region53: #{residual_block.5} parent=51 // pred_check
          %p416 = pneg %p113
        $region54: #{residual_block.5} parent=51 // pred_check_branch
          %418 = sbr.rel (%p416) target = $region56
        $region55: #{residual_block.5} parent=51 // pred_region
          %s419 = sand.u32 %s98, 1
          %s420 = scalar_lea.sflag [#allocation4], %s419
          %s421 = sand.u32 %s98, 1
          %s422 = smul.addr %s421, 64
          %s423 = scalar_lea.vmem [#allocation8], %s422
          %424 = dma.done %s420, 1024
        $region56: #{residual_block.5} parent=51 // pred_fallthru
          _
      $region52: #{residual_block.5} parent=5 // pred_fallthru
        _
    $region6: #{residual_block.5} parent=1 // loop_footer
      %s20 = sadd.s32 1, %s16
    $region7: #{residual_block.5} parent=1 // loop_footer_branch
      %15 = sbr.rel target = $region3
    $region8: #{residual_block.5} parent=1 // loop_exit
      _
    %425 = vsyncpa [#allocation3], 1
    %s426 = scalar_lea.sflag [#allocation3], 1
    %427 = vsyncpa %s426, 1
    %428 = vsyncpa [#allocation6], 1
    %429 = vsyncpa [#allocation4], 1
    %s430 = scalar_lea.sflag [#allocation4], 1
    %431 = vsyncpa %s430, 1

// kernel: residual_block.7
$region0: #{residual_block.7}
  #allocation0 [shape = 'u32[]', space=smem, size = 0x4, offset = 0x4, fixed_abs, tag = 'smem constant byte address 0x4 - core index']
  #allocation1 [shape = 'u32[144,128]{1,0:T(1,128)}', space=vmem, size = 0x12000, scoped, tag = 'internal scratch']
  %s0 = inlined_call_operand.hbm [shape: bf16[512,128], index: 0, kind: input, shape index: {}]
  %s1 = inlined_call_operand.hbm [shape: f32[1,128], index: 1, kind: input, shape index: {}]
  %s2 = inlined_call_operand.hbm [shape: f32[1,128], index: 2, kind: input, shape index: {}]
  %s3 = inlined_call_operand.hbm [shape: bf16[512,128], index: 3, kind: input, shape index: {}]
  %s4 = inlined_call_operand.hbm [shape: bf16[128,128], index: 4, kind: input, shape index: {}]
  %s5 = inlined_call_operand.hbm [shape: f32[1,128], index: 5, kind: input, shape index: {}]
  %s6 = inlined_call_operand.hbm [shape: f32[512,128], index: 6, kind: output, shape index: {}]
  %s7 = sld [smem:[#allocation0]]
  $region81: #{residual_block.7} parent=0
    _
  %s9 = ssub.s32 1, %s7
  %s10 = scalar_select 0, %s9, %s7
  $region1: #{residual_block.7} parent=0
    #allocation2 [shape = 'u8[65536]{0}', space=vmem, size = 0x10000, scoped, tag = 'input window, operand 0']
    #allocation3 [shape = 's32[2]{0}', space=sflag, size = 0x8, scoped, tag = 'scoped memory for residual_block.7']
    #allocation4 [shape = 's32[2]{0}', space=sflag, size = 0x8, scoped, tag = 'scoped memory for residual_block.7']
    #allocation5 [shape = 'u8[512]{0}', space=vmem, size = 0x400, scoped, tag = 'input window, operand 1, single buffered']
    #allocation6 [shape = 's32[1]{0}', space=sflag, size = 0x4, scoped, tag = 'scoped memory for residual_block.7']
    #allocation7 [shape = 'u8[512]{0}', space=vmem, size = 0x400, scoped, tag = 'input window, operand 2, single buffered']
    #allocation8 [shape = 'u8[65536]{0}', space=vmem, size = 0x10000, scoped, tag = 'input window, operand 3']
    #allocation9 [shape = 's32[2]{0}', space=sflag, size = 0x8, scoped, tag = 'scoped memory for residual_block.7']
    #allocation10 [shape = 'u8[32768]{0}', space=vmem, size = 0x8000, scoped, tag = 'input window, operand 4, single buffered']
    #allocation11 [shape = 'u8[512]{0}', space=vmem, size = 0x400, scoped, tag = 'input window, operand 5, single buffered']
    #allocation12 [shape = 's32[1]{0}', space=sflag, size = 0x4, scoped, tag = 'scoped memory for residual_block.7']
    #allocation13 [shape = 'u8[131072]{0}', space=vmem, size = 0x20000, scoped, tag = 'output window, operand 0']
    %11 = vsyncpa [#allocation3], 0
    %s12 = scalar_lea.sflag [#allocation3], 1
    %13 = vsyncpa %s12, 0
    %14 = vsyncpa [#allocation6], 0
    %15 = vsyncpa [#allocation9], 0
    %s16 = scalar_lea.sflag [#allocation9], 1
    %17 = vsyncpa %s16, 0
    %18 = vsyncpa [#allocation12], 0
    %19 = vsyncpa [#allocation4], 0
    %s20 = scalar_lea.sflag [#allocation4], 1
    %21 = vsyncpa %s20, 0
    loop: start=0, step=1, limit=6
    $region2: #{residual_block.7} parent=1 // loop_pre_header
      _
    $region3: #{residual_block.7} parent=1 // loop_header
      %s23 = sphi 0, %s27
      %p24 = scmp.ge.s32.totalorder %s23, 6
      %s33 = sphi 0, %s35
      %s36 = sphi 0, %s33
      %s37 = sphi 0, %s36
      %s53 = sphi 0, %s37
      %s57 = sphi 0, %s57
      %s59 = sphi 0, %s57
      %s60 = sphi 0, %s59
      %s74 = sphi 0, %s60
      %s78 = sphi 0, %s78
      %s80 = sphi 0, %s78
      %s81 = sphi 0, %s80
      %s95 = sphi 0, %s81
      %s101 = sphi 0, %s103
      %s104 = sphi 0, %s101
      %s105 = sphi 0, %s104
      %s121 = sphi 0, %s105
      %s125 = sphi 0, %s125
      %s127 = sphi 0, %s125
      %s128 = sphi 0, %s127
      %s142 = sphi 0, %s128
      %s146 = sphi 0, %s146
      %s148 = sphi 0, %s146
      %s149 = sphi 0, %s148
      %s163 = sphi 0, %s149
      %s169 = sphi 0, %s171
      %s172 = sphi 0, %s169
      %s173 = sphi 0, %s172
      %s189 = sphi 0, %s173
    $region4: #{residual_block.7} parent=1 // loop_header_branch
      %26 = sbr.rel (%p24) target = $region8
    $region5: #{residual_block.7} parent=1 // loop_body
      %s28 = ssub.s32 %s23, 1
      %s29 = ssub.s32 %s23, 2
      %s30 = sadd.s32 %s23, 1
      %s31 = ssub.s32 %s23, %s30
      %p32 = scmp.eq.s32.totalorder %s31, 0
      %s34 = sadd.s32 %s33, 1
      %s35 = scalar_select %p32, %s33, %s34
      %p38 = pneg %p32
      %p39 = scmp.eq.s32.totalorder %s23, 3
      %p40 = por %p38, %p39
      %p41 = scmp.ne.s32.totalorder %s33, %s36
      %p42 = scmp.eq.s32.totalorder %s23, 0
      %p43 = por %p41, %p42
      %p44 = scmp.ne.s32.totalorder %s33, %s36
      %p45 = scmp.eq.s32.totalorder %s28, 3
      %p46 = por %p44, %p45
      %p47 = scmp.ne.s32.totalorder %s36, %s37
      %p48 = scmp.eq.s32.totalorder %s28, 0
      %p49 = por %p47, %p48
      %p50 = scmp.ne.s32.totalorder %s36, %s37
      %p51 = scmp.eq.s32.totalorder %s29, 3
      %p52 = por %p50, %p51
      %p54 = scmp.ne.s32.totalorder %s37, %s53
      %p55 = scmp.eq.s32.totalorder %s29, 0
      %p56 = por %p54, %p55
      %s58 = sadd.s32 %s57, 1
      %p61 = scmp.eq.s32.totalorder %s23, 3
      %p62 = scmp.ne.s32.totalorder %s57, %s59
      %p63 = scmp.eq.s32.totalorder %s23, 0
      %p64 = por %p62, %p63
      %p65 = scmp.ne.s32.totalorder %s57, %s59
      %p66 = scmp.eq.s32.totalorder %s28, 3
      %p67 = por %p65, %p66
      %p68 = scmp.ne.s32.totalorder %s59, %s60
      %p69 = scmp.eq.s32.totalorder %s28, 0
      %p70 = por %p68, %p69
      %p71 = scmp.ne.s32.totalorder %s59, %s60
      %p72 = scmp.eq.s32.totalorder %s29, 3
      %p73 = por %p71, %p72
      %p75 = scmp.ne.s32.totalorder %s60, %s74
      %p76 = scmp.eq.s32.totalorder %s29, 0
      %p77 = por %p75, %p76
      %s79 = sadd.s32 %s78, 1
      %p82 = scmp.eq.s32.totalorder %s23, 3
      %p83 = scmp.ne.s32.totalorder %s78, %s80
      %p84 = scmp.eq.s32.totalorder %s23, 0
      %p85 = por %p83, %p84
      %p86 = scmp.ne.s32.totalorder %s78, %s80
      %p87 = scmp.eq.s32.totalorder %s28, 3
      %p88 = por %p86, %p87
      %p89 = scmp.ne.s32.totalorder %s80, %s81
      %p90 = scmp.eq.s32.totalorder %s28, 0
      %p91 = por %p89, %p90
      %p92 = scmp.ne.s32.totalorder %s80, %s81
      %p93 = scmp.eq.s32.totalorder %s29, 3
      %p94 = por %p92, %p93
      %p96 = scmp.ne.s32.totalorder %s81, %s95
      %p97 = scmp.eq.s32.totalorder %s29, 0
      %p98 = por %p96, %p97
      %s99 = ssub.s32 %s23, %s30
      %p100 = scmp.eq.s32.totalorder %s99, 0
      %s102 = sadd.s32 %s101, 1
      %s103 = scalar_select %p100, %s101, %s102
      %p106 = pneg %p100
      %p107 = scmp.eq.s32.totalorder %s23, 3
      %p108 = por %p106, %p107
      %p109 = scmp.ne.s32.totalorder %s101, %s104
      %p110 = scmp.eq.s32.totalorder %s23, 0
      %p111 = por %p109, %p110
      %p112 = scmp.ne.s32.totalorder %s101, %s104
      %p113 = scmp.eq.s32.totalorder %s28, 3
      %p114 = por %p112, %p113
      %p115 = scmp.ne.s32.totalorder %s104, %s105
      %p116 = scmp.eq.s32.totalorder %s28, 0
      %p117 = por %p115, %p116
      %p118 = scmp.ne.s32.totalorder %s104, %s105
      %p119 = scmp.eq.s32.totalorder %s29, 3
      %p120 = por %p118, %p119
      %p122 = scmp.ne.s32.totalorder %s105, %s121
      %p123 = scmp.eq.s32.totalorder %s29, 0
      %p124 = por %p122, %p123
      %s126 = sadd.s32 %s125, 1
      %p129 = scmp.eq.s32.totalorder %s23, 3
      %p130 = scmp.ne.s32.totalorder %s125, %s127
      %p131 = scmp.eq.s32.totalorder %s23, 0
      %p132 = por %p130, %p131
      %p133 = scmp.ne.s32.totalorder %s125, %s127
      %p134 = scmp.eq.s32.totalorder %s28, 3
      %p135 = por %p133, %p134
      %p136 = scmp.ne.s32.totalorder %s127, %s128
      %p137 = scmp.eq.s32.totalorder %s28, 0
      %p138 = por %p136, %p137
      %p139 = scmp.ne.s32.totalorder %s127, %s128
      %p140 = scmp.eq.s32.totalorder %s29, 3
      %p141 = por %p139, %p140
      %p143 = scmp.ne.s32.totalorder %s128, %s142
      %p144 = scmp.eq.s32.totalorder %s29, 0
      %p145 = por %p143, %p144
      %s147 = sadd.s32 %s146, 1
      %p150 = scmp.eq.s32.totalorder %s23, 3
      %p151 = scmp.ne.s32.totalorder %s146, %s148
      %p152 = scmp.eq.s32.totalorder %s23, 0
      %p153 = por %p151, %p152
      %p154 = scmp.ne.s32.totalorder %s146, %s148
      %p155 = scmp.eq.s32.totalorder %s28, 3
      %p156 = por %p154, %p155
      %p157 = scmp.ne.s32.totalorder %s148, %s149
      %p158 = scmp.eq.s32.totalorder %s28, 0
      %p159 = por %p157, %p158
      %p160 = scmp.ne.s32.totalorder %s148, %s149
      %p161 = scmp.eq.s32.totalorder %s29, 3
      %p162 = por %p160, %p161
      %p164 = scmp.ne.s32.totalorder %s149, %s163
      %p165 = scmp.eq.s32.totalorder %s29, 0
      %p166 = por %p164, %p165
      %s167 = ssub.s32 %s23, %s30
      %p168 = scmp.eq.s32.totalorder %s167, 0
      %s170 = sadd.s32 %s169, 1
      %s171 = scalar_select %p168, %s169, %s170
      %p174 = pneg %p168
      %p175 = scmp.eq.s32.totalorder %s23, 3
      %p176 = por %p174, %p175
      %p177 = scmp.ne.s32.totalorder %s169, %s172
      %p178 = scmp.eq.s32.totalorder %s23, 0
      %p179 = por %p177, %p178
      %p180 = scmp.ne.s32.totalorder %s169, %s172
      %p181 = scmp.eq.s32.totalorder %s28, 3
      %p182 = por %p180, %p181
      %p183 = scmp.ne.s32.totalorder %s172, %s173
      %p184 = scmp.eq.s32.totalorder %s28, 0
      %p185 = por %p183, %p184
      %p186 = scmp.ne.s32.totalorder %s172, %s173
      %p187 = scmp.eq.s32.totalorder %s29, 3
      %p188 = por %p186, %p187
      %p190 = scmp.ne.s32.totalorder %s173, %s189
      %p191 = scmp.eq.s32.totalorder %s29, 0
      %p192 = por %p190, %p191
      %p193 = scmp.le.s32.totalorder 1, %s23
      %p194 = scmp.lt.s32.totalorder %s23, 5
      %p195 = pnand %p193, %p194
      %p196 = pneg %p195
      // Predicated region
      $region9: #{residual_block.7} parent=5 // pred_check
        _
      $region10: #{residual_block.7} parent=5 // pred_check_branch
        %198 = sbr.rel (%p195) target = $region12
      $region11: #{residual_block.7} parent=5 // pred_region
        %s199 = ssub.s32 %s23, 1
        // Predicated region
        $region13: #{residual_block.7} parent=11 // pred_check
          %p200 = pneg %p70
        $region14: #{residual_block.7} parent=11 // pred_check_branch
          %202 = sbr.rel (%p200) target = $region16
        $region15: #{residual_block.7} parent=11 // pred_region
          %s204 = ssub.s32 16, 16
          %205 = vsyncadd [#allocation6], %s204
          %s207 = sshll.u32 [#allocation5], 4
          %s208 = int_to_ptr.vmem [resolvable:$true] %s207
          %210 = dma.hbm_to_vmem [thread:$0]  %s1, 16, %s208, [#allocation6]
        $region16: #{residual_block.7} parent=11 // pred_fallthru
          _
        // Predicated region
        $region17: #{residual_block.7} parent=11 // pred_check
          %p211 = pneg %p91
        $region18: #{residual_block.7} parent=11 // pred_check_branch
          %213 = sbr.rel (%p211) target = $region20
        $region19: #{residual_block.7} parent=11 // pred_region
          %s215 = ssub.s32 16, 16
          %216 = vsyncadd [#allocation6], %s215
          %s218 = sshll.u32 [#allocation7], 4
          %s219 = int_to_ptr.vmem [resolvable:$true] %s218
          %221 = dma.hbm_to_vmem [thread:$0]  %s2, 16, %s219, [#allocation6]
        $region20: #{residual_block.7} parent=11 // pred_fallthru
          _
        // Predicated region
        $region21: #{residual_block.7} parent=11 // pred_check
          %p222 = pneg %p138
        $region22: #{residual_block.7} parent=11 // pred_check_branch
          %224 = sbr.rel (%p222) target = $region24
        $region23: #{residual_block.7} parent=11 // pred_region
          %s226 = ssub.s32 1024, 1024
          %227 = vsyncadd [#allocation9], %s226
          %s228 = sshll.u32 [#allocation10], 4
          %s229 = int_to_ptr.vmem [resolvable:$true] %s228
          %234 = dma.hbm_to_vmem [thread:$0]  %s4, 1024, %s229, [#allocation9], 64, 64, 4
        $region24: #{residual_block.7} parent=11 // pred_fallthru
          _
        // Predicated region
        $region25: #{residual_block.7} parent=11 // pred_check
          %p235 = pneg %p159
        $region26: #{residual_block.7} parent=11 // pred_check_branch
          %237 = sbr.rel (%p235) target = $region28
        $region27: #{residual_block.7} parent=11 // pred_region
          %s239 = ssub.s32 16, 16
          %240 = vsyncadd [#allocation12], %s239
          %s242 = sshll.u32 [#allocation11], 4
          %s243 = int_to_ptr.vmem [resolvable:$true] %s242
          %245 = dma.hbm_to_vmem [thread:$0]  %s5, 16, %s243, [#allocation12]
        $region28: #{residual_block.7} parent=11 // pred_fallthru
          _
      $region12: #{residual_block.7} parent=5 // pred_fallthru
        _
      %p246 = scmp.lt.s32.totalorder %s23, 4
      // Predicated region
      $region29: #{residual_block.7} parent=5 // pred_check
        %p247 = pneg %p246
      $region30: #{residual_block.7} parent=5 // pred_check_branch
        %249 = sbr.rel (%p247) target = $region32
      $region31: #{residual_block.7} parent=5 // pred_region
        // Predicated region
        $region33: #{residual_block.7} parent=31 // pred_check
          %p250 = pneg %p43
        $region34: #{residual_block.7} parent=31 // pred_check_branch
          %252 = sbr.rel (%p250) target = $region36
        $region35: #{residual_block.7} parent=31 // pred_region
          %s253 = sand.u32 %s33, 1
          %s254 = scalar_lea.sflag [#allocation3], %s253
          %s255 = sand.u32 %s33, 1
          %s256 = smul.addr %s255, 64
          %s257 = scalar_lea.vmem [#allocation2], %s256
          %s258 = smul.u32 16, %s23
          %s260 = ssub.s32 1024, 1024
          %261 = vsyncadd %s254, %s260
          %s262 = smul.addr %s258, 64
          %s263 = scalar_lea.hbm %s0, %s262
          %s264 = sshll.u32 %s257, 4
          %s265 = int_to_ptr.vmem [resolvable:$true] %s264
          %270 = dma.hbm_to_vmem [thread:$0]  %s263, 1024, %s265, %s254, 64, 64, 4
        $region36: #{residual_block.7} parent=31 // pred_fallthru
          _
        // Predicated region
        $region37: #{residual_block.7} parent=31 // pred_check
          %p271 = pneg %p111
        $region38: #{residual_block.7} parent=31 // pred_check_branch
          %273 = sbr.rel (%p271) target = $region40
        $region39: #{residual_block.7} parent=31 // pred_region
          %s274 = sand.u32 %s23, 1
          %s275 = scalar_lea.sflag [#allocation9], %s274
          %s276 = sand.u32 %s101, 1
          %s277 = smul.addr %s276, 64
          %s278 = scalar_lea.vmem [#allocation8], %s277
          %s279 = smul.u32 16, %s23
          %s281 = ssub.s32 1024, 1024
          %282 = vsyncadd %s275, %s281
          %s283 = smul.addr %s279, 64
          %s284 = scalar_lea.hbm %s3, %s283
          %s285 = sshll.u32 %s278, 4
          %s286 = int_to_ptr.vmem [resolvable:$true] %s285
          %291 = dma.hbm_to_vmem [thread:$0]  %s284, 1024, %s286, %s275, 64, 64, 4
        $region40: #{residual_block.7} parent=31 // pred_fallthru
          _
      $region32: #{residual_block.7} parent=5 // pred_fallthru
        _
      %p292 = scmp.le.s32.totalorder 1, %s23
      %p293 = scmp.lt.s32.totalorder %s23, 5
      %p294 = pnand %p292, %p293
      %p295 = pneg %p294
      // Predicated region
      $region41: #{residual_block.7} parent=5 // pred_check
        _
      $region42: #{residual_block.7} parent=5 // pred_check_branch
        %297 = sbr.rel (%p294) target = $region44
      $region43: #{residual_block.7} parent=5 // pred_region
        %s298 = ssub.s32 %s23, 1
        %s299 = sand.u32 %s36, 1
        %s300 = scalar_lea.sflag [#allocation3], %s299
        %s301 = sand.u32 %s36, 1
        %s302 = smul.addr %s301, 64
        %s303 = scalar_lea.vmem [#allocation2], %s302
        // Predicated region
        $region45: #{residual_block.7} parent=43 // pred_check
          %p304 = pneg %p49
        $region46: #{residual_block.7} parent=43 // pred_check_branch
          %306 = sbr.rel (%p304) target = $region48
        $region47: #{residual_block.7} parent=43 // pred_region
          %307 = dma.done %s300, 1024
        $region48: #{residual_block.7} parent=43 // pred_fallthru
          _
        // Predicated region
        $region49: #{residual_block.7} parent=43 // pred_check
          %p308 = pneg %p70
        $region50: #{residual_block.7} parent=43 // pred_check_branch
          %310 = sbr.rel (%p308) target = $region52
        $region51: #{residual_block.7} parent=43 // pred_region
          %311 = dma.done [#allocation6], 16
        $region52: #{residual_block.7} parent=43 // pred_fallthru
          _
        // Predicated region
        $region53: #{residual_block.7} parent=43 // pred_check
          %p312 = pneg %p91
        $region54: #{residual_block.7} parent=43 // pred_check_branch
          %314 = sbr.rel (%p312) target = $region56
        $region55: #{residual_block.7} parent=43 // pred_region
          %315 = dma.done [#allocation6], 16
        $region56: #{residual_block.7} parent=43 // pred_fallthru
          _
        %s316 = sand.u32 %s28, 1
        %s317 = scalar_lea.sflag [#allocation9], %s316
        %s318 = sand.u32 %s104, 1
        %s319 = smul.addr %s318, 64
        %s320 = scalar_lea.vmem [#allocation8], %s319
        // Predicated region
        $region57: #{residual_block.7} parent=43 // pred_check
          %p321 = pneg %p117
        $region58: #{residual_block.7} parent=43 // pred_check_branch
          %323 = sbr.rel (%p321) target = $region60
        $region59: #{residual_block.7} parent=43 // pred_region
          %324 = dma.done %s317, 1024
        $region60: #{residual_block.7} parent=43 // pred_fallthru
          _
        // Predicated region
        $region61: #{residual_block.7} parent=43 // pred_check
          %p325 = pneg %p138
        $region62: #{residual_block.7} parent=43 // pred_check_branch
          %327 = sbr.rel (%p325) target = $region64
        $region63: #{residual_block.7} parent=43 // pred_region
          %328 = dma.done [#allocation9], 1024
        $region64: #{residual_block.7} parent=43 // pred_fallthru
          _
        // Predicated region
        $region65: #{residual_block.7} parent=43 // pred_check
          %p329 = pneg %p159
        $region66: #{residual_block.7} parent=43 // pred_check_branch
          %331 = sbr.rel (%p329) target = $region68
        $region67: #{residual_block.7} parent=43 // pred_region
          %332 = dma.done [#allocation12], 16
        $region68: #{residual_block.7} parent=43 // pred_fallthru
          _
        %s333 = sand.u32 %s36, 1
        %s334 = scalar_lea.sflag [#allocation3], %s333
        %s335 = sand.u32 %s36, 1
        %s336 = smul.addr %s335, 64
        %s337 = scalar_lea.vmem [#allocation2], %s336
        %p338 = pneg %p49
        %p339 = pneg %p46
        %p340 = pneg %p70
        %p341 = pneg %p67
        %p342 = pneg %p91
        %p343 = pneg %p88
        %s344 = sand.u32 %s28, 1
        %s345 = scalar_lea.sflag [#allocation9], %s344
        %s346 = sand.u32 %s104, 1
        %s347 = smul.addr %s346, 64
        %s348 = scalar_lea.vmem [#allocation8], %s347
        %p349 = pneg %p117
        %p350 = pneg %p114
        %p351 = pneg %p138
        %p352 = pneg %p135
        %p353 = pneg %p159
        %p354 = pneg %p156
        %p355 = pneg %p185
        %p356 = pneg %p182
        %s357 = sand.u32 %s172, 1
        %s358 = scalar_lea.sflag [#allocation4], %s357
        %s359 = sand.u32 %s172, 1
        %s360 = smul.addr %s359, 128
        %s361 = scalar_lea.vmem [#allocation13], %s360
        %s362 = smul.u32 16, %s28
        %s363 = smul.u32 16, %s28
        %s364 = smul.u32 16, %s28
        %v366 = vld [vmem:[%s320] sm:$0xf]
        %v367 = vld [vmem:[%s320 + $0x4] sm:$0xf]
        %v368 = vld [vmem:[%s320 + $0x8] sm:$0xf]
        %v369 = vld [vmem:[%s320 + $0xc] sm:$0xf]
        %v370 = vld [vmem:[%s320 + $0x10] sm:$0xf]
        %v371 = vld [vmem:[%s320 + $0x14] sm:$0xf]
        %v372 = vld [vmem:[%s320 + $0x18] sm:$0xf]
        %v373 = vld [vmem:[%s320 + $0x1c] sm:$0xf]
        %v374 = vld [vmem:[%s320 + $0x20] sm:$0xf]
        %v375 = vld [vmem:[%s320 + $0x24] sm:$0xf]
        %v376 = vld [vmem:[%s320 + $0x28] sm:$0xf]
        %v377 = vld [vmem:[%s320 + $0x2c] sm:$0xf]
        %v378 = vld [vmem:[%s320 + $0x30] sm:$0xf]
        %v379 = vld [vmem:[%s320 + $0x34] sm:$0xf]
        %v380 = vld [vmem:[%s320 + $0x38] sm:$0xf]
        %v381 = vld [vmem:[%s320 + $0x3c] sm:$0xf]
        %v382 = vld [vmem:[#allocation10] sm:$0xf]
        %v383 = vld [vmem:[#allocation10 + $0x4] sm:$0xf]
        %v384 = vld [vmem:[#allocation10 + $0x8] sm:$0xf]
        %v385 = vld [vmem:[#allocation10 + $0xc] sm:$0xf]
        %v386 = vld [vmem:[#allocation10 + $0x10] sm:$0xf]
        %v387 = vld [vmem:[#allocation10 + $0x14] sm:$0xf]
        %v388 = vld [vmem:[#allocation10 + $0x18] sm:$0xf]
        %v389 = vld [vmem:[#allocation10 + $0x1c] sm:$0xf]
        %v390 = vld [vmem:[#allocation10 + $0x20] sm:$0xf]
        %v391 = vld [vmem:[#allocation10 + $0x24] sm:$0xf]
        %v392 = vld [vmem:[#allocation10 + $0x28] sm:$0xf]
        %v393 = vld [vmem:[#allocation10 + $0x2c] sm:$0xf]
        %v394 = vld [vmem:[#allocation10 + $0x30] sm:$0xf]
        %v395 = vld [vmem:[#allocation10 + $0x34] sm:$0xf]
        %v396 = vld [vmem:[#allocation10 + $0x38] sm:$0xf]
        %v397 = vld [vmem:[#allocation10 + $0x3c] sm:$0xf]
        %v398 = vld [vmem:[#allocation11] sm:$0x1]
        %v400 = vlaneseq
        %v401 = vshrl.u32 %v400, 7
        %v402 = vsub.s32 0, %v401
        %v403 = vrot.slane %v398, %v402
        %v421 = vunpack.c.l.b16 %v366
        %v422 = vunpack.c.l.b16 %v367
        %v423 = vunpack.c.l.b16 %v368
        %v424 = vunpack.c.l.b16 %v369
        %v425 = vunpack.c.l.b16 %v370
        %v426 = vunpack.c.l.b16 %v371
        %v427 = vunpack.c.l.b16 %v372
        %v428 = vunpack.c.l.b16 %v373
        %v429 = vunpack.c.l.b16 %v374
        %v430 = vunpack.c.l.b16 %v375
        %v431 = vunpack.c.l.b16 %v376
        %v432 = vunpack.c.l.b16 %v377
        %v433 = vunpack.c.l.b16 %v378
        %v434 = vunpack.c.l.b16 %v379
        %v435 = vunpack.c.l.b16 %v380
        %v436 = vunpack.c.l.b16 %v381
        %v437 = vpack.c.b16 %v422, %v421
        %v438 = vpack.c.b16 %v424, %v423
        %v439 = vpack.c.b16 %v426, %v425
        %v440 = vpack.c.b16 %v428, %v427
        %v441 = vpack.c.b16 %v430, %v429
        %v442 = vpack.c.b16 %v432, %v431
        %v443 = vpack.c.b16 %v434, %v433
        %v444 = vpack.c.b16 %v436, %v435
        %v469 = vunpack.c.l.b16 %v382
        %v470 = vunpack.c.l.b16 %v383
        %v471 = vunpack.c.l.b16 %v384
        %v472 = vunpack.c.l.b16 %v385
        %v473 = vunpack.c.l.b16 %v386
        %v474 = vunpack.c.l.b16 %v387
        %v475 = vunpack.c.l.b16 %v388
        %v476 = vunpack.c.l.b16 %v389
        %v477 = vunpack.c.l.b16 %v390
        %v478 = vunpack.c.l.b16 %v391
        %v479 = vunpack.c.l.b16 %v392
        %v480 = vunpack.c.l.b16 %v393
        %v481 = vunpack.c.l.b16 %v394
        %v482 = vunpack.c.l.b16 %v395
        %v483 = vunpack.c.l.b16 %v396
        %v484 = vunpack.c.l.b16 %v397
        %v485 = vpack.c.b16 %v470, %v469
        %v486 = vpack.c.b16 %v472, %v471
        %v487 = vpack.c.b16 %v474, %v473
        %v488 = vpack.c.b16 %v476, %v475
        %v489 = vpack.c.b16 %v478, %v477
        %v490 = vpack.c.b16 %v480, %v479
        %v491 = vpack.c.b16 %v482, %v481
        %v492 = vpack.c.b16 %v484, %v483
        %501 = vmatprep.subr.bf16.mxu0 0
        %502 = vmatpush1.bf16.msra.mxu0 %v485
        %503 = vmatprep.subr.bf16.mxu0 0
        %504 = vmatpush1.bf16.msra.mxu0 %v486
        %505 = vmatprep.subr.bf16.mxu0 0
        %506 = vmatpush1.bf16.msra.mxu0 %v487
        %507 = vmatprep.subr.bf16.mxu0 0
        %508 = vmatpush1.bf16.msra.mxu0 %v488
        %509 = vmatprep.subr.bf16.mxu0 0
        %510 = vmatpush1.bf16.msra.mxu0 %v489
        %511 = vmatprep.subr.bf16.mxu0 0
        %512 = vmatpush1.bf16.msra.mxu0 %v490
        %513 = vmatprep.subr.bf16.mxu0 0
        %514 = vmatpush1.bf16.msra.mxu0 %v491
        %515 = vmatprep.subr.bf16.mxu0 0
        %516 = vmatpush1.bf16.msra.mxu0 %v492
        %517 = vmatprep.subr.bf16.mxu0 0
        %518 = vmatpush1.bf16.msra.mxu0 0
        %519 = vmatprep.subr.bf16.mxu0 0
        %520 = vmatpush1.bf16.msra.mxu0 0
        %521 = vmatprep.subr.bf16.mxu0 0
        %522 = vmatpush1.bf16.msra.mxu0 0
        %523 = vmatprep.subr.bf16.mxu0 0
        %524 = vmatpush1.bf16.msra.mxu0 0
        %525 = vmatprep.subr.bf16.mxu0 0
        %526 = vmatpush1.bf16.msra.mxu0 0
        %527 = vmatprep.subr.bf16.mxu0 0
        %528 = vmatpush1.bf16.msra.mxu0 0
        %529 = vmatprep.subr.bf16.mxu0 0
        %530 = vmatpush1.bf16.msra.mxu0 0
        %531 = vmatprep.subr.bf16.mxu0 0
        %532 = vmatpush1.bf16.msra.mxu0 0
        %533 = vmatprep.mubr.bf16.mxu0 0
        %534 = vmatmul.mubr.bf16.gmra.mrb[0].mxu0 %v437
        %v535 = vpop.f32.mrb[0].mxu0
        %v536 = vadd.f32 %v403, %v535
        %v537 = vpop.f32.mrb[0].mxu0
        %v538 = vpop.f32.mrb[0].mxu0
        %v539 = vadd.f32 %v403, %v538
        %v540 = vpop.f32.mrb[0].mxu0
        %541 = vmatprep.mubr.bf16.mxu0 0
        %542 = vmatmul.mubr.bf16.gmra.mrb[0].mxu0 %v438
        %v543 = vpop.f32.mrb[0].mxu0
        %v544 = vadd.f32 %v403, %v543
        %v545 = vpop.f32.mrb[0].mxu0
        %v546 = vpop.f32.mrb[0].mxu0
        %v547 = vadd.f32 %v403, %v546
        %v548 = vpop.f32.mrb[0].mxu0
        %549 = vmatprep.mubr.bf16.mxu0 0
        %550 = vmatmul.mubr.bf16.gmra.mrb[0].mxu0 %v439
        %v551 = vpop.f32.mrb[0].mxu0
        %v552 = vadd.f32 %v403, %v551
        %v553 = vpop.f32.mrb[0].mxu0
        %v554 = vpop.f32.mrb[0].mxu0
        %v555 = vadd.f32 %v403, %v554
        %v556 = vpop.f32.mrb[0].mxu0
        %557 = vmatprep.mubr.bf16.mxu0 0
        %558 = vmatmul.mubr.bf16.gmra.mrb[0].mxu0 %v440
        %v559 = vpop.f32.mrb[0].mxu0
        %v560 = vadd.f32 %v403, %v559
        %v561 = vpop.f32.mrb[0].mxu0
        %v562 = vpop.f32.mrb[0].mxu0
        %v563 = vadd.f32 %v403, %v562
        %v564 = vpop.f32.mrb[0].mxu0
        %565 = vmatprep.mubr.bf16.mxu0 0
        %566 = vmatmul.mubr.bf16.gmra.mrb[0].mxu0 %v441
        %v567 = vpop.f32.mrb[0].mxu0
        %v568 = vadd.f32 %v403, %v567
        %v569 = vpop.f32.mrb[0].mxu0
        %v570 = vpop.f32.mrb[0].mxu0
        %v571 = vadd.f32 %v403, %v570
        %v572 = vpop.f32.mrb[0].mxu0
        %573 = vmatprep.mubr.bf16.mxu0 0
        %574 = vmatmul.mubr.bf16.gmra.mrb[0].mxu0 %v442
        %v575 = vpop.f32.mrb[0].mxu0
        %v576 = vadd.f32 %v403, %v575
        %v577 = vpop.f32.mrb[0].mxu0
        %v578 = vpop.f32.mrb[0].mxu0
        %v579 = vadd.f32 %v403, %v578
        %v580 = vpop.f32.mrb[0].mxu0
        %581 = vmatprep.mubr.bf16.mxu0 0
        %582 = vmatmul.mubr.bf16.gmra.mrb[0].mxu0 %v443
        %v583 = vpop.f32.mrb[0].mxu0
        %v584 = vadd.f32 %v403, %v583
        %v585 = vpop.f32.mrb[0].mxu0
        %v586 = vpop.f32.mrb[0].mxu0
        %v587 = vadd.f32 %v403, %v586
        %v588 = vpop.f32.mrb[0].mxu0
        %589 = vmatprep.mubr.bf16.mxu0 0
        %590 = vmatmul.mubr.bf16.gmra.mrb[0].mxu0 %v444
        %v591 = vpop.f32.mrb[0].mxu0
        %v592 = vadd.f32 %v403, %v591
        %v593 = vpop.f32.mrb[0].mxu0
        %v594 = vpop.f32.mrb[0].mxu0
        %v595 = vadd.f32 %v403, %v594
        %v596 = vpop.f32.mrb[0].mxu0
        %597 = vdwg.mxu0
        %v598 = vld [vmem:[%s303] sm:$0xf]
        %v599 = vld [vmem:[%s303 + $0x4] sm:$0xf]
        %v600 = vld [vmem:[%s303 + $0x8] sm:$0xf]
        %v601 = vld [vmem:[%s303 + $0xc] sm:$0xf]
        %v602 = vld [vmem:[%s303 + $0x10] sm:$0xf]
        %v603 = vld [vmem:[%s303 + $0x14] sm:$0xf]
        %v604 = vld [vmem:[%s303 + $0x18] sm:$0xf]
        %v605 = vld [vmem:[%s303 + $0x1c] sm:$0xf]
        %v606 = vld [vmem:[%s303 + $0x20] sm:$0xf]
        %v607 = vld [vmem:[%s303 + $0x24] sm:$0xf]
        %v608 = vld [vmem:[%s303 + $0x28] sm:$0xf]
        %v609 = vld [vmem:[%s303 + $0x2c] sm:$0xf]
        %v610 = vld [vmem:[%s303 + $0x30] sm:$0xf]
        %v611 = vld [vmem:[%s303 + $0x34] sm:$0xf]
        %v612 = vld [vmem:[%s303 + $0x38] sm:$0xf]
        %v613 = vld [vmem:[%s303 + $0x3c] sm:$0xf]
        %v614 = vunpack.c.l.bf16 %v598
        %v615 = vunpack.c.l.bf16 %v599
        %v616 = vunpack.c.l.bf16 %v600
        %v617 = vunpack.c.l.bf16 %v601
        %v618 = vunpack.c.l.bf16 %v602
        %v619 = vunpack.c.l.bf16 %v603
        %v620 = vunpack.c.l.bf16 %v604
        %v621 = vunpack.c.l.bf16 %v605
        %v622 = vunpack.c.l.bf16 %v606
        %v623 = vunpack.c.l.bf16 %v607
        %v624 = vunpack.c.l.bf16 %v608
        %v625 = vunpack.c.l.bf16 %v609
        %v626 = vunpack.c.l.bf16 %v610
        %v627 = vunpack.c.l.bf16 %v611
        %v628 = vunpack.c.l.bf16 %v612
        %v629 = vunpack.c.l.bf16 %v613
        %v630 = vld [vmem:[#allocation5] sm:$0x1]
        %v632 = vlaneseq
        %v633 = vshrl.u32 %v632, 7
        %v634 = vsub.s32 0, %v633
        %v635 = vrot.slane %v630, %v634
        %v637 = vmul.f32 %v614, %v635
        %v638 = vmul.f32 %v615, %v635
        %v639 = vmul.f32 %v616, %v635
        %v640 = vmul.f32 %v617, %v635
        %v641 = vmul.f32 %v618, %v635
        %v642 = vmul.f32 %v619, %v635
        %v643 = vmul.f32 %v620, %v635
        %v644 = vmul.f32 %v621, %v635
        %v645 = vmul.f32 %v622, %v635
        %v646 = vmul.f32 %v623, %v635
        %v647 = vmul.f32 %v624, %v635
        %v648 = vmul.f32 %v625, %v635
        %v649 = vmul.f32 %v626, %v635
        %v650 = vmul.f32 %v627, %v635
        %v651 = vmul.f32 %v628, %v635
        %v652 = vmul.f32 %v629, %v635
        %v653 = vld [vmem:[#allocation7] sm:$0x1]
        %v655 = vlaneseq
        %v656 = vshrl.u32 %v655, 7
        %v657 = vsub.s32 0, %v656
        %v658 = vrot.slane %v653, %v657
        %v660 = vadd.f32 %v637, %v658
        %v661 = vadd.f32 %v638, %v658
        %v662 = vadd.f32 %v639, %v658
        %v663 = vadd.f32 %v640, %v658
        %v664 = vadd.f32 %v641, %v658
        %v665 = vadd.f32 %v642, %v658
        %v666 = vadd.f32 %v643, %v658
        %v667 = vadd.f32 %v644, %v658
        %v668 = vadd.f32 %v645, %v658
        %v669 = vadd.f32 %v646, %v658
        %v670 = vadd.f32 %v647, %v658
        %v671 = vadd.f32 %v648, %v658
        %v672 = vadd.f32 %v649, %v658
        %v673 = vadd.f32 %v650, %v658
        %v674 = vadd.f32 %v651, %v658
        %v675 = vadd.f32 %v652, %v658
        %v676 = vadd.f32 %v660, %v536
        %v677 = vadd.f32 %v661, %v539
        %v678 = vadd.f32 %v662, %v544
        %v679 = vadd.f32 %v663, %v547
        %v680 = vadd.f32 %v664, %v552
        %v681 = vadd.f32 %v665, %v555
        %v682 = vadd.f32 %v666, %v560
        %v683 = vadd.f32 %v667, %v563
        %v684 = vadd.f32 %v668, %v568
        %v685 = vadd.f32 %v669, %v571
        %v686 = vadd.f32 %v670, %v576
        %v687 = vadd.f32 %v671, %v579
        %v688 = vadd.f32 %v672, %v584
        %v689 = vadd.f32 %v673, %v587
        %v690 = vadd.f32 %v674, %v592
        %v691 = vadd.f32 %v675, %v595
        %v692 = vmax.f32 %v676, 0.0
        %v693 = vmax.f32 %v677, 0.0
        %v694 = vmax.f32 %v678, 0.0
        %v695 = vmax.f32 %v679, 0.0
        %v696 = vmax.f32 %v680, 0.0
        %v697 = vmax.f32 %v681, 0.0
        %v698 = vmax.f32 %v682, 0.0
        %v699 = vmax.f32 %v683, 0.0
        %v700 = vmax.f32 %v684, 0.0
        %v701 = vmax.f32 %v685, 0.0
        %v702 = vmax.f32 %v686, 0.0
        %v703 = vmax.f32 %v687, 0.0
        %v704 = vmax.f32 %v688, 0.0
        %v705 = vmax.f32 %v689, 0.0
        %v706 = vmax.f32 %v690, 0.0
        %v707 = vmax.f32 %v691, 0.0
        %708 = vst [vmem:[%s361] sm:$0xff] %v692
        %709 = vst [vmem:[%s361 + $0x8] sm:$0xff] %v693
        %710 = vst [vmem:[%s361 + $0x10] sm:$0xff] %v694
        %711 = vst [vmem:[%s361 + $0x18] sm:$0xff] %v695
        %712 = vst [vmem:[%s361 + $0x20] sm:$0xff] %v696
        %713 = vst [vmem:[%s361 + $0x28] sm:$0xff] %v697
        %714 = vst [vmem:[%s361 + $0x30] sm:$0xff] %v698
        %715 = vst [vmem:[%s361 + $0x38] sm:$0xff] %v699
        %716 = vst [vmem:[%s361 + $0x40] sm:$0xff] %v700
        %717 = vst [vmem:[%s361 + $0x48] sm:$0xff] %v701
        %718 = vst [vmem:[%s361 + $0x50] sm:$0xff] %v702
        %719 = vst [vmem:[%s361 + $0x58] sm:$0xff] %v703
        %720 = vst [vmem:[%s361 + $0x60] sm:$0xff] %v704
        %721 = vst [vmem:[%s361 + $0x68] sm:$0xff] %v705
        %722 = vst [vmem:[%s361 + $0x70] sm:$0xff] %v706
        %723 = vst [vmem:[%s361 + $0x78] sm:$0xff] %v707
        %s724 = sand.u32 %s172, 1
        %s725 = scalar_lea.sflag [#allocation4], %s724
        %s726 = sand.u32 %s172, 1
        %s727 = smul.addr %s726, 128
        %s728 = scalar_lea.vmem [#allocation13], %s727
        // Predicated region
        $region69: #{residual_block.7} parent=43 // pred_check
          %p729 = pneg %p182
        $region70: #{residual_block.7} parent=43 // pred_check_branch
          %731 = sbr.rel (%p729) target = $region72
        $region71: #{residual_block.7} parent=43 // pred_region
          %s732 = smul.u32 16, %s28
          %s734 = ssub.s32 2048, 2048
          %735 = vsyncadd %s725, %s734
          %s736 = smul.addr %s732, 128
          %s737 = scalar_lea.hbm %s6, %s736
          %s738 = sshll.u32 %s728, 4
          %s739 = int_to_ptr.vmem [resolvable:$true] %s738
          %744 = dma.vmem_to_hbm [thread:$0]  %s739, 2048, %s737, %s725, 128, 128, 8
        $region72: #{residual_block.7} parent=43 // pred_fallthru
          _
      $region44: #{residual_block.7} parent=5 // pred_fallthru
        _
      %p745 = scmp.le.s32.totalorder 2, %s23
      // Predicated region
      $region73: #{residual_block.7} parent=5 // pred_check
        %p746 = pneg %p745
      $region74: #{residual_block.7} parent=5 // pred_check_branch
        %748 = sbr.rel (%p746) target = $region76
      $region75: #{residual_block.7} parent=5 // pred_region
        %s749 = ssub.s32 %s23, 2
        // Predicated region
        $region77: #{residual_block.7} parent=75 // pred_check
          %p750 = pneg %p188
        $region78: #{residual_block.7} parent=75 // pred_check_branch
          %752 = sbr.rel (%p750) target = $region80
        $region79: #{residual_block.7} parent=75 // pred_region
          %s753 = sand.u32 %s173, 1
          %s754 = scalar_lea.sflag [#allocation4], %s753
          %s755 = sand.u32 %s173, 1
          %s756 = smul.addr %s755, 128
          %s757 = scalar_lea.vmem [#allocation13], %s756
          %758 = dma.done %s754, 2048
        $region80: #{residual_block.7} parent=75 // pred_fallthru
          _
      $region76: #{residual_block.7} parent=5 // pred_fallthru
        _
    $region6: #{residual_block.7} parent=1 // loop_footer
      %s27 = sadd.s32 1, %s23
    $region7: #{residual_block.7} parent=1 // loop_footer_branch
      %22 = sbr.rel target = $region3
    $region8: #{residual_block.7} parent=1 // loop_exit
      _
    %759 = vsyncpa [#allocation3], 1
    %s760 = scalar_lea.sflag [#allocation3], 1
    %761 = vsyncpa %s760, 1
    %762 = vsyncpa [#allocation6], 1
    %763 = vsyncpa [#allocation9], 1
    %s764 = scalar_lea.sflag [#allocation9], 1
    %765 = vsyncpa %s764, 1
    %766 = vsyncpa [#allocation12], 1
    %767 = vsyncpa [#allocation4], 1
    %s768 = scalar_lea.sflag [#allocation4], 1
    %769 = vsyncpa %s768, 1

// kernel: residual_block.4
$region0: #{residual_block.4}
  #allocation0 [shape = 'u32[]', space=smem, size = 0x4, offset = 0x4, fixed_abs, tag = 'smem constant byte address 0x4 - core index']
  #allocation1 [shape = 'u32[144,128]{1,0:T(1,128)}', space=vmem, size = 0x12000, scoped, tag = 'internal scratch']
  #allocation2 [shape = 'f32[128,128]{1,0:T(8,128)}', space=vmem, size = 0x10000, scoped, tag = 'scratch operand']
  %s0 = inlined_call_operand.hbm [shape: bf16[2,18,18,128], index: 0, kind: input, shape index: {}]
  %s1 = inlined_call_operand.hbm [shape: bf16[9,128,128], index: 1, kind: input, shape index: {}]
  %s2 = inlined_call_operand.hbm [shape: bf16[512,128], index: 2, kind: output, shape index: {0}]
  %s3 = inlined_call_operand.hbm [shape: f32[4,16,128], index: 3, kind: output, shape index: {1}]
  %4 = xla_tuple %s2, %s3
  %s5 = sld [smem:[#allocation0]]
  $region57: #{residual_block.4} parent=0
    _
  %s7 = ssub.s32 1, %s5
  %s8 = scalar_select 0, %s7, %s5
  $region1: #{residual_block.4} parent=0
    #allocation3 [shape = 'u8[221184]{0}', space=vmem, size = 0x36000, scoped, tag = 'input window, operand 0']
    #allocation4 [shape = 's32[2]{0}', space=sflag, size = 0x8, scoped, tag = 'scoped memory for residual_block.4']
    #allocation5 [shape = 's32[2]{0}', space=sflag, size = 0x8, scoped, tag = 'scoped memory for residual_block.4']
    #allocation6 [shape = 'u8[294912]{0}', space=vmem, size = 0x48000, scoped, tag = 'input window, operand 1, single buffered']
    #allocation7 [shape = 's32[1]{0}', space=sflag, size = 0x4, scoped, tag = 'scoped memory for residual_block.4']
    #allocation8 [shape = 'u8[65536]{0}', space=vmem, size = 0x10000, scoped, tag = 'output window, operand 0']
    #allocation9 [shape = 'u8[16384]{0}', space=vmem, size = 0x4000, scoped, tag = 'output window, operand 1']
    #allocation10 [shape = 's32[2]{0}', space=sflag, size = 0x8, scoped, tag = 'scoped memory for residual_block.4']
    %9 = vsyncpa [#allocation4], 0
    %s10 = scalar_lea.sflag [#allocation4], 1
    %11 = vsyncpa %s10, 0
    %12 = vsyncpa [#allocation7], 0
    %13 = vsyncpa [#allocation5], 0
    %s14 = scalar_lea.sflag [#allocation5], 1
    %15 = vsyncpa %s14, 0
    %16 = vsyncpa [#allocation10], 0
    %s17 = scalar_lea.sflag [#allocation10], 1
    %18 = vsyncpa %s17, 0
    loop: start=0, step=1, limit=6
    $region2: #{residual_block.4} parent=1 // loop_pre_header
      _
    $region3: #{residual_block.4} parent=1 // loop_header
      %s20 = sphi 0, %s24
      %p21 = scmp.ge.s32.totalorder %s20, 6
      %s27 = sphi 0, %s39
      %s28 = sphi 0, %s35
      %s29 = sphi 0, %s27
      %s30 = sphi 0, %s28
      %s31 = sphi 0, %s29
      %s32 = sphi 0, %s30
      %s42 = sphi 0, %s44
      %s45 = sphi 0, %s42
      %s46 = sphi 0, %s45
      %s62 = sphi 0, %s46
      %s66 = sphi 0, %s66
      %s68 = sphi 0, %s66
      %s69 = sphi 0, %s68
      %s83 = sphi 0, %s69
      %s93 = sphi 0, %s95
      %s96 = sphi 0, %s93
      %s97 = sphi 0, %s96
      %s113 = sphi 0, %s97
      %s123 = sphi 0, %s125
      %s126 = sphi 0, %s123
      %s127 = sphi 0, %s126
      %s143 = sphi 0, %s127
    $region4: #{residual_block.4} parent=1 // loop_header_branch
      %23 = sbr.rel (%p21) target = $region8
    $region5: #{residual_block.4} parent=1 // loop_body
      %s25 = ssub.s32 %s20, 1
      %s26 = ssub.s32 %s20, 2
      %s33 = sadd.s32 1, %s28
      %p34 = scmp.ge.s32.totalorder %s33, 2
      %s35 = scalar_select %p34, 0, %s33
      %s36 = sadd.s32 1, %s27
      %s37 = scalar_select %p34, %s36, %s27
      %p38 = scmp.ge.s32.totalorder %s37, 2
      %s39 = scalar_select %p38, 0, %s37
      %s40 = ssub.s32 %s27, %s39
      %p41 = scmp.eq.s32.totalorder %s40, 0
      %s43 = sadd.s32 %s42, 1
      %s44 = scalar_select %p41, %s42, %s43
      %p47 = pneg %p41
      %p48 = scmp.eq.s32.totalorder %s20, 3
      %p49 = por %p47, %p48
      %p50 = scmp.ne.s32.totalorder %s42, %s45
      %p51 = scmp.eq.s32.totalorder %s20, 0
      %p52 = por %p50, %p51
      %p53 = scmp.ne.s32.totalorder %s42, %s45
      %p54 = scmp.eq.s32.totalorder %s25, 3
      %p55 = por %p53, %p54
      %p56 = scmp.ne.s32.totalorder %s45, %s46
      %p57 = scmp.eq.s32.totalorder %s25, 0
      %p58 = por %p56, %p57
      %p59 = scmp.ne.s32.totalorder %s45, %s46
      %p60 = scmp.eq.s32.totalorder %s26, 3
      %p61 = por %p59, %p60
      %p63 = scmp.ne.s32.totalorder %s46, %s62
      %p64 = scmp.eq.s32.totalorder %s26, 0
      %p65 = por %p63, %p64
      %s67 = sadd.s32 %s66, 1
      %p70 = scmp.eq.s32.totalorder %s20, 3
      %p71 = scmp.ne.s32.totalorder %s66, %s68
      %p72 = scmp.eq.s32.totalorder %s20, 0
      %p73 = por %p71, %p72
      %p74 = scmp.ne.s32.totalorder %s66, %s68
      %p75 = scmp.eq.s32.totalorder %s25, 3
      %p76 = por %p74, %p75
      %p77 = scmp.ne.s32.totalorder %s68, %s69
      %p78 = scmp.eq.s32.totalorder %s25, 0
      %p79 = por %p77, %p78
      %p80 = scmp.ne.s32.totalorder %s68, %s69
      %p81 = scmp.eq.s32.totalorder %s26, 3
      %p82 = por %p80, %p81
      %p84 = scmp.ne.s32.totalorder %s69, %s83
      %p85 = scmp.eq.s32.totalorder %s26, 0
      %p86 = por %p84, %p85
      %s87 = smul.u32 %s27, 2
      %s88 = sadd.s32 %s87, %s28
      %s89 = smul.u32 %s39, 2
      %s90 = sadd.s32 %s89, %s35
      %s91 = ssub.s32 %s88, %s90
      %p92 = scmp.eq.s32.totalorder %s91, 0
      %s94 = sadd.s32 %s93, 1
      %s95 = scalar_select %p92, %s93, %s94
      %p98 = pneg %p92
      %p99 = scmp.eq.s32.totalorder %s20, 3
      %p100 = por %p98, %p99
      %p101 = scmp.ne.s32.totalorder %s93, %s96
      %p102 = scmp.eq.s32.totalorder %s20, 0
      %p103 = por %p101, %p102
      %p104 = scmp.ne.s32.totalorder %s93, %s96
      %p105 = scmp.eq.s32.totalorder %s25, 3
      %p106 = por %p104, %p105
      %p107 = scmp.ne.s32.totalorder %s96, %s97
      %p108 = scmp.eq.s32.totalorder %s25, 0
      %p109 = por %p107, %p108
      %p110 = scmp.ne.s32.totalorder %s96, %s97
      %p111 = scmp.eq.s32.totalorder %s26, 3
      %p112 = por %p110, %p111
      %p114 = scmp.ne.s32.totalorder %s97, %s113
      %p115 = scmp.eq.s32.totalorder %s26, 0
      %p116 = por %p114, %p115
      %s117 = smul.u32 %s27, 2
      %s118 = sadd.s32 %s117, %s28
      %s119 = smul.u32 %s39, 2
      %s120 = sadd.s32 %s119, %s35
      %s121 = ssub.s32 %s118, %s120
      %p122 = scmp.eq.s32.totalorder %s121, 0
      %s124 = sadd.s32 %s123, 1
      %s125 = scalar_select %p122, %s123, %s124
      %p128 = pneg %p122
      %p129 = scmp.eq.s32.totalorder %s20, 3
      %p130 = por %p128, %p129
      %p131 = scmp.ne.s32.totalorder %s123, %s126
      %p132 = scmp.eq.s32.totalorder %s20, 0
      %p133 = por %p131, %p132
      %p134 = scmp.ne.s32.totalorder %s123, %s126
      %p135 = scmp.eq.s32.totalorder %s25, 3
      %p136 = por %p134, %p135
      %p137 = scmp.ne.s32.totalorder %s126, %s127
      %p138 = scmp.eq.s32.totalorder %s25, 0
      %p139 = por %p137, %p138
      %p140 = scmp.ne.s32.totalorder %s126, %s127
      %p141 = scmp.eq.s32.totalorder %s26, 3
      %p142 = por %p140, %p141
      %p144 = scmp.ne.s32.totalorder %s127, %s143
      %p145 = scmp.eq.s32.totalorder %s26, 0
      %p146 = por %p144, %p145
      %p147 = scmp.le.s32.totalorder 1, %s20
      %p148 = scmp.lt.s32.totalorder %s20, 5
      %p149 = pnand %p147, %p148
      %p150 = pneg %p149
      // Predicated region
      $region9: #{residual_block.4} parent=5 // pred_check
        _
      $region10: #{residual_block.4} parent=5 // pred_check_branch
        %152 = sbr.rel (%p149) target = $region12
      $region11: #{residual_block.4} parent=5 // pred_region
        %s153 = ssub.s32 %s20, 1
        // Predicated region
        $region13: #{residual_block.4} parent=11 // pred_check
          %p154 = pneg %p79
        $region14: #{residual_block.4} parent=11 // pred_check_branch
          %156 = sbr.rel (%p154) target = $region16
        $region15: #{residual_block.4} parent=11 // pred_region
          %s158 = ssub.s32 9216, 9216
          %159 = vsyncadd [#allocation7], %s158
          %s160 = sshll.u32 [#allocation6], 4
          %s161 = int_to_ptr.vmem [resolvable:$true] %s160
          %166 = dma.hbm_to_vmem [thread:$0]  %s1, 9216, %s161, [#allocation7], 64, 64, 4
        $region16: #{residual_block.4} parent=11 // pred_fallthru
          _
      $region12: #{residual_block.4} parent=5 // pred_fallthru
        _
      %p167 = scmp.lt.s32.totalorder %s20, 4
      // Predicated region
      $region17: #{residual_block.4} parent=5 // pred_check
        %p168 = pneg %p167
      $region18: #{residual_block.4} parent=5 // pred_check_branch
        %170 = sbr.rel (%p168) target = $region20
      $region19: #{residual_block.4} parent=5 // pred_region
        // Predicated region
        $region21: #{residual_block.4} parent=19 // pred_check
          %p171 = pneg %p52
        $region22: #{residual_block.4} parent=19 // pred_check_branch
          %173 = sbr.rel (%p171) target = $region24
        $region23: #{residual_block.4} parent=19 // pred_region
          %s174 = sand.u32 %s42, 1
          %s175 = scalar_lea.sflag [#allocation4], %s174
          %s176 = sand.u32 %s42, 1
          %s177 = smul.addr %s176, 216
          %s178 = scalar_lea.vmem [#allocation3], %s177
          %s180 = ssub.s32 3456, 3456
          %181 = vsyncadd %s175, %s180
          %s182 = smul.addr %s27, 54
          %s183 = smul.addr %s182, 64
          %s184 = scalar_lea.hbm %s0, %s183
          %s185 = sshll.u32 %s178, 4
          %s186 = int_to_ptr.vmem [resolvable:$true] %s185
          %191 = dma.hbm_to_vmem [thread:$0]  %s184, 3456, %s186, %s175, 64, 64, 4
        $region24: #{residual_block.4} parent=19 // pred_fallthru
          _
      $region20: #{residual_block.4} parent=5 // pred_fallthru
        _
      %p192 = scmp.le.s32.totalorder 1, %s20
      %p193 = scmp.lt.s32.totalorder %s20, 5
      %p194 = pnand %p192, %p193
      %p195 = pneg %p194
      // Predicated region
      $region25: #{residual_block.4} parent=5 // pred_check
        _
      $region26: #{residual_block.4} parent=5 // pred_check_branch
        %197 = sbr.rel (%p194) target = $region28
      $region27: #{residual_block.4} parent=5 // pred_region
        %s198 = ssub.s32 %s20, 1
        %s199 = sand.u32 %s45, 1
        %s200 = scalar_lea.sflag [#allocation4], %s199
        %s201 = sand.u32 %s45, 1
        %s202 = smul.addr %s201, 216
        %s203 = scalar_lea.vmem [#allocation3], %s202
        // Predicated region
        $region29: #{residual_block.4} parent=27 // pred_check
          %p204 = pneg %p58
        $region30: #{residual_block.4} parent=27 // pred_check_branch
          %206 = sbr.rel (%p204) target = $region32
        $region31: #{residual_block.4} parent=27 // pred_region
          %207 = dma.done %s200, 3456
        $region32: #{residual_block.4} parent=27 // pred_fallthru
          _
        // Predicated region
        $region33: #{residual_block.4} parent=27 // pred_check
          %p208 = pneg %p79
        $region34: #{residual_block.4} parent=27 // pred_check_branch
          %210 = sbr.rel (%p208) target = $region36
        $region35: #{residual_block.4} parent=27 // pred_region
          %211 = dma.done [#allocation7], 9216
        $region36: #{residual_block.4} parent=27 // pred_fallthru
          _
        %s212 = sand.u32 %s45, 1
        %s213 = scalar_lea.sflag [#allocation4], %s212
        %s214 = sand.u32 %s45, 1
        %s215 = smul.addr %s214, 216
        %s216 = scalar_lea.vmem [#allocation3], %s215
        %p217 = pneg %p58
        %p218 = pneg %p55
        %p219 = pneg %p79
        %p220 = pneg %p76
        %p221 = pneg %p109
        %p222 = pneg %p106
        %s223 = sand.u32 %s96, 1
        %s224 = scalar_lea.sflag [#allocation5], %s223
        %s225 = sand.u32 %s96, 1
        %s226 = smul.addr %s225, 64
        %s227 = scalar_lea.vmem [#allocation8], %s226
        %p228 = pneg %p139
        %p229 = pneg %p136
        %s230 = sand.u32 %s126, 1
        %s231 = scalar_lea.sflag [#allocation10], %s230
        %s232 = sand.u32 %s126, 1
        %s233 = smul.addr %s232, 16
        %s234 = scalar_lea.vmem [#allocation9], %s233
        %s235 = smul.u32 %s29, 2
        %s236 = sadd.s32 %s235, %s30
        %s237 = smul.u32 16, %s236
        %s238 = smul.u32 %s29, 2
        %s239 = sadd.s32 %s238, %s30
        %s241 = smul.u32 %s30, 8
        %242 = vst [vmem:[#allocation2] sm:$0xff] 0.0
        %243 = vst [vmem:[#allocation2 + $0x8] sm:$0xff] 0.0
        %244 = vst [vmem:[#allocation2 + $0x10] sm:$0xff] 0.0
        %245 = vst [vmem:[#allocation2 + $0x18] sm:$0xff] 0.0
        %246 = vst [vmem:[#allocation2 + $0x20] sm:$0xff] 0.0
        %247 = vst [vmem:[#allocation2 + $0x28] sm:$0xff] 0.0
        %248 = vst [vmem:[#allocation2 + $0x30] sm:$0xff] 0.0
        %249 = vst [vmem:[#allocation2 + $0x38] sm:$0xff] 0.0
        %250 = vst [vmem:[#allocation2 + $0x40] sm:$0xff] 0.0
        %251 = vst [vmem:[#allocation2 + $0x48] sm:$0xff] 0.0
        %252 = vst [vmem:[#allocation2 + $0x50] sm:$0xff] 0.0
        %253 = vst [vmem:[#allocation2 + $0x58] sm:$0xff] 0.0
        %254 = vst [vmem:[#allocation2 + $0x60] sm:$0xff] 0.0
        %255 = vst [vmem:[#allocation2 + $0x68] sm:$0xff] 0.0
        %256 = vst [vmem:[#allocation2 + $0x70] sm:$0xff] 0.0
        %257 = vst [vmem:[#allocation2 + $0x78] sm:$0xff] 0.0
        %s258 = smul.u32 %s241, 3
        %s259 = smul.addr %s258, 4
        %s260 = scalar_lea.vmem %s203, %s259 [#allocation3]
        %v261 = vld [vmem:[%s260] sm:$0xf]
        %v262 = vld [vmem:[%s260 + $0x4] sm:$0xf]
        %v263 = vld [vmem:[%s260 + $0x8] sm:$0x1]
        %v264 = vld [vmem:[%s260 + $0xc] sm:$0xf]
        %v265 = vld [vmem:[%s260 + $0x10] sm:$0xf]
        %v266 = vld [vmem:[%s260 + $0x14] sm:$0x1]
        %v267 = vld [vmem:[%s260 + $0x18] sm:$0xf]
        %v268 = vld [vmem:[%s260 + $0x1c] sm:$0xf]
        %v269 = vld [vmem:[%s260 + $0x20] sm:$0x1]
        %v270 = vld [vmem:[%s260 + $0x24] sm:$0xf]
        %v271 = vld [vmem:[%s260 + $0x28] sm:$0xf]
        %v272 = vld [vmem:[%s260 + $0x2c] sm:$0x1]
        %v273 = vld [vmem:[%s260 + $0x30] sm:$0xf]
        %v274 = vld [vmem:[%s260 + $0x34] sm:$0xf]
        %v275 = vld [vmem:[%s260 + $0x38] sm:$0x1]
        %v276 = vld [vmem:[%s260 + $0x3c] sm:$0xf]
        %v277 = vld [vmem:[%s260 + $0x40] sm:$0xf]
        %v278 = vld [vmem:[%s260 + $0x44] sm:$0x1]
        %v279 = vld [vmem:[%s260 + $0x48] sm:$0xf]
        %v280 = vld [vmem:[%s260 + $0x4c] sm:$0xf]
        %v281 = vld [vmem:[%s260 + $0x50] sm:$0x1]
        %v282 = vld [vmem:[%s260 + $0x54] sm:$0xf]
        %v283 = vld [vmem:[%s260 + $0x58] sm:$0xf]
        %v284 = vld [vmem:[%s260 + $0x5c] sm:$0x1]
        %v285 = vld [vmem:[#allocation2] sm:$0xff]
        %v286 = vld [vmem:[#allocation2 + $0x8] sm:$0xff]
        %v287 = vld [vmem:[#allocation2 + $0x10] sm:$0xff]
        %v288 = vld [vmem:[#allocation2 + $0x18] sm:$0xff]
        %v289 = vld [vmem:[#allocation2 + $0x20] sm:$0xff]
        %v290 = vld [vmem:[#allocation2 + $0x28] sm:$0xff]
        %v291 = vld [vmem:[#allocation2 + $0x30] sm:$0xff]
        %v292 = vld [vmem:[#allocation2 + $0x38] sm:$0xff]
        %v293 = vld [vmem:[#allocation2 + $0x40] sm:$0xff]
        %v294 = vld [vmem:[#allocation2 + $0x48] sm:$0xff]
        %v295 = vld [vmem:[#allocation2 + $0x50] sm:$0xff]
        %v296 = vld [vmem:[#allocation2 + $0x58] sm:$0xff]
        %v297 = vld [vmem:[#allocation2 + $0x60] sm:$0xff]
        %v298 = vld [vmem:[#allocation2 + $0x68] sm:$0xff]
        %v299 = vld [vmem:[#allocation2 + $0x70] sm:$0xff]
        %v300 = vld [vmem:[#allocation2 + $0x78] sm:$0xff]
        %v301 = vld [vmem:[#allocation6] sm:$0xf]
        %v302 = vld [vmem:[#allocation6 + $0x4] sm:$0xf]
        %v303 = vld [vmem:[#allocation6 + $0x8] sm:$0xf]
        %v304 = vld [vmem:[#allocation6 + $0xc] sm:$0xf]
        %v305 = vld [vmem:[#allocation6 + $0x10] sm:$0xf]
        %v306 = vld [vmem:[#allocation6 + $0x14] sm:$0xf]
        %v307 = vld [vmem:[#allocation6 + $0x18] sm:$0xf]
        %v308 = vld [vmem:[#allocation6 + $0x1c] sm:$0xf]
        %v309 = vld [vmem:[#allocation6 + $0x20] sm:$0xf]
        %v310 = vld [vmem:[#allocation6 + $0x24] sm:$0xf]
        %v311 = vld [vmem:[#allocation6 + $0x28] sm:$0xf]
        %v312 = vld [vmem:[#allocation6 + $0x2c] sm:$0xf]
        %v313 = vld [vmem:[#allocation6 + $0x30] sm:$0xf]
        %v314 = vld [vmem:[#allocation6 + $0x34] sm:$0xf]
        %v315 = vld [vmem:[#allocation6 + $0x38] sm:$0xf]
        %v316 = vld [vmem:[#allocation6 + $0x3c] sm:$0xf]
        %v333 = vunpack.c.l.b16 %v261
        %v334 = vunpack.c.l.b16 %v262
        %v335 = vunpack.c.l.b16 %v264
        %v336 = vunpack.c.l.b16 %v265
        %v337 = vunpack.c.l.b16 %v267
        %v338 = vunpack.c.l.b16 %v268
        %v339 = vunpack.c.l.b16 %v270
        %v340 = vunpack.c.l.b16 %v271
        %v341 = vunpack.c.l.b16 %v273
        %v342 = vunpack.c.l.b16 %v274
        %v343 = vunpack.c.l.b16 %v276
        %v344 = vunpack.c.l.b16 %v277
        %v345 = vunpack.c.l.b16 %v279
        %v346 = vunpack.c.l.b16 %v280
        %v347 = vunpack.c.l.b16 %v282
        %v348 = vunpack.c.l.b16 %v283
        %v349 = vpack.c.b16 %v334, %v333
        %v350 = vpack.c.b16 %v336, %v335
        %v351 = vpack.c.b16 %v338, %v337
        %v352 = vpack.c.b16 %v340, %v339
        %v353 = vpack.c.b16 %v342, %v341
        %v354 = vpack.c.b16 %v344, %v343
        %v355 = vpack.c.b16 %v346, %v345
        %v356 = vpack.c.b16 %v348, %v347
        %v381 = vunpack.c.l.b16 %v301
        %v382 = vunpack.c.l.b16 %v302
        %v383 = vunpack.c.l.b16 %v303
        %v384 = vunpack.c.l.b16 %v304
        %v385 = vunpack.c.l.b16 %v305
        %v386 = vunpack.c.l.b16 %v306
        %v387 = vunpack.c.l.b16 %v307
        %v388 = vunpack.c.l.b16 %v308
        %v389 = vunpack.c.l.b16 %v309
        %v390 = vunpack.c.l.b16 %v310
        %v391 = vunpack.c.l.b16 %v311
        %v392 = vunpack.c.l.b16 %v312
        %v393 = vunpack.c.l.b16 %v313
        %v394 = vunpack.c.l.b16 %v314
        %v395 = vunpack.c.l.b16 %v315
        %v396 = vunpack.c.l.b16 %v316
        %v397 = vpack.c.b16 %v382, %v381
        %v398 = vpack.c.b16 %v384, %v383
        %v399 = vpack.c.b16 %v386, %v385
        %v400 = vpack.c.b16 %v388, %v387
        %v401 = vpack.c.b16 %v390, %v389
        %v402 = vpack.c.b16 %v392, %v391
        %v403 = vpack.c.b16 %v394, %v393
        %v404 = vpack.c.b16 %v396, %v395
        %413 = vmatprep.subr.bf16.mxu0 0
        %414 = vmatpush1.bf16.msra.mxu0 %v397
        %415 = vmatprep.subr.bf16.mxu0 0
        %416 = vmatpush1.bf16.msra.mxu0 %v398
        %417 = vmatprep.subr.bf16.mxu0 0
        %418 = vmatpush1.bf16.msra.mxu0 %v399
        %419 = vmatprep.subr.bf16.mxu0 0
        %420 = vmatpush1.bf16.msra.mxu0 %v400
        %421 = vmatprep.subr.bf16.mxu0 0
        %422 = vmatpush1.bf16.msra.mxu0 %v401
        %423 = vmatprep.subr.bf16.mxu0 0
        %424 = vmatpush1.bf16.msra.mxu0 %v402
        %425 = vmatprep.subr.bf16.mxu0 0
        %426 = vmatpush1.bf16.msra.mxu0 %v403
        %427 = vmatprep.subr.bf16.mxu0 0
        %428 = vmatpush1.bf16.msra.mxu0 %v404
        %429 = vmatprep.subr.bf16.mxu0 0
        %430 = vmatpush1.bf16.msra.mxu0 0
        %431 = vmatprep.subr.bf16.mxu0 0
        %432 = vmatpush1.bf16.msra.mxu0 0
        %433 = vmatprep.subr.bf16.mxu0 0
        %434 = vmatpush1.bf16.msra.mxu0 0
        %435 = vmatprep.subr.bf16.mxu0 0
        %436 = vmatpush1.bf16.msra.mxu0 0
        %437 = vmatprep.subr.bf16.mxu0 0
        %438 = vmatpush1.bf16.msra.mxu0 0
        %439 = vmatprep.subr.bf16.mxu0 0
        %440 = vmatpush1.bf16.msra.mxu0 0
        %441 = vmatprep.subr.bf16.mxu0 0
        %442 = vmatpush1.bf16.msra.mxu0 0
        %443 = vmatprep.subr.bf16.mxu0 0
        %444 = vmatpush1.bf16.msra.mxu0 0
        %445 = vmatprep.mubr.bf16.mxu0 0
        %446 = vmatmul.mubr.bf16.gmra.mrb[0].mxu0 %v349
        %v447 = vpop.f32.mrb[0].mxu0
        %v448 = vadd.f32 0.0, %v447
        %v449 = vpop.f32.mrb[0].mxu0
        %v450 = vpop.f32.mrb[0].mxu0
        %v451 = vadd.f32 0.0, %v450
        %v452 = vpop.f32.mrb[0].mxu0
        %453 = vmatprep.mubr.bf16.mxu0 0
        %454 = vmatmul.mubr.bf16.gmra.mrb[0].mxu0 %v350
        %v455 = vpop.f32.mrb[0].mxu0
        %v456 = vadd.f32 0.0, %v455
        %v457 = vpop.f32.mrb[0].mxu0
        %v458 = vpop.f32.mrb[0].mxu0
        %v459 = vadd.f32 0.0, %v458
        %v460 = vpop.f32.mrb[0].mxu0
        %461 = vmatprep.mubr.bf16.mxu0 0
        %462 = vmatmul.mubr.bf16.gmra.mrb[0].mxu0 %v351
        %v463 = vpop.f32.mrb[0].mxu0
        %v464 = vadd.f32 0.0, %v463
        %v465 = vpop.f32.mrb[0].mxu0
        %v466 = vpop.f32.mrb[0].mxu0
        %v467 = vadd.f32 0.0, %v466
        %v468 = vpop.f32.mrb[0].mxu0
        %469 = vmatprep.mubr.bf16.mxu0 0
        %470 = vmatmul.mubr.bf16.gmra.mrb[0].mxu0 %v352
        %v471 = vpop.f32.mrb[0].mxu0
        %v472 = vadd.f32 0.0, %v471
        %v473 = vpop.f32.mrb[0].mxu0
        %v474 = vpop.f32.mrb[0].mxu0
        %v475 = vadd.f32 0.0, %v474
        %v476 = vpop.f32.mrb[0].mxu0
        %477 = vmatprep.mubr.bf16.mxu0 0
        %478 = vmatmul.mubr.bf16.gmra.mrb[0].mxu0 %v353
        %v479 = vpop.f32.mrb[0].mxu0
        %v480 = vadd.f32 0.0, %v479
        %v481 = vpop.f32.mrb[0].mxu0
        %v482 = vpop.f32.mrb[0].mxu0
        %v483 = vadd.f32 0.0, %v482
        %v484 = vpop.f32.mrb[0].mxu0
        %485 = vmatprep.mubr.bf16.mxu0 0
        %486 = vmatmul.mubr.bf16.gmra.mrb[0].mxu0 %v354
        %v487 = vpop.f32.mrb[0].mxu0
        %v488 = vadd.f32 0.0, %v487
        %v489 = vpop.f32.mrb[0].mxu0
        %v490 = vpop.f32.mrb[0].mxu0
        %v491 = vadd.f32 0.0, %v490
        %v492 = vpop.f32.mrb[0].mxu0
        %493 = vmatprep.mubr.bf16.mxu0 0
        %494 = vmatmul.mubr.bf16.gmra.mrb[0].mxu0 %v355
        %v495 = vpop.f32.mrb[0].mxu0
        %v496 = vadd.f32 0.0, %v495
        %v497 = vpop.f32.mrb[0].mxu0
        %v498 = vpop.f32.mrb[0].mxu0
        %v499 = vadd.f32 0.0, %v498
        %v500 = vpop.f32.mrb[0].mxu0
        %501 = vmatprep.mubr.bf16.mxu0 0
        %502 = vmatmul.mubr.bf16.gmra.mrb[0].mxu0 %v356
        %v503 = vpop.f32.mrb[0].mxu0
        %v504 = vadd.f32 0.0, %v503
        %v505 = vpop.f32.mrb[0].mxu0
        %v506 = vpop.f32.mrb[0].mxu0
        %v507 = vadd.f32 0.0, %v506
        %v508 = vpop.f32.mrb[0].mxu0
        %509 = vdwg.mxu0
        %v510 = vadd.f32 %v285, %v448
        %v511 = vadd.f32 %v286, %v451
        %v512 = vadd.f32 %v287, %v456
        %v513 = vadd.f32 %v288, %v459
        %v514 = vadd.f32 %v289, %v464
        %v515 = vadd.f32 %v290, %v467
        %v516 = vadd.f32 %v291, %v472
        %v517 = vadd.f32 %v292, %v475
        %v518 = vadd.f32 %v293, %v480
        %v519 = vadd.f32 %v294, %v483
        %v520 = vadd.f32 %v295, %v488
        %v521 = vadd.f32 %v296, %v491
        %v522 = vadd.f32 %v297, %v496
        %v523 = vadd.f32 %v298, %v499
        %v524 = vadd.f32 %v299, %v504
        %v525 = vadd.f32 %v300, %v507
        %526 = vst [vmem:[#allocation2] sm:$0xff] %v510
        %527 = vst [vmem:[#allocation2 + $0x8] sm:$0xff] %v511
        %528 = vst [vmem:[#allocation2 + $0x10] sm:$0xff] %v512
        %529 = vst [vmem:[#allocation2 + $0x18] sm:$0xff] %v513
        %530 = vst [vmem:[#allocation2 + $0x20] sm:$0xff] %v514
        %531 = vst [vmem:[#allocation2 + $0x28] sm:$0xff] %v515
        %532 = vst [vmem:[#allocation2 + $0x30] sm:$0xff] %v516
        %533 = vst [vmem:[#allocation2 + $0x38] sm:$0xff] %v517
        %534 = vst [vmem:[#allocation2 + $0x40] sm:$0xff] %v518
        %535 = vst [vmem:[#allocation2 + $0x48] sm:$0xff] %v519
        %536 = vst [vmem:[#allocation2 + $0x50] sm:$0xff] %v520
        %537 = vst [vmem:[#allocation2 + $0x58] sm:$0xff] %v521
        %538 = vst [vmem:[#allocation2 + $0x60] sm:$0xff] %v522
        %539 = vst [vmem:[#allocation2 + $0x68] sm:$0xff] %v523
        %540 = vst [vmem:[#allocation2 + $0x70] sm:$0xff] %v524
        %541 = vst [vmem:[#allocation2 + $0x78] sm:$0xff] %v525
        %vm542 = vsmask.f32 3328
        %vm543 = vsmask.f32 7440
        %vm544 = vmor %vm542, %vm543
        %v546 = vshrl.u32 %v261, 16
        %v548 = vrot.slane %v546, 4
        %v549 = vshll.u32 %v261, 16
        %v551 = vrot.slane %v549, 5
        %v552 = vor.u32 %v548, %v551
        %v553 = vrot.slane %v552, 4
        %v555 = vshll.u32 %v262, 16
        %v557 = vrot.slane %v555, 5
        %v558 = vsel %vm544, %v553, %v557
        %v559 = vshrl.u32 %v262, 16
        %v561 = vrot.slane %v559, 4
        %v562 = vor.u32 %v561, %v557
        %v563 = vrot.slane %v562, 4
        %v565 = vshll.u32 %v263, 16
        %v567 = vrot.slane %v565, 5
        %v568 = vsel %vm544, %v563, %v567
        %v570 = vshrl.u32 %v264, 16
        %v572 = vrot.slane %v570, 4
        %v573 = vshll.u32 %v264, 16
        %v575 = vrot.slane %v573, 5
        %v576 = vor.u32 %v572, %v575
        %v577 = vrot.slane %v576, 4
        %v579 = vshll.u32 %v265, 16
        %v581 = vrot.slane %v579, 5
        %v582 = vsel %vm544, %v577, %v581
        %v583 = vshrl.u32 %v265, 16
        %v585 = vrot.slane %v583, 4
        %v586 = vor.u32 %v585, %v581
        %v587 = vrot.slane %v586, 4
        %v589 = vshll.u32 %v266, 16
        %v591 = vrot.slane %v589, 5
        %v592 = vsel %vm544, %v587, %v591
        %v594 = vshrl.u32 %v267, 16
        %v596 = vrot.slane %v594, 4
        %v597 = vshll.u32 %v267, 16
        %v599 = vrot.slane %v597, 5
        %v600 = vor.u32 %v596, %v599
        %v601 = vrot.slane %v600, 4
        %v603 = vshll.u32 %v268, 16
        %v605 = vrot.slane %v603, 5
        %v606 = vsel %vm544, %v601, %v605
        %v607 = vshrl.u32 %v268, 16
        %v609 = vrot.slane %v607, 4
        %v610 = vor.u32 %v609, %v605
        %v611 = vrot.slane %v610, 4
        %v613 = vshll.u32 %v269, 16
        %v615 = vrot.slane %v613, 5
        %v616 = vsel %vm544, %v611, %v615
        %v618 = vshrl.u32 %v270, 16
        %v620 = vrot.slane %v618, 4
        %v621 = vshll.u32 %v270, 16
        %v623 = vrot.slane %v621, 5
        %v624 = vor.u32 %v620, %v623
        %v625 = vrot.slane %v624, 4
        %v627 = vshll.u32 %v271, 16
        %v629 = vrot.slane %v627, 5
        %v630 = vsel %vm544, %v625, %v629
        %v631 = vshrl.u32 %v271, 16
        %v633 = vrot.slane %v631, 4
        %v634 = vor.u32 %v633, %v629
        %v635 = vrot.slane %v634, 4
        %v637 = vshll.u32 %v272, 16
        %v639 = vrot.slane %v637, 5
        %v640 = vsel %vm544, %v635, %v639
        %v642 = vshrl.u32 %v273, 16
        %v644 = vrot.slane %v642, 4
        %v645 = vshll.u32 %v273, 16
        %v647 = vrot.slane %v645, 5
        %v648 = vor.u32 %v644, %v647
        %v649 = vrot.slane %v648, 4
        %v651 = vshll.u32 %v274, 16
        %v653 = vrot.slane %v651, 5
        %v654 = vsel %vm544, %v649, %v653
        %v655 = vshrl.u32 %v274, 16
        %v657 = vrot.slane %v655, 4
        %v658 = vor.u32 %v657, %v653
        %v659 = vrot.slane %v658, 4
        %v661 = vshll.u32 %v275, 16
        %v663 = vrot.slane %v661, 5
        %v664 = vsel %vm544, %v659, %v663
        %v666 = vshrl.u32 %v276, 16
        %v668 = vrot.slane %v666, 4
        %v669 = vshll.u32 %v276, 16
        %v671 = vrot.slane %v669, 5
        %v672 = vor.u32 %v668, %v671
        %v673 = vrot.slane %v672, 4
        %v675 = vshll.u32 %v277, 16
        %v677 = vrot.slane %v675, 5
        %v678 = vsel %vm544, %v673, %v677
        %v679 = vshrl.u32 %v277, 16
        %v681 = vrot.slane %v679, 4
        %v682 = vor.u32 %v681, %v677
        %v683 = vrot.slane %v682, 4
        %v685 = vshll.u32 %v278, 16
        %v687 = vrot.slane %v685, 5
        %v688 = vsel %vm544, %v683, %v687
        %v690 = vshrl.u32 %v279, 16
        %v692 = vrot.slane %v690, 4
        %v693 = vshll.u32 %v279, 16
        %v695 = vrot.slane %v693, 5
        %v696 = vor.u32 %v692, %v695
        %v697 = vrot.slane %v696, 4
        %v699 = vshll.u32 %v280, 16
        %v701 = vrot.slane %v699, 5
        %v702 = vsel %vm544, %v697, %v701
        %v703 = vshrl.u32 %v280, 16
        %v705 = vrot.slane %v703, 4
        %v706 = vor.u32 %v705, %v701
        %v707 = vrot.slane %v706, 4
        %v709 = vshll.u32 %v281, 16
        %v711 = vrot.slane %v709, 5
        %v712 = vsel %vm544, %v707, %v711
        %v714 = vshrl.u32 %v282, 16
        %v716 = vrot.slane %v714, 4
        %v717 = vshll.u32 %v282, 16
        %v719 = vrot.slane %v717, 5
        %v720 = vor.u32 %v716, %v719
        %v721 = vrot.slane %v720, 4
        %v723 = vshll.u32 %v283, 16
        %v725 = vrot.slane %v723, 5
        %v726 = vsel %vm544, %v721, %v725
        %v727 = vshrl.u32 %v283, 16
        %v729 = vrot.slane %v727, 4
        %v730 = vor.u32 %v729, %v725
        %v731 = vrot.slane %v730, 4
        %v733 = vshll.u32 %v284, 16
        %v735 = vrot.slane %v733, 5
        %v736 = vsel %vm544, %v731, %v735
        %v737 = vld [vmem:[#allocation2] sm:$0xff]
        %v738 = vld [vmem:[#allocation2 + $0x8] sm:$0xff]
        %v739 = vld [vmem:[#allocation2 + $0x10] sm:$0xff]
        %v740 = vld [vmem:[#allocation2 + $0x18] sm:$0xff]
        %v741 = vld [vmem:[#allocation2 + $0x20] sm:$0xff]
        %v742 = vld [vmem:[#allocation2 + $0x28] sm:$0xff]
        %v743 = vld [vmem:[#allocation2 + $0x30] sm:$0xff]
        %v744 = vld [vmem:[#allocation2 + $0x38] sm:$0xff]
        %v745 = vld [vmem:[#allocation2 + $0x40] sm:$0xff]
        %v746 = vld [vmem:[#allocation2 + $0x48] sm:$0xff]
        %v747 = vld [vmem:[#allocation2 + $0x50] sm:$0xff]
        %v748 = vld [vmem:[#allocation2 + $0x58] sm:$0xff]
        %v749 = vld [vmem:[#allocation2 + $0x60] sm:$0xff]
        %v750 = vld [vmem:[#allocation2 + $0x68] sm:$0xff]
        %v751 = vld [vmem:[#allocation2 + $0x70] sm:$0xff]
        %v752 = vld [vmem:[#allocation2 + $0x78] sm:$0xff]
        %s753 = scalar_lea.vmem [#allocation6], 64
        %v754 = vld [vmem:[%s753] sm:$0xf]
        %v755 = vld [vmem:[%s753 + $0x4] sm:$0xf]
        %v756 = vld [vmem:[%s753 + $0x8] sm:$0xf]
        %v757 = vld [vmem:[%s753 + $0xc] sm:$0xf]
        %v758 = vld [vmem:[%s753 + $0x10] sm:$0xf]
        %v759 = vld [vmem:[%s753 + $0x14] sm:$0xf]
        %v760 = vld [vmem:[%s753 + $0x18] sm:$0xf]
        %v761 = vld [vmem:[%s753 + $0x1c] sm:$0xf]
        %v762 = vld [vmem:[%s753 + $0x20] sm:$0xf]
        %v763 = vld [vmem:[%s753 + $0x24] sm:$0xf]
        %v764 = vld [vmem:[%s753 + $0x28] sm:$0xf]
        %v765 = vld [vmem:[%s753 + $0x2c] sm:$0xf]
        %v766 = vld [vmem:[%s753 + $0x30] sm:$0xf]
        %v767 = vld [vmem:[%s753 + $0x34] sm:$0xf]
        %v768 = vld [vmem:[%s753 + $0x38] sm:$0xf]
        %v769 = vld [vmem:[%s753 + $0x3c] sm:$0xf]
        %v770 = vunpack.c.l.b16 %v558
        %v771 = vunpack.c.l.b16 %v568
        %v772 = vunpack.c.l.b16 %v582
        %v773 = vunpack.c.l.b16 %v592
        %v774 = vunpack.c.l.b16 %v606
        %v775 = vunpack.c.l.b16 %v616
        %v776 = vunpack.c.l.b16 %v630
        %v777 = vunpack.c.l.b16 %v640
        %v778 = vunpack.c.l.b16 %v654
        %v779 = vunpack.c.l.b16 %v664
        %v780 = vunpack.c.l.b16 %v678
        %v781 = vunpack.c.l.b16 %v688
        %v782 = vunpack.c.l.b16 %v702
        %v783 = vunpack.c.l.b16 %v712
        %v784 = vunpack.c.l.b16 %v726
        %v785 = vunpack.c.l.b16 %v736
        %v786 = vpack.c.b16 %v771, %v770
        %v787 = vpack.c.b16 %v773, %v772
        %v788 = vpack.c.b16 %v775, %v774
        %v789 = vpack.c.b16 %v777, %v776
        %v790 = vpack.c.b16 %v779, %v778
        %v791 = vpack.c.b16 %v781, %v780
        %v792 = vpack.c.b16 %v783, %v782
        %v793 = vpack.c.b16 %v785, %v784
        %v818 = vunpack.c.l.b16 %v754
        %v819 = vunpack.c.l.b16 %v755
        %v820 = vunpack.c.l.b16 %v756
        %v821 = vunpack.c.l.b16 %v757
        %v822 = vunpack.c.l.b16 %v758
        %v823 = vunpack.c.l.b16 %v759
        %v824 = vunpack.c.l.b16 %v760
        %v825 = vunpack.c.l.b16 %v761
        %v826 = vunpack.c.l.b16 %v762
        %v827 = vunpack.c.l.b16 %v763
        %v828 = vunpack.c.l.b16 %v764
        %v829 = vunpack.c.l.b16 %v765
        %v830 = vunpack.c.l.b16 %v766
        %v831 = vunpack.c.l.b16 %v767
        %v832 = vunpack.c.l.b16 %v768
        %v833 = vunpack.c.l.b16 %v769
        %v834 = vpack.c.b16 %v819, %v818
        %v835 = vpack.c.b16 %v821, %v820
        %v836 = vpack.c.b16 %v823, %v822
        %v837 = vpack.c.b16 %v825, %v824
        %v838 = vpack.c.b16 %v827, %v826
        %v839 = vpack.c.b16 %v829, %v828
        %v840 = vpack.c.b16 %v831, %v830
        %v841 = vpack.c.b16 %v833, %v832
        %850 = vmatprep.subr.bf16.mxu0 0
        %851 = vmatpush1.bf16.msra.mxu0 %v834
        %852 = vmatprep.subr.bf16.mxu0 0
        %853 = vmatpush1.bf16.msra.mxu0 %v835
        %854 = vmatprep.subr.bf16.mxu0 0
        %855 = vmatpush1.bf16.msra.mxu0 %v836
        %856 = vmatprep.subr.bf16.mxu0 0
        %857 = vmatpush1.bf16.msra.mxu0 %v837
        %858 = vmatprep.subr.bf16.mxu0 0
        %859 = vmatpush1.bf16.msra.mxu0 %v838
        %860 = vmatprep.subr.bf16.mxu0 0
        %861 = vmatpush1.bf16.msra.mxu0 %v839
        %862 = vmatprep.subr.bf16.mxu0 0
        %863 = vmatpush1.bf16.msra.mxu0 %v840
        %864 = vmatprep.subr.bf16.mxu0 0
        %865 = vmatpush1.bf16.msra.mxu0 %v841
        %866 = vmatprep.subr.bf16.mxu0 0
        %867 = vmatpush1.bf16.msra.mxu0 0
        %868 = vmatprep.subr.bf16.mxu0 0
        %869 = vmatpush1.bf16.msra.mxu0 0
        %870 = vmatprep.subr.bf16.mxu0 0
        %871 = vmatpush1.bf16.msra.mxu0 0
        %872 = vmatprep.subr.bf16.mxu0 0
        %873 = vmatpush1.bf16.msra.mxu0 0
        %874 = vmatprep.subr.bf16.mxu0 0
        %875 = vmatpush1.bf16.msra.mxu0 0
        %876 = vmatprep.subr.bf16.mxu0 0
        %877 = vmatpush1.bf16.msra.mxu0 0
        %878 = vmatprep.subr.bf16.mxu0 0
        %879 = vmatpush1.bf16.msra.mxu0 0
        %880 = vmatprep.subr.bf16.mxu0 0
        %881 = vmatpush1.bf16.msra.mxu0 0
        %882 = vmatprep.mubr.bf16.mxu0 0
        %883 = vmatmul.mubr.bf16.gmra.mrb[0].mxu0 %v786
        %v884 = vpop.f32.mrb[0].mxu0
        %v885 = vadd.f32 0.0, %v884
        %v886 = vpop.f32.mrb[0].mxu0
        %v887 = vpop.f32.mrb[0].mxu0
        %v888 = vadd.f32 0.0, %v887
        %v889 = vpop.f32.mrb[0].mxu0
        %890 = vmatprep.mubr.bf16.mxu0 0
        %891 = vmatmul.mubr.bf16.gmra.mrb[0].mxu0 %v787
        %v892 = vpop.f32.mrb[0].mxu0
        %v893 = vadd.f32 0.0, %v892
        %v894 = vpop.f32.mrb[0].mxu0
        %v895 = vpop.f32.mrb[0].mxu0
        %v896 = vadd.f32 0.0, %v895
        %v897 = vpop.f32.mrb[0].mxu0
        %898 = vmatprep.mubr.bf16.mxu0 0
        %899 = vmatmul.mubr.bf16.gmra.mrb[0].mxu0 %v788
        %v900 = vpop.f32.mrb[0].mxu0
        %v901 = vadd.f32 0.0, %v900
        %v902 = vpop.f32.mrb[0].mxu0
        %v903 = vpop.f32.mrb[0].mxu0
        %v904 = vadd.f32 0.0, %v903
        %v905 = vpop.f32.mrb[0].mxu0
        %906 = vmatprep.mubr.bf16.mxu0 0
        %907 = vmatmul.mubr.bf16.gmra.mrb[0].mxu0 %v789
        %v908 = vpop.f32.mrb[0].mxu0
        %v909 = vadd.f32 0.0, %v908
        %v910 = vpop.f32.mrb[0].mxu0
        %v911 = vpop.f32.mrb[0].mxu0
        %v912 = vadd.f32 0.0, %v911
        %v913 = vpop.f32.mrb[0].mxu0
        %914 = vmatprep.mubr.bf16.mxu0 0
        %915 = vmatmul.mubr.bf16.gmra.mrb[0].mxu0 %v790
        %v916 = vpop.f32.mrb[0].mxu0
        %v917 = vadd.f32 0.0, %v916
        %v918 = vpop.f32.mrb[0].mxu0
        %v919 = vpop.f32.mrb[0].mxu0
        %v920 = vadd.f32 0.0, %v919
        %v921 = vpop.f32.mrb[0].mxu0
        %922 = vmatprep.mubr.bf16.mxu0 0
        %923 = vmatmul.mubr.bf16.gmra.mrb[0].mxu0 %v791
        %v924 = vpop.f32.mrb[0].mxu0
        %v925 = vadd.f32 0.0, %v924
        %v926 = vpop.f32.mrb[0].mxu0
        %v927 = vpop.f32.mrb[0].mxu0
        %v928 = vadd.f32 0.0, %v927
        %v929 = vpop.f32.mrb[0].mxu0
        %930 = vmatprep.mubr.bf16.mxu0 0
        %931 = vmatmul.mubr.bf16.gmra.mrb[0].mxu0 %v792
        %v932 = vpop.f32.mrb[0].mxu0
        %v933 = vadd.f32 0.0, %v932
        %v934 = vpop.f32.mrb[0].mxu0
        %v935 = vpop.f32.mrb[0].mxu0
        %v936 = vadd.f32 0.0, %v935
        %v937 = vpop.f32.mrb[0].mxu0
        %938 = vmatprep.mubr.bf16.mxu0 0
        %939 = vmatmul.mubr.bf16.gmra.mrb[0].mxu0 %v793
        %v940 = vpop.f32.mrb[0].mxu0
        %v941 = vadd.f32 0.0, %v940
        %v942 = vpop.f32.mrb[0].mxu0
        %v943 = vpop.f32.mrb[0].mxu0
        %v944 = vadd.f32 0.0, %v943
        %v945 = vpop.f32.mrb[0].mxu0
        %946 = vdwg.mxu0
        %v947 = vadd.f32 %v737, %v885
        %v948 = vadd.f32 %v738, %v888
        %v949 = vadd.f32 %v739, %v893
        %v950 = vadd.f32 %v740, %v896
        %v951 = vadd.f32 %v741, %v901
        %v952 = vadd.f32 %v742, %v904
        %v953 = vadd.f32 %v743, %v909
        %v954 = vadd.f32 %v744, %v912
        %v955 = vadd.f32 %v745, %v917
        %v956 = vadd.f32 %v746, %v920
        %v957 = vadd.f32 %v747, %v925
        %v958 = vadd.f32 %v748, %v928
        %v959 = vadd.f32 %v749, %v933
        %v960 = vadd.f32 %v750, %v936
        %v961 = vadd.f32 %v751, %v941
        %v962 = vadd.f32 %v752, %v944
        %963 = vst [vmem:[#allocation2] sm:$0xff] %v947
        %964 = vst [vmem:[#allocation2 + $0x8] sm:$0xff] %v948
        %965 = vst [vmem:[#allocation2 + $0x10] sm:$0xff] %v949
        %966 = vst [vmem:[#allocation2 + $0x18] sm:$0xff] %v950
        %967 = vst [vmem:[#allocation2 + $0x20] sm:$0xff] %v951
        %968 = vst [vmem:[#allocation2 + $0x28] sm:$0xff] %v952
        %969 = vst [vmem:[#allocation2 + $0x30] sm:$0xff] %v953
        %970 = vst [vmem:[#allocation2 + $0x38] sm:$0xff] %v954
        %971 = vst [vmem:[#allocation2 + $0x40] sm:$0xff] %v955
        %972 = vst [vmem:[#allocation2 + $0x48] sm:$0xff] %v956
        %973 = vst [vmem:[#allocation2 + $0x50] sm:$0xff] %v957
        %974 = vst [vmem:[#allocation2 + $0x58] sm:$0xff] %v958
        %975 = vst [vmem:[#allocation2 + $0x60] sm:$0xff] %v959
        %976 = vst [vmem:[#allocation2 + $0x68] sm:$0xff] %v960
        %977 = vst [vmem:[#allocation2 + $0x70] sm:$0xff] %v961
        %978 = vst [vmem:[#allocation2 + $0x78] sm:$0xff] %v962
        %vm987 = vcmask 1042432
        %vm988 = vcmask 1046532
        %vm989 = vmor %vm987, %vm988
        %v990 = vrot.slane %v261, 5
        %v991 = vrot.slane %v990, 4
        %v992 = vrot.slane %v262, 5
        %v993 = vsel %vm989, %v991, %v992
        %v994 = vrot.slane %v992, 4
        %v995 = vrot.slane %v263, 5
        %v996 = vsel %vm989, %v994, %v995
        %v997 = vrot.slane %v264, 5
        %v998 = vrot.slane %v997, 4
        %v999 = vrot.slane %v265, 5
        %v1000 = vsel %vm989, %v998, %v999
        %v1001 = vrot.slane %v999, 4
        %v1002 = vrot.slane %v266, 5
        %v1003 = vsel %vm989, %v1001, %v1002
        %v1004 = vrot.slane %v267, 5
        %v1005 = vrot.slane %v1004, 4
        %v1006 = vrot.slane %v268, 5
        %v1007 = vsel %vm989, %v1005, %v1006
        %v1008 = vrot.slane %v1006, 4
        %v1009 = vrot.slane %v269, 5
        %v1010 = vsel %vm989, %v1008, %v1009
        %v1011 = vrot.slane %v270, 5
        %v1012 = vrot.slane %v1011, 4
        %v1013 = vrot.slane %v271, 5
        %v1014 = vsel %vm989, %v1012, %v1013
        %v1015 = vrot.slane %v1013, 4
        %v1016 = vrot.slane %v272, 5
        %v1017 = vsel %vm989, %v1015, %v1016
        %v1018 = vrot.slane %v273, 5
        %v1019 = vrot.slane %v1018, 4
        %v1020 = vrot.slane %v274, 5
        %v1021 = vsel %vm989, %v1019, %v1020
        %v1022 = vrot.slane %v1020, 4
        %v1023 = vrot.slane %v275, 5
        %v1024 = vsel %vm989, %v1022, %v1023
        %v1025 = vrot.slane %v276, 5
        %v1026 = vrot.slane %v1025, 4
        %v1027 = vrot.slane %v277, 5
        %v1028 = vsel %vm989, %v1026, %v1027
        %v1029 = vrot.slane %v1027, 4
        %v1030 = vrot.slane %v278, 5
        %v1031 = vsel %vm989, %v1029, %v1030
        %v1032 = vrot.slane %v279, 5
        %v1033 = vrot.slane %v1032, 4
        %v1034 = vrot.slane %v280, 5
        %v1035 = vsel %vm989, %v1033, %v1034
        %v1036 = vrot.slane %v1034, 4
        %v1037 = vrot.slane %v281, 5
        %v1038 = vsel %vm989, %v1036, %v1037
        %v1039 = vrot.slane %v282, 5
        %v1040 = vrot.slane %v1039, 4
        %v1041 = vrot.slane %v283, 5
        %v1042 = vsel %vm989, %v1040, %v1041
        %v1043 = vrot.slane %v1041, 4
        %v1044 = vrot.slane %v284, 5
        %v1045 = vsel %vm989, %v1043, %v1044
        %v1046 = vld [vmem:[#allocation2] sm:$0xff]
        %v1047 = vld [vmem:[#allocation2 + $0x8] sm:$0xff]
        %v1048 = vld [vmem:[#allocation2 + $0x10] sm:$0xff]
        %v1049 = vld [vmem:[#allocation2 + $0x18] sm:$0xff]
        %v1050 = vld [vmem:[#allocation2 + $0x20] sm:$0xff]
        %v1051 = vld [vmem:[#allocation2 + $0x28] sm:$0xff]
        %v1052 = vld [vmem:[#allocation2 + $0x30] sm:$0xff]
        %v1053 = vld [vmem:[#allocation2 + $0x38] sm:$0xff]
        %v1054 = vld [vmem:[#allocation2 + $0x40] sm:$0xff]
        %v1055 = vld [vmem:[#allocation2 + $0x48] sm:$0xff]
        %v1056 = vld [vmem:[#allocation2 + $0x50] sm:$0xff]
        %v1057 = vld [vmem:[#allocation2 + $0x58] sm:$0xff]
        %v1058 = vld [vmem:[#allocation2 + $0x60] sm:$0xff]
        %v1059 = vld [vmem:[#allocation2 + $0x68] sm:$0xff]
        %v1060 = vld [vmem:[#allocation2 + $0x70] sm:$0xff]
        %v1061 = vld [vmem:[#allocation2 + $0x78] sm:$0xff]
        %s1062 = scalar_lea.vmem [#allocation6], 128
        %v1063 = vld [vmem:[%s1062] sm:$0xf]
        %v1064 = vld [vmem:[%s1062 + $0x4] sm:$0xf]
        %v1065 = vld [vmem:[%s1062 + $0x8] sm:$0xf]
        %v1066 = vld [vmem:[%s1062 + $0xc] sm:$0xf]
        %v1067 = vld [vmem:[%s1062 + $0x10] sm:$0xf]
        %v1068 = vld [vmem:[%s1062 + $0x14] sm:$0xf]
        %v1069 = vld [vmem:[%s1062 + $0x18] sm:$0xf]
        %v1070 = vld [vmem:[%s1062 + $0x1c] sm:$0xf]
        %v1071 = vld [vmem:[%s1062 + $0x20] sm:$0xf]
        %v1072 = vld [vmem:[%s1062 + $0x24] sm:$0xf]
        %v1073 = vld [vmem:[%s1062 + $0x28] sm:$0xf]
        %v1074 = vld [vmem:[%s1062 + $0x2c] sm:$0xf]
        %v1075 = vld [vmem:[%s1062 + $0x30] sm:$0xf]
        %v1076 = vld [vmem:[%s1062 + $0x34] sm:$0xf]
        %v1077 = vld [vmem:[%s1062 + $0x38] sm:$0xf]
        %v1078 = vld [vmem:[%s1062 + $0x3c] sm:$0xf]
        %v1079 = vunpack.c.l.b16 %v993
        %v1080 = vunpack.c.l.b16 %v996
        %v1081 = vunpack.c.l.b16 %v1000
        %v1082 = vunpack.c.l.b16 %v1003
        %v1083 = vunpack.c.l.b16 %v1007
        %v1084 = vunpack.c.l.b16 %v1010
        %v1085 = vunpack.c.l.b16 %v1014
        %v1086 = vunpack.c.l.b16 %v1017
        %v1087 = vunpack.c.l.b16 %v1021
        %v1088 = vunpack.c.l.b16 %v1024
        %v1089 = vunpack.c.l.b16 %v1028
        %v1090 = vunpack.c.l.b16 %v1031
        %v1091 = vunpack.c.l.b16 %v1035
        %v1092 = vunpack.c.l.b16 %v1038
        %v1093 = vunpack.c.l.b16 %v1042
        %v1094 = vunpack.c.l.b16 %v1045
        %v1095 = vpack.c.b16 %v1080, %v1079
        %v1096 = vpack.c.b16 %v1082, %v1081
        %v1097 = vpack.c.b16 %v1084, %v1083
        %v1098 = vpack.c.b16 %v1086, %v1085
        %v1099 = vpack.c.b16 %v1088, %v1087
        %v1100 = vpack.c.b16 %v1090, %v1089
        %v1101 = vpack.c.b16 %v1092, %v1091
        %v1102 = vpack.c.b16 %v1094, %v1093
        %v1127 = vunpack.c.l.b16 %v1063
        %v1128 = vunpack.c.l.b16 %v1064
        %v1129 = vunpack.c.l.b16 %v1065
        %v1130 = vunpack.c.l.b16 %v1066
        %v1131 = vunpack.c.l.b16 %v1067
        %v1132 = vunpack.c.l.b16 %v1068
        %v1133 = vunpack.c.l.b16 %v1069
        %v1134 = vunpack.c.l.b16 %v1070
        %v1135 = vunpack.c.l.b16 %v1071
        %v1136 = vunpack.c.l.b16 %v1072
        %v1137 = vunpack.c.l.b16 %v1073
        %v1138 = vunpack.c.l.b16 %v1074
        %v1139 = vunpack.c.l.b16 %v1075
        %v1140 = vunpack.c.l.b16 %v1076
        %v1141 = vunpack.c.l.b16 %v1077
        %v1142 = vunpack.c.l.b16 %v1078
        %v1143 = vpack.c.b16 %v1128, %v1127
        %v1144 = vpack.c.b16 %v1130, %v1129
        %v1145 = vpack.c.b16 %v1132, %v1131
        %v1146 = vpack.c.b16 %v1134, %v1133
        %v1147 = vpack.c.b16 %v1136, %v1135
        %v1148 = vpack.c.b16 %v1138, %v1137
        %v1149 = vpack.c.b16 %v1140, %v1139
        %v1150 = vpack.c.b16 %v1142, %v1141
        %1159 = vmatprep.subr.bf16.mxu0 0
        %1160 = vmatpush1.bf16.msra.mxu0 %v1143
        %1161 = vmatprep.subr.bf16.mxu0 0
        %1162 = vmatpush1.bf16.msra.mxu0 %v1144
        %1163 = vmatprep.subr.bf16.mxu0 0
        %1164 = vmatpush1.bf16.msra.mxu0 %v1145
        %1165 = vmatprep.subr.bf16.mxu0 0
        %1166 = vmatpush1.bf16.msra.mxu0 %v1146
        %1167 = vmatprep.subr.bf16.mxu0 0
        %1168 = vmatpush1.bf16.msra.mxu0 %v1147
        %1169 = vmatprep.subr.bf16.mxu0 0
        %1170 = vmatpush1.bf16.msra.mxu0 %v1148
        %1171 = vmatprep.subr.bf16.mxu0 0
        %1172 = vmatpush1.bf16.msra.mxu0 %v1149
        %1173 = vmatprep.subr.bf16.mxu0 0
        %1174 = vmatpush1.bf16.msra.mxu0 %v1150
        %1175 = vmatprep.subr.bf16.mxu0 0
        %1176 = vmatpush1.bf16.msra.mxu0 0
        %1177 = vmatprep.subr.bf16.mxu0 0
        %1178 = vmatpush1.bf16.msra.mxu0 0
        %1179 = vmatprep.subr.bf16.mxu0 0
        %1180 = vmatpush1.bf16.msra.mxu0 0
        %1181 = vmatprep.subr.bf16.mxu0 0
        %1182 = vmatpush1.bf16.msra.mxu0 0
        %1183 = vmatprep.subr.bf16.mxu0 0
        %1184 = vmatpush1.bf16.msra.mxu0 0
        %1185 = vmatprep.subr.bf16.mxu0 0
        %1186 = vmatpush1.bf16.msra.mxu0 0
        %1187 = vmatprep.subr.bf16.mxu0 0
        %1188 = vmatpush1.bf16.msra.mxu0 0
        %1189 = vmatprep.subr.bf16.mxu0 0
        %1190 = vmatpush1.bf16.msra.mxu0 0
        %1191 = vmatprep.mubr.bf16.mxu0 0
        %1192 = vmatmul.mubr.bf16.gmra.mrb[0].mxu0 %v1095
        %v1193 = vpop.f32.mrb[0].mxu0
        %v1194 = vadd.f32 0.0, %v1193
        %v1195 = vpop.f32.mrb[0].mxu0
        %v1196 = vpop.f32.mrb[0].mxu0
        %v1197 = vadd.f32 0.0, %v1196
        %v1198 = vpop.f32.mrb[0].mxu0
        %1199 = vmatprep.mubr.bf16.mxu0 0
        %1200 = vmatmul.mubr.bf16.gmra.mrb[0].mxu0 %v1096
        %v1201 = vpop.f32.mrb[0].mxu0
        %v1202 = vadd.f32 0.0, %v1201
        %v1203 = vpop.f32.mrb[0].mxu0
        %v1204 = vpop.f32.mrb[0].mxu0
        %v1205 = vadd.f32 0.0, %v1204
        %v1206 = vpop.f32.mrb[0].mxu0
        %1207 = vmatprep.mubr.bf16.mxu0 0
        %1208 = vmatmul.mubr.bf16.gmra.mrb[0].mxu0 %v1097
        %v1209 = vpop.f32.mrb[0].mxu0
        %v1210 = vadd.f32 0.0, %v1209
        %v1211 = vpop.f32.mrb[0].mxu0
        %v1212 = vpop.f32.mrb[0].mxu0
        %v1213 = vadd.f32 0.0, %v1212
        %v1214 = vpop.f32.mrb[0].mxu0
        %1215 = vmatprep.mubr.bf16.mxu0 0
        %1216 = vmatmul.mubr.bf16.gmra.mrb[0].mxu0 %v1098
        %v1217 = vpop.f32.mrb[0].mxu0
        %v1218 = vadd.f32 0.0, %v1217
        %v1219 = vpop.f32.mrb[0].mxu0
        %v1220 = vpop.f32.mrb[0].mxu0
        %v1221 = vadd.f32 0.0, %v1220
        %v1222 = vpop.f32.mrb[0].mxu0
        %1223 = vmatprep.mubr.bf16.mxu0 0
        %1224 = vmatmul.mubr.bf16.gmra.mrb[0].mxu0 %v1099
        %v1225 = vpop.f32.mrb[0].mxu0
        %v1226 = vadd.f32 0.0, %v1225
        %v1227 = vpop.f32.mrb[0].mxu0
        %v1228 = vpop.f32.mrb[0].mxu0
        %v1229 = vadd.f32 0.0, %v1228
        %v1230 = vpop.f32.mrb[0].mxu0
        %1231 = vmatprep.mubr.bf16.mxu0 0
        %1232 = vmatmul.mubr.bf16.gmra.mrb[0].mxu0 %v1100
        %v1233 = vpop.f32.mrb[0].mxu0
        %v1234 = vadd.f32 0.0, %v1233
        %v1235 = vpop.f32.mrb[0].mxu0
        %v1236 = vpop.f32.mrb[0].mxu0
        %v1237 = vadd.f32 0.0, %v1236
        %v1238 = vpop.f32.mrb[0].mxu0
        %1239 = vmatprep.mubr.bf16.mxu0 0
        %1240 = vmatmul.mubr.bf16.gmra.mrb[0].mxu0 %v1101
        %v1241 = vpop.f32.mrb[0].mxu0
        %v1242 = vadd.f32 0.0, %v1241
        %v1243 = vpop.f32.mrb[0].mxu0
        %v1244 = vpop.f32.mrb[0].mxu0
        %v1245 = vadd.f32 0.0, %v1244
        %v1246 = vpop.f32.mrb[0].mxu0
        %1247 = vmatprep.mubr.bf16.mxu0 0
        %1248 = vmatmul.mubr.bf16.gmra.mrb[0].mxu0 %v1102
        %v1249 = vpop.f32.mrb[0].mxu0
        %v1250 = vadd.f32 0.0, %v1249
        %v1251 = vpop.f32.mrb[0].mxu0
        %v1252 = vpop.f32.mrb[0].mxu0
        %v1253 = vadd.f32 0.0, %v1252
        %v1254 = vpop.f32.mrb[0].mxu0
        %1255 = vdwg.mxu0
        %v1256 = vadd.f32 %v1046, %v1194
        %v1257 = vadd.f32 %v1047, %v1197
        %v1258 = vadd.f32 %v1048, %v1202
        %v1259 = vadd.f32 %v1049, %v1205
        %v1260 = vadd.f32 %v1050, %v1210
        %v1261 = vadd.f32 %v1051, %v1213
        %v1262 = vadd.f32 %v1052, %v1218
        %v1263 = vadd.f32 %v1053, %v1221
        %v1264 = vadd.f32 %v1054, %v1226
        %v1265 = vadd.f32 %v1055, %v1229
        %v1266 = vadd.f32 %v1056, %v1234
        %v1267 = vadd.f32 %v1057, %v1237
        %v1268 = vadd.f32 %v1058, %v1242
        %v1269 = vadd.f32 %v1059, %v1245
        %v1270 = vadd.f32 %v1060, %v1250
        %v1271 = vadd.f32 %v1061, %v1253
        %1272 = vst [vmem:[#allocation2] sm:$0xff] %v1256
        %1273 = vst [vmem:[#allocation2 + $0x8] sm:$0xff] %v1257
        %1274 = vst [vmem:[#allocation2 + $0x10] sm:$0xff] %v1258
        %1275 = vst [vmem:[#allocation2 + $0x18] sm:$0xff] %v1259
        %1276 = vst [vmem:[#allocation2 + $0x20] sm:$0xff] %v1260
        %1277 = vst [vmem:[#allocation2 + $0x28] sm:$0xff] %v1261
        %1278 = vst [vmem:[#allocation2 + $0x30] sm:$0xff] %v1262
        %1279 = vst [vmem:[#allocation2 + $0x38] sm:$0xff] %v1263
        %1280 = vst [vmem:[#allocation2 + $0x40] sm:$0xff] %v1264
        %1281 = vst [vmem:[#allocation2 + $0x48] sm:$0xff] %v1265
        %1282 = vst [vmem:[#allocation2 + $0x50] sm:$0xff] %v1266
        %1283 = vst [vmem:[#allocation2 + $0x58] sm:$0xff] %v1267
        %1284 = vst [vmem:[#allocation2 + $0x60] sm:$0xff] %v1268
        %1285 = vst [vmem:[#allocation2 + $0x68] sm:$0xff] %v1269
        %1286 = vst [vmem:[#allocation2 + $0x70] sm:$0xff] %v1270
        %1287 = vst [vmem:[#allocation2 + $0x78] sm:$0xff] %v1271
        %s1288 = sadd.s32 %s241, 1
        %s1289 = smul.u32 %s1288, 3
        %s1290 = smul.addr %s1289, 4
        %s1291 = scalar_lea.vmem %s203, %s1290 [#allocation3]
        %v1292 = vld [vmem:[%s1291] sm:$0xf]
        %v1293 = vld [vmem:[%s1291 + $0x4] sm:$0xf]
        %v1294 = vld [vmem:[%s1291 + $0x8] sm:$0x1]
        %v1295 = vld [vmem:[%s1291 + $0xc] sm:$0xf]
        %v1296 = vld [vmem:[%s1291 + $0x10] sm:$0xf]
        %v1297 = vld [vmem:[%s1291 + $0x14] sm:$0x1]
        %v1298 = vld [vmem:[%s1291 + $0x18] sm:$0xf]
        %v1299 = vld [vmem:[%s1291 + $0x1c] sm:$0xf]
        %v1300 = vld [vmem:[%s1291 + $0x20] sm:$0x1]
        %v1301 = vld [vmem:[%s1291 + $0x24] sm:$0xf]
        %v1302 = vld [vmem:[%s1291 + $0x28] sm:$0xf]
        %v1303 = vld [vmem:[%s1291 + $0x2c] sm:$0x1]
        %v1304 = vld [vmem:[%s1291 + $0x30] sm:$0xf]
        %v1305 = vld [vmem:[%s1291 + $0x34] sm:$0xf]
        %v1306 = vld [vmem:[%s1291 + $0x38] sm:$0x1]
        %v1307 = vld [vmem:[%s1291 + $0x3c] sm:$0xf]
        %v1308 = vld [vmem:[%s1291 + $0x40] sm:$0xf]
        %v1309 = vld [vmem:[%s1291 + $0x44] sm:$0x1]
        %v1310 = vld [vmem:[%s1291 + $0x48] sm:$0xf]
        %v1311 = vld [vmem:[%s1291 + $0x4c] sm:$0xf]
        %v1312 = vld [vmem:[%s1291 + $0x50] sm:$0x1]
        %v1313 = vld [vmem:[%s1291 + $0x54] sm:$0xf]
        %v1314 = vld [vmem:[%s1291 + $0x58] sm:$0xf]
        %v1315 = vld [vmem:[%s1291 + $0x5c] sm:$0x1]
        %v1316 = vld [vmem:[#allocation2] sm:$0xff]
        %v1317 = vld [vmem:[#allocation2 + $0x8] sm:$0xff]
        %v1318 = vld [vmem:[#allocation2 + $0x10] sm:$0xff]
        %v1319 = vld [vmem:[#allocation2 + $0x18] sm:$0xff]
        %v1320 = vld [vmem:[#allocation2 + $0x20] sm:$0xff]
        %v1321 = vld [vmem:[#allocation2 + $0x28] sm:$0xff]
        %v1322 = vld [vmem:[#allocation2 + $0x30] sm:$0xff]
        %v1323 = vld [vmem:[#allocation2 + $0x38] sm:$0xff]
        %v1324 = vld [vmem:[#allocation2 + $0x40] sm:$0xff]
        %v1325 = vld [vmem:[#allocation2 + $0x48] sm:$0xff]
        %v1326 = vld [vmem:[#allocation2 + $0x50] sm:$0xff]
        %v1327 = vld [vmem:[#allocation2 + $0x58] sm:$0xff]
        %v1328 = vld [vmem:[#allocation2 + $0x60] sm:$0xff]
        %v1329 = vld [vmem:[#allocation2 + $0x68] sm:$0xff]
        %v1330 = vld [vmem:[#allocation2 + $0x70] sm:$0xff]
        %v1331 = vld [vmem:[#allocation2 + $0x78] sm:$0xff]
        %s1332 = scalar_lea.vmem [#allocation6], 192
        %v1333 = vld [vmem:[%s1332] sm:$0xf]
        %v1334 = vld [vmem:[%s1332 + $0x4] sm:$0xf]
        %v1335 = vld [vmem:[%s1332 + $0x8] sm:$0xf]
        %v1336 = vld [vmem:[%s1332 + $0xc] sm:$0xf]
        %v1337 = vld [vmem:[%s1332 + $0x10] sm:$0xf]
        %v1338 = vld [vmem:[%s1332 + $0x14] sm:$0xf]
        %v1339 = vld [vmem:[%s1332 + $0x18] sm:$0xf]
        %v1340 = vld [vmem:[%s1332 + $0x1c] sm:$0xf]
        %v1341 = vld [vmem:[%s1332 + $0x20] sm:$0xf]
        %v1342 = vld [vmem:[%s1332 + $0x24] sm:$0xf]
        %v1343 = vld [vmem:[%s1332 + $0x28] sm:$0xf]
        %v1344 = vld [vmem:[%s1332 + $0x2c] sm:$0xf]
        %v1345 = vld [vmem:[%s1332 + $0x30] sm:$0xf]
        %v1346 = vld [vmem:[%s1332 + $0x34] sm:$0xf]
        %v1347 = vld [vmem:[%s1332 + $0x38] sm:$0xf]
        %v1348 = vld [vmem:[%s1332 + $0x3c] sm:$0xf]
        %v1365 = vunpack.c.l.b16 %v1292
        %v1366 = vunpack.c.l.b16 %v1293
        %v1367 = vunpack.c.l.b16 %v1295
        %v1368 = vunpack.c.l.b16 %v1296
        %v1369 = vunpack.c.l.b16 %v1298
        %v1370 = vunpack.c.l.b16 %v1299
        %v1371 = vunpack.c.l.b16 %v1301
        %v1372 = vunpack.c.l.b16 %v1302
        %v1373 = vunpack.c.l.b16 %v1304
        %v1374 = vunpack.c.l.b16 %v1305
        %v1375 = vunpack.c.l.b16 %v1307
        %v1376 = vunpack.c.l.b16 %v1308
        %v1377 = vunpack.c.l.b16 %v1310
        %v1378 = vunpack.c.l.b16 %v1311
        %v1379 = vunpack.c.l.b16 %v1313
        %v1380 = vunpack.c.l.b16 %v1314
        %v1381 = vpack.c.b16 %v1366, %v1365
        %v1382 = vpack.c.b16 %v1368, %v1367
        %v1383 = vpack.c.b16 %v1370, %v1369
        %v1384 = vpack.c.b16 %v1372, %v1371
        %v1385 = vpack.c.b16 %v1374, %v1373
        %v1386 = vpack.c.b16 %v1376, %v1375
        %v1387 = vpack.c.b16 %v1378, %v1377
        %v1388 = vpack.c.b16 %v1380, %v1379
        %v1413 = vunpack.c.l.b16 %v1333
        %v1414 = vunpack.c.l.b16 %v1334
        %v1415 = vunpack.c.l.b16 %v1335
        %v1416 = vunpack.c.l.b16 %v1336
        %v1417 = vunpack.c.l.b16 %v1337
        %v1418 = vunpack.c.l.b16 %v1338
        %v1419 = vunpack.c.l.b16 %v1339
        %v1420 = vunpack.c.l.b16 %v1340
        %v1421 = vunpack.c.l.b16 %v1341
        %v1422 = vunpack.c.l.b16 %v1342
        %v1423 = vunpack.c.l.b16 %v1343
        %v1424 = vunpack.c.l.b16 %v1344
        %v1425 = vunpack.c.l.b16 %v1345
        %v1426 = vunpack.c.l.b16 %v1346
        %v1427 = vunpack.c.l.b16 %v1347
        %v1428 = vunpack.c.l.b16 %v1348
        %v1429 = vpack.c.b16 %v1414, %v1413
        %v1430 = vpack.c.b16 %v1416, %v1415
        %v1431 = vpack.c.b16 %v1418, %v1417
        %v1432 = vpack.c.b16 %v1420, %v1419
        %v1433 = vpack.c.b16 %v1422, %v1421
        %v1434 = vpack.c.b16 %v1424, %v1423
        %v1435 = vpack.c.b16 %v1426, %v1425
        %v1436 = vpack.c.b16 %v1428, %v1427
        %1445 = vmatprep.subr.bf16.mxu0 0
        %1446 = vmatpush1.bf16.msra.mxu0 %v1429
        %1447 = vmatprep.subr.bf16.mxu0 0
        %1448 = vmatpush1.bf16.msra.mxu0 %v1430
        %1449 = vmatprep.subr.bf16.mxu0 0
        %1450 = vmatpush1.bf16.msra.mxu0 %v1431
        %1451 = vmatprep.subr.bf16.mxu0 0
        %1452 = vmatpush1.bf16.msra.mxu0 %v1432
        %1453 = vmatprep.subr.bf16.mxu0 0
        %1454 = vmatpush1.bf16.msra.mxu0 %v1433
        %1455 = vmatprep.subr.bf16.mxu0 0
        %1456 = vmatpush1.bf16.msra.mxu0 %v1434
        %1457 = vmatprep.subr.bf16.mxu0 0
        %1458 = vmatpush1.bf16.msra.mxu0 %v1435
        %1459 = vmatprep.subr.bf16.mxu0 0
        %1460 = vmatpush1.bf16.msra.mxu0 %v1436
        %1461 = vmatprep.subr.bf16.mxu0 0
        %1462 = vmatpush1.bf16.msra.mxu0 0
        %1463 = vmatprep.subr.bf16.mxu0 0
        %1464 = vmatpush1.bf16.msra.mxu0 0
        %1465 = vmatprep.subr.bf16.mxu0 0
        %1466 = vmatpush1.bf16.msra.mxu0 0
        %1467 = vmatprep.subr.bf16.mxu0 0
        %1468 = vmatpush1.bf16.msra.mxu0 0
        %1469 = vmatprep.subr.bf16.mxu0 0
        %1470 = vmatpush1.bf16.msra.mxu0 0
        %1471 = vmatprep.subr.bf16.mxu0 0
        %1472 = vmatpush1.bf16.msra.mxu0 0
        %1473 = vmatprep.subr.bf16.mxu0 0
        %1474 = vmatpush1.bf16.msra.mxu0 0
        %1475 = vmatprep.subr.bf16.mxu0 0
        %1476 = vmatpush1.bf16.msra.mxu0 0
        %1477 = vmatprep.mubr.bf16.mxu0 0
        %1478 = vmatmul.mubr.bf16.gmra.mrb[0].mxu0 %v1381
        %v1479 = vpop.f32.mrb[0].mxu0
        %v1480 = vadd.f32 0.0, %v1479
        %v1481 = vpop.f32.mrb[0].mxu0
        %v1482 = vpop.f32.mrb[0].mxu0
        %v1483 = vadd.f32 0.0, %v1482
        %v1484 = vpop.f32.mrb[0].mxu0
        %1485 = vmatprep.mubr.bf16.mxu0 0
        %1486 = vmatmul.mubr.bf16.gmra.mrb[0].mxu0 %v1382
        %v1487 = vpop.f32.mrb[0].mxu0
        %v1488 = vadd.f32 0.0, %v1487
        %v1489 = vpop.f32.mrb[0].mxu0
        %v1490 = vpop.f32.mrb[0].mxu0
        %v1491 = vadd.f32 0.0, %v1490
        %v1492 = vpop.f32.mrb[0].mxu0
        %1493 = vmatprep.mubr.bf16.mxu0 0
        %1494 = vmatmul.mubr.bf16.gmra.mrb[0].mxu0 %v1383
        %v1495 = vpop.f32.mrb[0].mxu0
        %v1496 = vadd.f32 0.0, %v1495
        %v1497 = vpop.f32.mrb[0].mxu0
        %v1498 = vpop.f32.mrb[0].mxu0
        %v1499 = vadd.f32 0.0, %v1498
        %v1500 = vpop.f32.mrb[0].mxu0
        %1501 = vmatprep.mubr.bf16.mxu0 0
        %1502 = vmatmul.mubr.bf16.gmra.mrb[0].mxu0 %v1384
        %v1503 = vpop.f32.mrb[0].mxu0
        %v1504 = vadd.f32 0.0, %v1503
        %v1505 = vpop.f32.mrb[0].mxu0
        %v1506 = vpop.f32.mrb[0].mxu0
        %v1507 = vadd.f32 0.0, %v1506
        %v1508 = vpop.f32.mrb[0].mxu0
        %1509 = vmatprep.mubr.bf16.mxu0 0
        %1510 = vmatmul.mubr.bf16.gmra.mrb[0].mxu0 %v1385
        %v1511 = vpop.f32.mrb[0].mxu0
        %v1512 = vadd.f32 0.0, %v1511
        %v1513 = vpop.f32.mrb[0].mxu0
        %v1514 = vpop.f32.mrb[0].mxu0
        %v1515 = vadd.f32 0.0, %v1514
        %v1516 = vpop.f32.mrb[0].mxu0
        %1517 = vmatprep.mubr.bf16.mxu0 0
        %1518 = vmatmul.mubr.bf16.gmra.mrb[0].mxu0 %v1386
        %v1519 = vpop.f32.mrb[0].mxu0
        %v1520 = vadd.f32 0.0, %v1519
        %v1521 = vpop.f32.mrb[0].mxu0
        %v1522 = vpop.f32.mrb[0].mxu0
        %v1523 = vadd.f32 0.0, %v1522
        %v1524 = vpop.f32.mrb[0].mxu0
        %1525 = vmatprep.mubr.bf16.mxu0 0
        %1526 = vmatmul.mubr.bf16.gmra.mrb[0].mxu0 %v1387
        %v1527 = vpop.f32.mrb[0].mxu0
        %v1528 = vadd.f32 0.0, %v1527
        %v1529 = vpop.f32.mrb[0].mxu0
        %v1530 = vpop.f32.mrb[0].mxu0
        %v1531 = vadd.f32 0.0, %v1530
        %v1532 = vpop.f32.mrb[0].mxu0
        %1533 = vmatprep.mubr.bf16.mxu0 0
        %1534 = vmatmul.mubr.bf16.gmra.mrb[0].mxu0 %v1388
        %v1535 = vpop.f32.mrb[0].mxu0
        %v1536 = vadd.f32 0.0, %v1535
        %v1537 = vpop.f32.mrb[0].mxu0
        %v1538 = vpop.f32.mrb[0].mxu0
        %v1539 = vadd.f32 0.0, %v1538
        %v1540 = vpop.f32.mrb[0].mxu0
        %1541 = vdwg.mxu0
        %v1542 = vadd.f32 %v1316, %v1480
        %v1543 = vadd.f32 %v1317, %v1483
        %v1544 = vadd.f32 %v1318, %v1488
        %v1545 = vadd.f32 %v1319, %v1491
        %v1546 = vadd.f32 %v1320, %v1496
        %v1547 = vadd.f32 %v1321, %v1499
        %v1548 = vadd.f32 %v1322, %v1504
        %v1549 = vadd.f32 %v1323, %v1507
        %v1550 = vadd.f32 %v1324, %v1512
        %v1551 = vadd.f32 %v1325, %v1515
        %v1552 = vadd.f32 %v1326, %v1520
        %v1553 = vadd.f32 %v1327, %v1523
        %v1554 = vadd.f32 %v1328, %v1528
        %v1555 = vadd.f32 %v1329, %v1531
        %v1556 = vadd.f32 %v1330, %v1536
        %v1557 = vadd.f32 %v1331, %v1539
        %1558 = vst [vmem:[#allocation2] sm:$0xff] %v1542
        %1559 = vst [vmem:[#allocation2 + $0x8] sm:$0xff] %v1543
        %1560 = vst [vmem:[#allocation2 + $0x10] sm:$0xff] %v1544
        %1561 = vst [vmem:[#allocation2 + $0x18] sm:$0xff] %v1545
        %1562 = vst [vmem:[#allocation2 + $0x20] sm:$0xff] %v1546
        %1563 = vst [vmem:[#allocation2 + $0x28] sm:$0xff] %v1547
        %1564 = vst [vmem:[#allocation2 + $0x30] sm:$0xff] %v1548
        %1565 = vst [vmem:[#allocation2 + $0x38] sm:$0xff] %v1549
        %1566 = vst [vmem:[#allocation2 + $0x40] sm:$0xff] %v1550
        %1567 = vst [vmem:[#allocation2 + $0x48] sm:$0xff] %v1551
        %1568 = vst [vmem:[#allocation2 + $0x50] sm:$0xff] %v1552
        %1569 = vst [vmem:[#allocation2 + $0x58] sm:$0xff] %v1553
        %1570 = vst [vmem:[#allocation2 + $0x60] sm:$0xff] %v1554
        %1571 = vst [vmem:[#allocation2 + $0x68] sm:$0xff] %v1555
        %1572 = vst [vmem:[#allocation2 + $0x70] sm:$0xff] %v1556
        %1573 = vst [vmem:[#allocation2 + $0x78] sm:$0xff] %v1557
        %v1575 = vshrl.u32 %v1292, 16
        %v1577 = vrot.slane %v1575, 4
        %v1578 = vshll.u32 %v1292, 16
        %v1580 = vrot.slane %v1578, 5
        %v1581 = vor.u32 %v1577, %v1580
        %v1582 = vrot.slane %v1581, 4
        %v1584 = vshll.u32 %v1293, 16
        %v1586 = vrot.slane %v1584, 5
        %v1587 = vsel %vm544, %v1582, %v1586
        %v1588 = vshrl.u32 %v1293, 16
        %v1590 = vrot.slane %v1588, 4
        %v1591 = vor.u32 %v1590, %v1586
        %v1592 = vrot.slane %v1591, 4
        %v1594 = vshll.u32 %v1294, 16
        %v1596 = vrot.slane %v1594, 5
        %v1597 = vsel %vm544, %v1592, %v1596
        %v1599 = vshrl.u32 %v1295, 16
        %v1601 = vrot.slane %v1599, 4
        %v1602 = vshll.u32 %v1295, 16
        %v1604 = vrot.slane %v1602, 5
        %v1605 = vor.u32 %v1601, %v1604
        %v1606 = vrot.slane %v1605, 4
        %v1608 = vshll.u32 %v1296, 16
        %v1610 = vrot.slane %v1608, 5
        %v1611 = vsel %vm544, %v1606, %v1610
        %v1612 = vshrl.u32 %v1296, 16
        %v1614 = vrot.slane %v1612, 4
        %v1615 = vor.u32 %v1614, %v1610
        %v1616 = vrot.slane %v1615, 4
        %v1618 = vshll.u32 %v1297, 16
        %v1620 = vrot.slane %v1618, 5
        %v1621 = vsel %vm544, %v1616, %v1620
        %v1623 = vshrl.u32 %v1298, 16
        %v1625 = vrot.slane %v1623, 4
        %v1626 = vshll.u32 %v1298, 16
        %v1628 = vrot.slane %v1626, 5
        %v1629 = vor.u32 %v1625, %v1628
        %v1630 = vrot.slane %v1629, 4
        %v1632 = vshll.u32 %v1299, 16
        %v1634 = vrot.slane %v1632, 5
        %v1635 = vsel %vm544, %v1630, %v1634
        %v1636 = vshrl.u32 %v1299, 16
        %v1638 = vrot.slane %v1636, 4
        %v1639 = vor.u32 %v1638, %v1634
        %v1640 = vrot.slane %v1639, 4
        %v1642 = vshll.u32 %v1300, 16
        %v1644 = vrot.slane %v1642, 5
        %v1645 = vsel %vm544, %v1640, %v1644
        %v1647 = vshrl.u32 %v1301, 16
        %v1649 = vrot.slane %v1647, 4
        %v1650 = vshll.u32 %v1301, 16
        %v1652 = vrot.slane %v1650, 5
        %v1653 = vor.u32 %v1649, %v1652
        %v1654 = vrot.slane %v1653, 4
        %v1656 = vshll.u32 %v1302, 16
        %v1658 = vrot.slane %v1656, 5
        %v1659 = vsel %vm544, %v1654, %v1658
        %v1660 = vshrl.u32 %v1302, 16
        %v1662 = vrot.slane %v1660, 4
        %v1663 = vor.u32 %v1662, %v1658
        %v1664 = vrot.slane %v1663, 4
        %v1666 = vshll.u32 %v1303, 16
        %v1668 = vrot.slane %v1666, 5
        %v1669 = vsel %vm544, %v1664, %v1668
        %v1671 = vshrl.u32 %v1304, 16
        %v1673 = vrot.slane %v1671, 4
        %v1674 = vshll.u32 %v1304, 16
        %v1676 = vrot.slane %v1674, 5
        %v1677 = vor.u32 %v1673, %v1676
        %v1678 = vrot.slane %v1677, 4
        %v1680 = vshll.u32 %v1305, 16
        %v1682 = vrot.slane %v1680, 5
        %v1683 = vsel %vm544, %v1678, %v1682
        %v1684 = vshrl.u32 %v1305, 16
        %v1686 = vrot.slane %v1684, 4
        %v1687 = vor.u32 %v1686, %v1682
        %v1688 = vrot.slane %v1687, 4
        %v1690 = vshll.u32 %v1306, 16
        %v1692 = vrot.slane %v1690, 5
        %v1693 = vsel %vm544, %v1688, %v1692
        %v1695 = vshrl.u32 %v1307, 16
        %v1697 = vrot.slane %v1695, 4
        %v1698 = vshll.u32 %v1307, 16
        %v1700 = vrot.slane %v1698, 5
        %v1701 = vor.u32 %v1697, %v1700
        %v1702 = vrot.slane %v1701, 4
        %v1704 = vshll.u32 %v1308, 16
        %v1706 = vrot.slane %v1704, 5
        %v1707 = vsel %vm544, %v1702, %v1706
        %v1708 = vshrl.u32 %v1308, 16
        %v1710 = vrot.slane %v1708, 4
        %v1711 = vor.u32 %v1710, %v1706
        %v1712 = vrot.slane %v1711, 4
        %v1714 = vshll.u32 %v1309, 16
        %v1716 = vrot.slane %v1714, 5
        %v1717 = vsel %vm544, %v1712, %v1716
        %v1719 = vshrl.u32 %v1310, 16
        %v1721 = vrot.slane %v1719, 4
        %v1722 = vshll.u32 %v1310, 16
        %v1724 = vrot.slane %v1722, 5
        %v1725 = vor.u32 %v1721, %v1724
        %v1726 = vrot.slane %v1725, 4
        %v1728 = vshll.u32 %v1311, 16
        %v1730 = vrot.slane %v1728, 5
        %v1731 = vsel %vm544, %v1726, %v1730
        %v1732 = vshrl.u32 %v1311, 16
        %v1734 = vrot.slane %v1732, 4
        %v1735 = vor.u32 %v1734, %v1730
        %v1736 = vrot.slane %v1735, 4
        %v1738 = vshll.u32 %v1312, 16
        %v1740 = vrot.slane %v1738, 5
        %v1741 = vsel %vm544, %v1736, %v1740
        %v1743 = vshrl.u32 %v1313, 16
        %v1745 = vrot.slane %v1743, 4
        %v1746 = vshll.u32 %v1313, 16
        %v1748 = vrot.slane %v1746, 5
        %v1749 = vor.u32 %v1745, %v1748
        %v1750 = vrot.slane %v1749, 4
        %v1752 = vshll.u32 %v1314, 16
        %v1754 = vrot.slane %v1752, 5
        %v1755 = vsel %vm544, %v1750, %v1754
        %v1756 = vshrl.u32 %v1314, 16
        %v1758 = vrot.slane %v1756, 4
        %v1759 = vor.u32 %v1758, %v1754
        %v1760 = vrot.slane %v1759, 4
        %v1762 = vshll.u32 %v1315, 16
        %v1764 = vrot.slane %v1762, 5
        %v1765 = vsel %vm544, %v1760, %v1764
        %v1766 = vld [vmem:[#allocation2] sm:$0xff]
        %v1767 = vld [vmem:[#allocation2 + $0x8] sm:$0xff]
        %v1768 = vld [vmem:[#allocation2 + $0x10] sm:$0xff]
        %v1769 = vld [vmem:[#allocation2 + $0x18] sm:$0xff]
        %v1770 = vld [vmem:[#allocation2 + $0x20] sm:$0xff]
        %v1771 = vld [vmem:[#allocation2 + $0x28] sm:$0xff]
        %v1772 = vld [vmem:[#allocation2 + $0x30] sm:$0xff]
        %v1773 = vld [vmem:[#allocation2 + $0x38] sm:$0xff]
        %v1774 = vld [vmem:[#allocation2 + $0x40] sm:$0xff]
        %v1775 = vld [vmem:[#allocation2 + $0x48] sm:$0xff]
        %v1776 = vld [vmem:[#allocation2 + $0x50] sm:$0xff]
        %v1777 = vld [vmem:[#allocation2 + $0x58] sm:$0xff]
        %v1778 = vld [vmem:[#allocation2 + $0x60] sm:$0xff]
        %v1779 = vld [vmem:[#allocation2 + $0x68] sm:$0xff]
        %v1780 = vld [vmem:[#allocation2 + $0x70] sm:$0xff]
        %v1781 = vld [vmem:[#allocation2 + $0x78] sm:$0xff]
        %s1782 = scalar_lea.vmem [#allocation6], 256
        %v1783 = vld [vmem:[%s1782] sm:$0xf]
        %v1784 = vld [vmem:[%s1782 + $0x4] sm:$0xf]
        %v1785 = vld [vmem:[%s1782 + $0x8] sm:$0xf]
        %v1786 = vld [vmem:[%s1782 + $0xc] sm:$0xf]
        %v1787 = vld [vmem:[%s1782 + $0x10] sm:$0xf]
        %v1788 = vld [vmem:[%s1782 + $0x14] sm:$0xf]
        %v1789 = vld [vmem:[%s1782 + $0x18] sm:$0xf]
        %v1790 = vld [vmem:[%s1782 + $0x1c] sm:$0xf]
        %v1791 = vld [vmem:[%s1782 + $0x20] sm:$0xf]
        %v1792 = vld [vmem:[%s1782 + $0x24] sm:$0xf]
        %v1793 = vld [vmem:[%s1782 + $0x28] sm:$0xf]
        %v1794 = vld [vmem:[%s1782 + $0x2c] sm:$0xf]
        %v1795 = vld [vmem:[%s1782 + $0x30] sm:$0xf]
        %v1796 = vld [vmem:[%s1782 + $0x34] sm:$0xf]
        %v1797 = vld [vmem:[%s1782 + $0x38] sm:$0xf]
        %v1798 = vld [vmem:[%s1782 + $0x3c] sm:$0xf]
        %v1799 = vunpack.c.l.b16 %v1587
        %v1800 = vunpack.c.l.b16 %v1597
        %v1801 = vunpack.c.l.b16 %v1611
        %v1802 = vunpack.c.l.b16 %v1621
        %v1803 = vunpack.c.l.b16 %v1635
        %v1804 = vunpack.c.l.b16 %v1645
        %v1805 = vunpack.c.l.b16 %v1659
        %v1806 = vunpack.c.l.b16 %v1669
        %v1807 = vunpack.c.l.b16 %v1683
        %v1808 = vunpack.c.l.b16 %v1693
        %v1809 = vunpack.c.l.b16 %v1707
        %v1810 = vunpack.c.l.b16 %v1717
        %v1811 = vunpack.c.l.b16 %v1731
        %v1812 = vunpack.c.l.b16 %v1741
        %v1813 = vunpack.c.l.b16 %v1755
        %v1814 = vunpack.c.l.b16 %v1765
        %v1815 = vpack.c.b16 %v1800, %v1799
        %v1816 = vpack.c.b16 %v1802, %v1801
        %v1817 = vpack.c.b16 %v1804, %v1803
        %v1818 = vpack.c.b16 %v1806, %v1805
        %v1819 = vpack.c.b16 %v1808, %v1807
        %v1820 = vpack.c.b16 %v1810, %v1809
        %v1821 = vpack.c.b16 %v1812, %v1811
        %v1822 = vpack.c.b16 %v1814, %v1813
        %v1847 = vunpack.c.l.b16 %v1783
        %v1848 = vunpack.c.l.b16 %v1784
        %v1849 = vunpack.c.l.b16 %v1785
        %v1850 = vunpack.c.l.b16 %v1786
        %v1851 = vunpack.c.l.b16 %v1787
        %v1852 = vunpack.c.l.b16 %v1788
        %v1853 = vunpack.c.l.b16 %v1789
        %v1854 = vunpack.c.l.b16 %v1790
        %v1855 = vunpack.c.l.b16 %v1791
        %v1856 = vunpack.c.l.b16 %v1792
        %v1857 = vunpack.c.l.b16 %v1793
        %v1858 = vunpack.c.l.b16 %v1794
        %v1859 = vunpack.c.l.b16 %v1795
        %v1860 = vunpack.c.l.b16 %v1796
        %v1861 = vunpack.c.l.b16 %v1797
        %v1862 = vunpack.c.l.b16 %v1798
        %v1863 = vpack.c.b16 %v1848, %v1847
        %v1864 = vpack.c.b16 %v1850, %v1849
        %v1865 = vpack.c.b16 %v1852, %v1851
        %v1866 = vpack.c.b16 %v1854, %v1853
        %v1867 = vpack.c.b16 %v1856, %v1855
        %v1868 = vpack.c.b16 %v1858, %v1857
        %v1869 = vpack.c.b16 %v1860, %v1859
        %v1870 = vpack.c.b16 %v1862, %v1861
        %1879 = vmatprep.subr.bf16.mxu0 0
        %1880 = vmatpush1.bf16.msra.mxu0 %v1863
        %1881 = vmatprep.subr.bf16.mxu0 0
        %1882 = vmatpush1.bf16.msra.mxu0 %v1864
        %1883 = vmatprep.subr.bf16.mxu0 0
        %1884 = vmatpush1.bf16.msra.mxu0 %v1865
        %1885 = vmatprep.subr.bf16.mxu0 0
        %1886 = vmatpush1.bf16.msra.mxu0 %v1866
        %1887 = vmatprep.subr.bf16.mxu0 0
        %1888 = vmatpush1.bf16.msra.mxu0 %v1867
        %1889 = vmatprep.subr.bf16.mxu0 0
        %1890 = vmatpush1.bf16.msra.mxu0 %v1868
        %1891 = vmatprep.subr.bf16.mxu0 0
        %1892 = vmatpush1.bf16.msra.mxu0 %v1869
        %1893 = vmatprep.subr.bf16.mxu0 0
        %1894 = vmatpush1.bf16.msra.mxu0 %v1870
        %1895 = vmatprep.subr.bf16.mxu0 0
        %1896 = vmatpush1.bf16.msra.mxu0 0
        %1897 = vmatprep.subr.bf16.mxu0 0
        %1898 = vmatpush1.bf16.msra.mxu0 0
        %1899 = vmatprep.subr.bf16.mxu0 0
        %1900 = vmatpush1.bf16.msra.mxu0 0
        %1901 = vmatprep.subr.bf16.mxu0 0
        %1902 = vmatpush1.bf16.msra.mxu0 0
        %1903 = vmatprep.subr.bf16.mxu0 0
        %1904 = vmatpush1.bf16.msra.mxu0 0
        %1905 = vmatprep.subr.bf16.mxu0 0
        %1906 = vmatpush1.bf16.msra.mxu0 0
        %1907 = vmatprep.subr.bf16.mxu0 0
        %1908 = vmatpush1.bf16.msra.mxu0 0
        %1909 = vmatprep.subr.bf16.mxu0 0
        %1910 = vmatpush1.bf16.msra.mxu0 0
        %1911 = vmatprep.mubr.bf16.mxu0 0
        %1912 = vmatmul.mubr.bf16.gmra.mrb[0].mxu0 %v1815
        %v1913 = vpop.f32.mrb[0].mxu0
        %v1914 = vadd.f32 0.0, %v1913
        %v1915 = vpop.f32.mrb[0].mxu0
        %v1916 = vpop.f32.mrb[0].mxu0
        %v1917 = vadd.f32 0.0, %v1916
        %v1918 = vpop.f32.mrb[0].mxu0
        %1919 = vmatprep.mubr.bf16.mxu0 0
        %1920 = vmatmul.mubr.bf16.gmra.mrb[0].mxu0 %v1816
        %v1921 = vpop.f32.mrb[0].mxu0
        %v1922 = vadd.f32 0.0, %v1921
        %v1923 = vpop.f32.mrb[0].mxu0
        %v1924 = vpop.f32.mrb[0].mxu0
        %v1925 = vadd.f32 0.0, %v1924
        %v1926 = vpop.f32.mrb[0].mxu0
        %1927 = vmatprep.mubr.bf16.mxu0 0
        %1928 = vmatmul.mubr.bf16.gmra.mrb[0].mxu0 %v1817
        %v1929 = vpop.f32.mrb[0].mxu0
        %v1930 = vadd.f32 0.0, %v1929
        %v1931 = vpop.f32.mrb[0].mxu0
        %v1932 = vpop.f32.mrb[0].mxu0
        %v1933 = vadd.f32 0.0, %v1932
        %v1934 = vpop.f32.mrb[0].mxu0
        %1935 = vmatprep.mubr.bf16.mxu0 0
        %1936 = vmatmul.mubr.bf16.gmra.mrb[0].mxu0 %v1818
        %v1937 = vpop.f32.mrb[0].mxu0
        %v1938 = vadd.f32 0.0, %v1937
        %v1939 = vpop.f32.mrb[0].mxu0
        %v1940 = vpop.f32.mrb[0].mxu0
        %v1941 = vadd.f32 0.0, %v1940
        %v1942 = vpop.f32.mrb[0].mxu0
        %1943 = vmatprep.mubr.bf16.mxu0 0
        %1944 = vmatmul.mubr.bf16.gmra.mrb[0].mxu0 %v1819
        %v1945 = vpop.f32.mrb[0].mxu0
        %v1946 = vadd.f32 0.0, %v1945
        %v1947 = vpop.f32.mrb[0].mxu0
        %v1948 = vpop.f32.mrb[0].mxu0
        %v1949 = vadd.f32 0.0, %v1948
        %v1950 = vpop.f32.mrb[0].mxu0
        %1951 = vmatprep.mubr.bf16.mxu0 0
        %1952 = vmatmul.mubr.bf16.gmra.mrb[0].mxu0 %v1820
        %v1953 = vpop.f32.mrb[0].mxu0
        %v1954 = vadd.f32 0.0, %v1953
        %v1955 = vpop.f32.mrb[0].mxu0
        %v1956 = vpop.f32.mrb[0].mxu0
        %v1957 = vadd.f32 0.0, %v1956
        %v1958 = vpop.f32.mrb[0].mxu0
        %1959 = vmatprep.mubr.bf16.mxu0 0
        %1960 = vmatmul.mubr.bf16.gmra.mrb[0].mxu0 %v1821
        %v1961 = vpop.f32.mrb[0].mxu0
        %v1962 = vadd.f32 0.0, %v1961
        %v1963 = vpop.f32.mrb[0].mxu0
        %v1964 = vpop.f32.mrb[0].mxu0
        %v1965 = vadd.f32 0.0, %v1964
        %v1966 = vpop.f32.mrb[0].mxu0
        %1967 = vmatprep.mubr.bf16.mxu0 0
        %1968 = vmatmul.mubr.bf16.gmra.mrb[0].mxu0 %v1822
        %v1969 = vpop.f32.mrb[0].mxu0
        %v1970 = vadd.f32 0.0, %v1969
        %v1971 = vpop.f32.mrb[0].mxu0
        %v1972 = vpop.f32.mrb[0].mxu0
        %v1973 = vadd.f32 0.0, %v1972
        %v1974 = vpop.f32.mrb[0].mxu0
        %1975 = vdwg.mxu0
        %v1976 = vadd.f32 %v1766, %v1914
        %v1977 = vadd.f32 %v1767, %v1917
        %v1978 = vadd.f32 %v1768, %v1922
        %v1979 = vadd.f32 %v1769, %v1925
        %v1980 = vadd.f32 %v1770, %v1930
        %v1981 = vadd.f32 %v1771, %v1933
        %v1982 = vadd.f32 %v1772, %v1938
        %v1983 = vadd.f32 %v1773, %v1941
        %v1984 = vadd.f32 %v1774, %v1946
        %v1985 = vadd.f32 %v1775, %v1949
        %v1986 = vadd.f32 %v1776, %v1954
        %v1987 = vadd.f32 %v1777, %v1957
        %v1988 = vadd.f32 %v1778, %v1962
        %v1989 = vadd.f32 %v1779, %v1965
        %v1990 = vadd.f32 %v1780, %v1970
        %v1991 = vadd.f32 %v1781, %v1973
        %1992 = vst [vmem:[#allocation2] sm:$0xff] %v1976
        %1993 = vst [vmem:[#allocation2 + $0x8] sm:$0xff] %v1977
        %1994 = vst [vmem:[#allocation2 + $0x10] sm:$0xff] %v1978
        %1995 = vst [vmem:[#allocation2 + $0x18] sm:$0xff] %v1979
        %1996 = vst [vmem:[#allocation2 + $0x20] sm:$0xff] %v1980
        %1997 = vst [vmem:[#allocation2 + $0x28] sm:$0xff] %v1981
        %1998 = vst [vmem:[#allocation2 + $0x30] sm:$0xff] %v1982
        %1999 = vst [vmem:[#allocation2 + $0x38] sm:$0xff] %v1983
        %2000 = vst [vmem:[#allocation2 + $0x40] sm:$0xff] %v1984
        %2001 = vst [vmem:[#allocation2 + $0x48] sm:$0xff] %v1985
        %2002 = vst [vmem:[#allocation2 + $0x50] sm:$0xff] %v1986
        %2003 = vst [vmem:[#allocation2 + $0x58] sm:$0xff] %v1987
        %2004 = vst [vmem:[#allocation2 + $0x60] sm:$0xff] %v1988
        %2005 = vst [vmem:[#allocation2 + $0x68] sm:$0xff] %v1989
        %2006 = vst [vmem:[#allocation2 + $0x70] sm:$0xff] %v1990
        %2007 = vst [vmem:[#allocation2 + $0x78] sm:$0xff] %v1991
        %v2016 = vrot.slane %v1292, 5
        %v2017 = vrot.slane %v2016, 4
        %v2018 = vrot.slane %v1293, 5
        %v2019 = vsel %vm989, %v2017, %v2018
        %v2020 = vrot.slane %v2018, 4
        %v2021 = vrot.slane %v1294, 5
        %v2022 = vsel %vm989, %v2020, %v2021
        %v2023 = vrot.slane %v1295, 5
        %v2024 = vrot.slane %v2023, 4
        %v2025 = vrot.slane %v1296, 5
        %v2026 = vsel %vm989, %v2024, %v2025
        %v2027 = vrot.slane %v2025, 4
        %v2028 = vrot.slane %v1297, 5
        %v2029 = vsel %vm989, %v2027, %v2028
        %v2030 = vrot.slane %v1298, 5
        %v2031 = vrot.slane %v2030, 4
        %v2032 = vrot.slane %v1299, 5
        %v2033 = vsel %vm989, %v2031, %v2032
        %v2034 = vrot.slane %v2032, 4
        %v2035 = vrot.slane %v1300, 5
        %v2036 = vsel %vm989, %v2034, %v2035
        %v2037 = vrot.slane %v1301, 5
        %v2038 = vrot.slane %v2037, 4
        %v2039 = vrot.slane %v1302, 5
        %v2040 = vsel %vm989, %v2038, %v2039
        %v2041 = vrot.slane %v2039, 4
        %v2042 = vrot.slane %v1303, 5
        %v2043 = vsel %vm989, %v2041, %v2042
        %v2044 = vrot.slane %v1304, 5
        %v2045 = vrot.slane %v2044, 4
        %v2046 = vrot.slane %v1305, 5
        %v2047 = vsel %vm989, %v2045, %v2046
        %v2048 = vrot.slane %v2046, 4
        %v2049 = vrot.slane %v1306, 5
        %v2050 = vsel %vm989, %v2048, %v2049
        %v2051 = vrot.slane %v1307, 5
        %v2052 = vrot.slane %v2051, 4
        %v2053 = vrot.slane %v1308, 5
        %v2054 = vsel %vm989, %v2052, %v2053
        %v2055 = vrot.slane %v2053, 4
        %v2056 = vrot.slane %v1309, 5
        %v2057 = vsel %vm989, %v2055, %v2056
        %v2058 = vrot.slane %v1310, 5
        %v2059 = vrot.slane %v2058, 4
        %v2060 = vrot.slane %v1311, 5
        %v2061 = vsel %vm989, %v2059, %v2060
        %v2062 = vrot.slane %v2060, 4
        %v2063 = vrot.slane %v1312, 5
        %v2064 = vsel %vm989, %v2062, %v2063
        %v2065 = vrot.slane %v1313, 5
        %v2066 = vrot.slane %v2065, 4
        %v2067 = vrot.slane %v1314, 5
        %v2068 = vsel %vm989, %v2066, %v2067
        %v2069 = vrot.slane %v2067, 4
        %v2070 = vrot.slane %v1315, 5
        %v2071 = vsel %vm989, %v2069, %v2070
        %v2072 = vld [vmem:[#allocation2] sm:$0xff]
        %v2073 = vld [vmem:[#allocation2 + $0x8] sm:$0xff]
        %v2074 = vld [vmem:[#allocation2 + $0x10] sm:$0xff]
        %v2075 = vld [vmem:[#allocation2 + $0x18] sm:$0xff]
        %v2076 = vld [vmem:[#allocation2 + $0x20] sm:$0xff]
        %v2077 = vld [vmem:[#allocation2 + $0x28] sm:$0xff]
        %v2078 = vld [vmem:[#allocation2 + $0x30] sm:$0xff]
        %v2079 = vld [vmem:[#allocation2 + $0x38] sm:$0xff]
        %v2080 = vld [vmem:[#allocation2 + $0x40] sm:$0xff]
        %v2081 = vld [vmem:[#allocation2 + $0x48] sm:$0xff]
        %v2082 = vld [vmem:[#allocation2 + $0x50] sm:$0xff]
        %v2083 = vld [vmem:[#allocation2 + $0x58] sm:$0xff]
        %v2084 = vld [vmem:[#allocation2 + $0x60] sm:$0xff]
        %v2085 = vld [vmem:[#allocation2 + $0x68] sm:$0xff]
        %v2086 = vld [vmem:[#allocation2 + $0x70] sm:$0xff]
        %v2087 = vld [vmem:[#allocation2 + $0x78] sm:$0xff]
        %s2088 = scalar_lea.vmem [#allocation6], 320
        %v2089 = vld [vmem:[%s2088] sm:$0xf]
        %v2090 = vld [vmem:[%s2088 + $0x4] sm:$0xf]
        %v2091 = vld [vmem:[%s2088 + $0x8] sm:$0xf]
        %v2092 = vld [vmem:[%s2088 + $0xc] sm:$0xf]
        %v2093 = vld [vmem:[%s2088 + $0x10] sm:$0xf]
        %v2094 = vld [vmem:[%s2088 + $0x14] sm:$0xf]
        %v2095 = vld [vmem:[%s2088 + $0x18] sm:$0xf]
        %v2096 = vld [vmem:[%s2088 + $0x1c] sm:$0xf]
        %v2097 = vld [vmem:[%s2088 + $0x20] sm:$0xf]
        %v2098 = vld [vmem:[%s2088 + $0x24] sm:$0xf]
        %v2099 = vld [vmem:[%s2088 + $0x28] sm:$0xf]
        %v2100 = vld [vmem:[%s2088 + $0x2c] sm:$0xf]
        %v2101 = vld [vmem:[%s2088 + $0x30] sm:$0xf]
        %v2102 = vld [vmem:[%s2088 + $0x34] sm:$0xf]
        %v2103 = vld [vmem:[%s2088 + $0x38] sm:$0xf]
        %v2104 = vld [vmem:[%s2088 + $0x3c] sm:$0xf]
        %v2105 = vunpack.c.l.b16 %v2019
        %v2106 = vunpack.c.l.b16 %v2022
        %v2107 = vunpack.c.l.b16 %v2026
        %v2108 = vunpack.c.l.b16 %v2029
        %v2109 = vunpack.c.l.b16 %v2033
        %v2110 = vunpack.c.l.b16 %v2036
        %v2111 = vunpack.c.l.b16 %v2040
        %v2112 = vunpack.c.l.b16 %v2043
        %v2113 = vunpack.c.l.b16 %v2047
        %v2114 = vunpack.c.l.b16 %v2050
        %v2115 = vunpack.c.l.b16 %v2054
        %v2116 = vunpack.c.l.b16 %v2057
        %v2117 = vunpack.c.l.b16 %v2061
        %v2118 = vunpack.c.l.b16 %v2064
        %v2119 = vunpack.c.l.b16 %v2068
        %v2120 = vunpack.c.l.b16 %v2071
        %v2121 = vpack.c.b16 %v2106, %v2105
        %v2122 = vpack.c.b16 %v2108, %v2107
        %v2123 = vpack.c.b16 %v2110, %v2109
        %v2124 = vpack.c.b16 %v2112, %v2111
        %v2125 = vpack.c.b16 %v2114, %v2113
        %v2126 = vpack.c.b16 %v2116, %v2115
        %v2127 = vpack.c.b16 %v2118, %v2117
        %v2128 = vpack.c.b16 %v2120, %v2119
        %v2153 = vunpack.c.l.b16 %v2089
        %v2154 = vunpack.c.l.b16 %v2090
        %v2155 = vunpack.c.l.b16 %v2091
        %v2156 = vunpack.c.l.b16 %v2092
        %v2157 = vunpack.c.l.b16 %v2093
        %v2158 = vunpack.c.l.b16 %v2094
        %v2159 = vunpack.c.l.b16 %v2095
        %v2160 = vunpack.c.l.b16 %v2096
        %v2161 = vunpack.c.l.b16 %v2097
        %v2162 = vunpack.c.l.b16 %v2098
        %v2163 = vunpack.c.l.b16 %v2099
        %v2164 = vunpack.c.l.b16 %v2100
        %v2165 = vunpack.c.l.b16 %v2101
        %v2166 = vunpack.c.l.b16 %v2102
        %v2167 = vunpack.c.l.b16 %v2103
        %v2168 = vunpack.c.l.b16 %v2104
        %v2169 = vpack.c.b16 %v2154, %v2153
        %v2170 = vpack.c.b16 %v2156, %v2155
        %v2171 = vpack.c.b16 %v2158, %v2157
        %v2172 = vpack.c.b16 %v2160, %v2159
        %v2173 = vpack.c.b16 %v2162, %v2161
        %v2174 = vpack.c.b16 %v2164, %v2163
        %v2175 = vpack.c.b16 %v2166, %v2165
        %v2176 = vpack.c.b16 %v2168, %v2167
        %2185 = vmatprep.subr.bf16.mxu0 0
        %2186 = vmatpush1.bf16.msra.mxu0 %v2169
        %2187 = vmatprep.subr.bf16.mxu0 0
        %2188 = vmatpush1.bf16.msra.mxu0 %v2170
        %2189 = vmatprep.subr.bf16.mxu0 0
        %2190 = vmatpush1.bf16.msra.mxu0 %v2171
        %2191 = vmatprep.subr.bf16.mxu0 0
        %2192 = vmatpush1.bf16.msra.mxu0 %v2172
        %2193 = vmatprep.subr.bf16.mxu0 0
        %2194 = vmatpush1.bf16.msra.mxu0 %v2173
        %2195 = vmatprep.subr.bf16.mxu0 0
        %2196 = vmatpush1.bf16.msra.mxu0 %v2174
        %2197 = vmatprep.subr.bf16.mxu0 0
        %2198 = vmatpush1.bf16.msra.mxu0 %v2175
        %2199 = vmatprep.subr.bf16.mxu0 0
        %2200 = vmatpush1.bf16.msra.mxu0 %v2176
        %2201 = vmatprep.subr.bf16.mxu0 0
        %2202 = vmatpush1.bf16.msra.mxu0 0
        %2203 = vmatprep.subr.bf16.mxu0 0
        %2204 = vmatpush1.bf16.msra.mxu0 0
        %2205 = vmatprep.subr.bf16.mxu0 0
        %2206 = vmatpush1.bf16.msra.mxu0 0
        %2207 = vmatprep.subr.bf16.mxu0 0
        %2208 = vmatpush1.bf16.msra.mxu0 0
        %2209 = vmatprep.subr.bf16.mxu0 0
        %2210 = vmatpush1.bf16.msra.mxu0 0
        %2211 = vmatprep.subr.bf16.mxu0 0
        %2212 = vmatpush1.bf16.msra.mxu0 0
        %2213 = vmatprep.subr.bf16.mxu0 0
        %2214 = vmatpush1.bf16.msra.mxu0 0
        %2215 = vmatprep.subr.bf16.mxu0 0
        %2216 = vmatpush1.bf16.msra.mxu0 0
        %2217 = vmatprep.mubr.bf16.mxu0 0
        %2218 = vmatmul.mubr.bf16.gmra.mrb[0].mxu0 %v2121
        %v2219 = vpop.f32.mrb[0].mxu0
        %v2220 = vadd.f32 0.0, %v2219
        %v2221 = vpop.f32.mrb[0].mxu0
        %v2222 = vpop.f32.mrb[0].mxu0
        %v2223 = vadd.f32 0.0, %v2222
        %v2224 = vpop.f32.mrb[0].mxu0
        %2225 = vmatprep.mubr.bf16.mxu0 0
        %2226 = vmatmul.mubr.bf16.gmra.mrb[0].mxu0 %v2122
        %v2227 = vpop.f32.mrb[0].mxu0
        %v2228 = vadd.f32 0.0, %v2227
        %v2229 = vpop.f32.mrb[0].mxu0
        %v2230 = vpop.f32.mrb[0].mxu0
        %v2231 = vadd.f32 0.0, %v2230
        %v2232 = vpop.f32.mrb[0].mxu0
        %2233 = vmatprep.mubr.bf16.mxu0 0
        %2234 = vmatmul.mubr.bf16.gmra.mrb[0].mxu0 %v2123
        %v2235 = vpop.f32.mrb[0].mxu0
        %v2236 = vadd.f32 0.0, %v2235
        %v2237 = vpop.f32.mrb[0].mxu0
        %v2238 = vpop.f32.mrb[0].mxu0
        %v2239 = vadd.f32 0.0, %v2238
        %v2240 = vpop.f32.mrb[0].mxu0
        %2241 = vmatprep.mubr.bf16.mxu0 0
        %2242 = vmatmul.mubr.bf16.gmra.mrb[0].mxu0 %v2124
        %v2243 = vpop.f32.mrb[0].mxu0
        %v2244 = vadd.f32 0.0, %v2243
        %v2245 = vpop.f32.mrb[0].mxu0
        %v2246 = vpop.f32.mrb[0].mxu0
        %v2247 = vadd.f32 0.0, %v2246
        %v2248 = vpop.f32.mrb[0].mxu0
        %2249 = vmatprep.mubr.bf16.mxu0 0
        %2250 = vmatmul.mubr.bf16.gmra.mrb[0].mxu0 %v2125
        %v2251 = vpop.f32.mrb[0].mxu0
        %v2252 = vadd.f32 0.0, %v2251
        %v2253 = vpop.f32.mrb[0].mxu0
        %v2254 = vpop.f32.mrb[0].mxu0
        %v2255 = vadd.f32 0.0, %v2254
        %v2256 = vpop.f32.mrb[0].mxu0
        %2257 = vmatprep.mubr.bf16.mxu0 0
        %2258 = vmatmul.mubr.bf16.gmra.mrb[0].mxu0 %v2126
        %v2259 = vpop.f32.mrb[0].mxu0
        %v2260 = vadd.f32 0.0, %v2259
        %v2261 = vpop.f32.mrb[0].mxu0
        %v2262 = vpop.f32.mrb[0].mxu0
        %v2263 = vadd.f32 0.0, %v2262
        %v2264 = vpop.f32.mrb[0].mxu0
        %2265 = vmatprep.mubr.bf16.mxu0 0
        %2266 = vmatmul.mubr.bf16.gmra.mrb[0].mxu0 %v2127
        %v2267 = vpop.f32.mrb[0].mxu0
        %v2268 = vadd.f32 0.0, %v2267
        %v2269 = vpop.f32.mrb[0].mxu0
        %v2270 = vpop.f32.mrb[0].mxu0
        %v2271 = vadd.f32 0.0, %v2270
        %v2272 = vpop.f32.mrb[0].mxu0
        %2273 = vmatprep.mubr.bf16.mxu0 0
        %2274 = vmatmul.mubr.bf16.gmra.mrb[0].mxu0 %v2128
        %v2275 = vpop.f32.mrb[0].mxu0
        %v2276 = vadd.f32 0.0, %v2275
        %v2277 = vpop.f32.mrb[0].mxu0
        %v2278 = vpop.f32.mrb[0].mxu0
        %v2279 = vadd.f32 0.0, %v2278
        %v2280 = vpop.f32.mrb[0].mxu0
        %2281 = vdwg.mxu0
        %v2282 = vadd.f32 %v2072, %v2220
        %v2283 = vadd.f32 %v2073, %v2223
        %v2284 = vadd.f32 %v2074, %v2228
        %v2285 = vadd.f32 %v2075, %v2231
        %v2286 = vadd.f32 %v2076, %v2236
        %v2287 = vadd.f32 %v2077, %v2239
        %v2288 = vadd.f32 %v2078, %v2244
        %v2289 = vadd.f32 %v2079, %v2247
        %v2290 = vadd.f32 %v2080, %v2252
        %v2291 = vadd.f32 %v2081, %v2255
        %v2292 = vadd.f32 %v2082, %v2260
        %v2293 = vadd.f32 %v2083, %v2263
        %v2294 = vadd.f32 %v2084, %v2268
        %v2295 = vadd.f32 %v2085, %v2271
        %v2296 = vadd.f32 %v2086, %v2276
        %v2297 = vadd.f32 %v2087, %v2279
        %2298 = vst [vmem:[#allocation2] sm:$0xff] %v2282
        %2299 = vst [vmem:[#allocation2 + $0x8] sm:$0xff] %v2283
        %2300 = vst [vmem:[#allocation2 + $0x10] sm:$0xff] %v2284
        %2301 = vst [vmem:[#allocation2 + $0x18] sm:$0xff] %v2285
        %2302 = vst [vmem:[#allocation2 + $0x20] sm:$0xff] %v2286
        %2303 = vst [vmem:[#allocation2 + $0x28] sm:$0xff] %v2287
        %2304 = vst [vmem:[#allocation2 + $0x30] sm:$0xff] %v2288
        %2305 = vst [vmem:[#allocation2 + $0x38] sm:$0xff] %v2289
        %2306 = vst [vmem:[#allocation2 + $0x40] sm:$0xff] %v2290
        %2307 = vst [vmem:[#allocation2 + $0x48] sm:$0xff] %v2291
        %2308 = vst [vmem:[#allocation2 + $0x50] sm:$0xff] %v2292
        %2309 = vst [vmem:[#allocation2 + $0x58] sm:$0xff] %v2293
        %2310 = vst [vmem:[#allocation2 + $0x60] sm:$0xff] %v2294
        %2311 = vst [vmem:[#allocation2 + $0x68] sm:$0xff] %v2295
        %2312 = vst [vmem:[#allocation2 + $0x70] sm:$0xff] %v2296
        %2313 = vst [vmem:[#allocation2 + $0x78] sm:$0xff] %v2297
        %s2314 = sadd.s32 %s241, 2
        %s2315 = smul.u32 %s2314, 3
        %s2316 = smul.addr %s2315, 4
        %s2317 = scalar_lea.vmem %s203, %s2316 [#allocation3]
        %v2318 = vld [vmem:[%s2317] sm:$0xf]
        %v2319 = vld [vmem:[%s2317 + $0x4] sm:$0xf]
        %v2320 = vld [vmem:[%s2317 + $0x8] sm:$0x1]
        %v2321 = vld [vmem:[%s2317 + $0xc] sm:$0xf]
        %v2322 = vld [vmem:[%s2317 + $0x10] sm:$0xf]
        %v2323 = vld [vmem:[%s2317 + $0x14] sm:$0x1]
        %v2324 = vld [vmem:[%s2317 + $0x18] sm:$0xf]
        %v2325 = vld [vmem:[%s2317 + $0x1c] sm:$0xf]
        %v2326 = vld [vmem:[%s2317 + $0x20] sm:$0x1]
        %v2327 = vld [vmem:[%s2317 + $0x24] sm:$0xf]
        %v2328 = vld [vmem:[%s2317 + $0x28] sm:$0xf]
        %v2329 = vld [vmem:[%s2317 + $0x2c] sm:$0x1]
        %v2330 = vld [vmem:[%s2317 + $0x30] sm:$0xf]
        %v2331 = vld [vmem:[%s2317 + $0x34] sm:$0xf]
        %v2332 = vld [vmem:[%s2317 + $0x38] sm:$0x1]
        %v2333 = vld [vmem:[%s2317 + $0x3c] sm:$0xf]
        %v2334 = vld [vmem:[%s2317 + $0x40] sm:$0xf]
        %v2335 = vld [vmem:[%s2317 + $0x44] sm:$0x1]
        %v2336 = vld [vmem:[%s2317 + $0x48] sm:$0xf]
        %v2337 = vld [vmem:[%s2317 + $0x4c] sm:$0xf]
        %v2338 = vld [vmem:[%s2317 + $0x50] sm:$0x1]
        %v2339 = vld [vmem:[%s2317 + $0x54] sm:$0xf]
        %v2340 = vld [vmem:[%s2317 + $0x58] sm:$0xf]
        %v2341 = vld [vmem:[%s2317 + $0x5c] sm:$0x1]
        %v2342 = vld [vmem:[#allocation2] sm:$0xff]
        %v2343 = vld [vmem:[#allocation2 + $0x8] sm:$0xff]
        %v2344 = vld [vmem:[#allocation2 + $0x10] sm:$0xff]
        %v2345 = vld [vmem:[#allocation2 + $0x18] sm:$0xff]
        %v2346 = vld [vmem:[#allocation2 + $0x20] sm:$0xff]
        %v2347 = vld [vmem:[#allocation2 + $0x28] sm:$0xff]
        %v2348 = vld [vmem:[#allocation2 + $0x30] sm:$0xff]
        %v2349 = vld [vmem:[#allocation2 + $0x38] sm:$0xff]
        %v2350 = vld [vmem:[#allocation2 + $0x40] sm:$0xff]
        %v2351 = vld [vmem:[#allocation2 + $0x48] sm:$0xff]
        %v2352 = vld [vmem:[#allocation2 + $0x50] sm:$0xff]
        %v2353 = vld [vmem:[#allocation2 + $0x58] sm:$0xff]
        %v2354 = vld [vmem:[#allocation2 + $0x60] sm:$0xff]
        %v2355 = vld [vmem:[#allocation2 + $0x68] sm:$0xff]
        %v2356 = vld [vmem:[#allocation2 + $0x70] sm:$0xff]
        %v2357 = vld [vmem:[#allocation2 + $0x78] sm:$0xff]
        %s2358 = scalar_lea.vmem [#allocation6], 384
        %v2359 = vld [vmem:[%s2358] sm:$0xf]
        %v2360 = vld [vmem:[%s2358 + $0x4] sm:$0xf]
        %v2361 = vld [vmem:[%s2358 + $0x8] sm:$0xf]
        %v2362 = vld [vmem:[%s2358 + $0xc] sm:$0xf]
        %v2363 = vld [vmem:[%s2358 + $0x10] sm:$0xf]
        %v2364 = vld [vmem:[%s2358 + $0x14] sm:$0xf]
        %v2365 = vld [vmem:[%s2358 + $0x18] sm:$0xf]
        %v2366 = vld [vmem:[%s2358 + $0x1c] sm:$0xf]
        %v2367 = vld [vmem:[%s2358 + $0x20] sm:$0xf]
        %v2368 = vld [vmem:[%s2358 + $0x24] sm:$0xf]
        %v2369 = vld [vmem:[%s2358 + $0x28] sm:$0xf]
        %v2370 = vld [vmem:[%s2358 + $0x2c] sm:$0xf]
        %v2371 = vld [vmem:[%s2358 + $0x30] sm:$0xf]
        %v2372 = vld [vmem:[%s2358 + $0x34] sm:$0xf]
        %v2373 = vld [vmem:[%s2358 + $0x38] sm:$0xf]
        %v2374 = vld [vmem:[%s2358 + $0x3c] sm:$0xf]
        %v2391 = vunpack.c.l.b16 %v2318
        %v2392 = vunpack.c.l.b16 %v2319
        %v2393 = vunpack.c.l.b16 %v2321
        %v2394 = vunpack.c.l.b16 %v2322
        %v2395 = vunpack.c.l.b16 %v2324
        %v2396 = vunpack.c.l.b16 %v2325
        %v2397 = vunpack.c.l.b16 %v2327
        %v2398 = vunpack.c.l.b16 %v2328
        %v2399 = vunpack.c.l.b16 %v2330
        %v2400 = vunpack.c.l.b16 %v2331
        %v2401 = vunpack.c.l.b16 %v2333
        %v2402 = vunpack.c.l.b16 %v2334
        %v2403 = vunpack.c.l.b16 %v2336
        %v2404 = vunpack.c.l.b16 %v2337
        %v2405 = vunpack.c.l.b16 %v2339
        %v2406 = vunpack.c.l.b16 %v2340
        %v2407 = vpack.c.b16 %v2392, %v2391
        %v2408 = vpack.c.b16 %v2394, %v2393
        %v2409 = vpack.c.b16 %v2396, %v2395
        %v2410 = vpack.c.b16 %v2398, %v2397
        %v2411 = vpack.c.b16 %v2400, %v2399
        %v2412 = vpack.c.b16 %v2402, %v2401
        %v2413 = vpack.c.b16 %v2404, %v2403
        %v2414 = vpack.c.b16 %v2406, %v2405
        %v2439 = vunpack.c.l.b16 %v2359
        %v2440 = vunpack.c.l.b16 %v2360
        %v2441 = vunpack.c.l.b16 %v2361
        %v2442 = vunpack.c.l.b16 %v2362
        %v2443 = vunpack.c.l.b16 %v2363
        %v2444 = vunpack.c.l.b16 %v2364
        %v2445 = vunpack.c.l.b16 %v2365
        %v2446 = vunpack.c.l.b16 %v2366
        %v2447 = vunpack.c.l.b16 %v2367
        %v2448 = vunpack.c.l.b16 %v2368
        %v2449 = vunpack.c.l.b16 %v2369
        %v2450 = vunpack.c.l.b16 %v2370
        %v2451 = vunpack.c.l.b16 %v2371
        %v2452 = vunpack.c.l.b16 %v2372
        %v2453 = vunpack.c.l.b16 %v2373
        %v2454 = vunpack.c.l.b16 %v2374
        %v2455 = vpack.c.b16 %v2440, %v2439
        %v2456 = vpack.c.b16 %v2442, %v2441
        %v2457 = vpack.c.b16 %v2444, %v2443
        %v2458 = vpack.c.b16 %v2446, %v2445
        %v2459 = vpack.c.b16 %v2448, %v2447
        %v2460 = vpack.c.b16 %v2450, %v2449
        %v2461 = vpack.c.b16 %v2452, %v2451
        %v2462 = vpack.c.b16 %v2454, %v2453
        %2471 = vmatprep.subr.bf16.mxu0 0
        %2472 = vmatpush1.bf16.msra.mxu0 %v2455
        %2473 = vmatprep.subr.bf16.mxu0 0
        %2474 = vmatpush1.bf16.msra.mxu0 %v2456
        %2475 = vmatprep.subr.bf16.mxu0 0
        %2476 = vmatpush1.bf16.msra.mxu0 %v2457
        %2477 = vmatprep.subr.bf16.mxu0 0
        %2478 = vmatpush1.bf16.msra.mxu0 %v2458
        %2479 = vmatprep.subr.bf16.mxu0 0
        %2480 = vmatpush1.bf16.msra.mxu0 %v2459
        %2481 = vmatprep.subr.bf16.mxu0 0
        %2482 = vmatpush1.bf16.msra.mxu0 %v2460
        %2483 = vmatprep.subr.bf16.mxu0 0
        %2484 = vmatpush1.bf16.msra.mxu0 %v2461
        %2485 = vmatprep.subr.bf16.mxu0 0
        %2486 = vmatpush1.bf16.msra.mxu0 %v2462
        %2487 = vmatprep.subr.bf16.mxu0 0
        %2488 = vmatpush1.bf16.msra.mxu0 0
        %2489 = vmatprep.subr.bf16.mxu0 0
        %2490 = vmatpush1.bf16.msra.mxu0 0
        %2491 = vmatprep.subr.bf16.mxu0 0
        %2492 = vmatpush1.bf16.msra.mxu0 0
        %2493 = vmatprep.subr.bf16.mxu0 0
        %2494 = vmatpush1.bf16.msra.mxu0 0
        %2495 = vmatprep.subr.bf16.mxu0 0
        %2496 = vmatpush1.bf16.msra.mxu0 0
        %2497 = vmatprep.subr.bf16.mxu0 0
        %2498 = vmatpush1.bf16.msra.mxu0 0
        %2499 = vmatprep.subr.bf16.mxu0 0
        %2500 = vmatpush1.bf16.msra.mxu0 0
        %2501 = vmatprep.subr.bf16.mxu0 0
        %2502 = vmatpush1.bf16.msra.mxu0 0
        %2503 = vmatprep.mubr.bf16.mxu0 0
        %2504 = vmatmul.mubr.bf16.gmra.mrb[0].mxu0 %v2407
        %v2505 = vpop.f32.mrb[0].mxu0
        %v2506 = vadd.f32 0.0, %v2505
        %v2507 = vpop.f32.mrb[0].mxu0
        %v2508 = vpop.f32.mrb[0].mxu0
        %v2509 = vadd.f32 0.0, %v2508
        %v2510 = vpop.f32.mrb[0].mxu0
        %2511 = vmatprep.mubr.bf16.mxu0 0
        %2512 = vmatmul.mubr.bf16.gmra.mrb[0].mxu0 %v2408
        %v2513 = vpop.f32.mrb[0].mxu0
        %v2514 = vadd.f32 0.0, %v2513
        %v2515 = vpop.f32.mrb[0].mxu0
        %v2516 = vpop.f32.mrb[0].mxu0
        %v2517 = vadd.f32 0.0, %v2516
        %v2518 = vpop.f32.mrb[0].mxu0
        %2519 = vmatprep.mubr.bf16.mxu0 0
        %2520 = vmatmul.mubr.bf16.gmra.mrb[0].mxu0 %v2409
        %v2521 = vpop.f32.mrb[0].mxu0
        %v2522 = vadd.f32 0.0, %v2521
        %v2523 = vpop.f32.mrb[0].mxu0
        %v2524 = vpop.f32.mrb[0].mxu0
        %v2525 = vadd.f32 0.0, %v2524
        %v2526 = vpop.f32.mrb[0].mxu0
        %2527 = vmatprep.mubr.bf16.mxu0 0
        %2528 = vmatmul.mubr.bf16.gmra.mrb[0].mxu0 %v2410
        %v2529 = vpop.f32.mrb[0].mxu0
        %v2530 = vadd.f32 0.0, %v2529
        %v2531 = vpop.f32.mrb[0].mxu0
        %v2532 = vpop.f32.mrb[0].mxu0
        %v2533 = vadd.f32 0.0, %v2532
        %v2534 = vpop.f32.mrb[0].mxu0
        %2535 = vmatprep.mubr.bf16.mxu0 0
        %2536 = vmatmul.mubr.bf16.gmra.mrb[0].mxu0 %v2411
        %v2537 = vpop.f32.mrb[0].mxu0
        %v2538 = vadd.f32 0.0, %v2537
        %v2539 = vpop.f32.mrb[0].mxu0
        %v2540 = vpop.f32.mrb[0].mxu0
        %v2541 = vadd.f32 0.0, %v2540
        %v2542 = vpop.f32.mrb[0].mxu0
        %2543 = vmatprep.mubr.bf16.mxu0 0
        %2544 = vmatmul.mubr.bf16.gmra.mrb[0].mxu0 %v2412
        %v2545 = vpop.f32.mrb[0].mxu0
        %v2546 = vadd.f32 0.0, %v2545
        %v2547 = vpop.f32.mrb[0].mxu0
        %v2548 = vpop.f32.mrb[0].mxu0
        %v2549 = vadd.f32 0.0, %v2548
        %v2550 = vpop.f32.mrb[0].mxu0
        %2551 = vmatprep.mubr.bf16.mxu0 0
        %2552 = vmatmul.mubr.bf16.gmra.mrb[0].mxu0 %v2413
        %v2553 = vpop.f32.mrb[0].mxu0
        %v2554 = vadd.f32 0.0, %v2553
        %v2555 = vpop.f32.mrb[0].mxu0
        %v2556 = vpop.f32.mrb[0].mxu0
        %v2557 = vadd.f32 0.0, %v2556
        %v2558 = vpop.f32.mrb[0].mxu0
        %2559 = vmatprep.mubr.bf16.mxu0 0
        %2560 = vmatmul.mubr.bf16.gmra.mrb[0].mxu0 %v2414
        %v2561 = vpop.f32.mrb[0].mxu0
        %v2562 = vadd.f32 0.0, %v2561
        %v2563 = vpop.f32.mrb[0].mxu0
        %v2564 = vpop.f32.mrb[0].mxu0
        %v2565 = vadd.f32 0.0, %v2564
        %v2566 = vpop.f32.mrb[0].mxu0
        %2567 = vdwg.mxu0
        %v2568 = vadd.f32 %v2342, %v2506
        %v2569 = vadd.f32 %v2343, %v2509
        %v2570 = vadd.f32 %v2344, %v2514
        %v2571 = vadd.f32 %v2345, %v2517
        %v2572 = vadd.f32 %v2346, %v2522
        %v2573 = vadd.f32 %v2347, %v2525
        %v2574 = vadd.f32 %v2348, %v2530
        %v2575 = vadd.f32 %v2349, %v2533
        %v2576 = vadd.f32 %v2350, %v2538
        %v2577 = vadd.f32 %v2351, %v2541
        %v2578 = vadd.f32 %v2352, %v2546
        %v2579 = vadd.f32 %v2353, %v2549
        %v2580 = vadd.f32 %v2354, %v2554
        %v2581 = vadd.f32 %v2355, %v2557
        %v2582 = vadd.f32 %v2356, %v2562
        %v2583 = vadd.f32 %v2357, %v2565
        %2584 = vst [vmem:[#allocation2] sm:$0xff] %v2568
        %2585 = vst [vmem:[#allocation2 + $0x8] sm:$0xff] %v2569
        %2586 = vst [vmem:[#allocation2 + $0x10] sm:$0xff] %v2570
        %2587 = vst [vmem:[#allocation2 + $0x18] sm:$0xff] %v2571
        %2588 = vst [vmem:[#allocation2 + $0x20] sm:$0xff] %v2572
        %2589 = vst [vmem:[#allocation2 + $0x28] sm:$0xff] %v2573
        %2590 = vst [vmem:[#allocation2 + $0x30] sm:$0xff] %v2574
        %2591 = vst [vmem:[#allocation2 + $0x38] sm:$0xff] %v2575
        %2592 = vst [vmem:[#allocation2 + $0x40] sm:$0xff] %v2576
        %2593 = vst [vmem:[#allocation2 + $0x48] sm:$0xff] %v2577
        %2594 = vst [vmem:[#allocation2 + $0x50] sm:$0xff] %v2578
        %2595 = vst [vmem:[#allocation2 + $0x58] sm:$0xff] %v2579
        %2596 = vst [vmem:[#allocation2 + $0x60] sm:$0xff] %v2580
        %2597 = vst [vmem:[#allocation2 + $0x68] sm:$0xff] %v2581
        %2598 = vst [vmem:[#allocation2 + $0x70] sm:$0xff] %v2582
        %2599 = vst [vmem:[#allocation2 + $0x78] sm:$0xff] %v2583
        %v2601 = vshrl.u32 %v2318, 16
        %v2603 = vrot.slane %v2601, 4
        %v2604 = vshll.u32 %v2318, 16
        %v2606 = vrot.slane %v2604, 5
        %v2607 = vor.u32 %v2603, %v2606
        %v2608 = vrot.slane %v2607, 4
        %v2610 = vshll.u32 %v2319, 16
        %v2612 = vrot.slane %v2610, 5
        %v2613 = vsel %vm544, %v2608, %v2612
        %v2614 = vshrl.u32 %v2319, 16
        %v2616 = vrot.slane %v2614, 4
        %v2617 = vor.u32 %v2616, %v2612
        %v2618 = vrot.slane %v2617, 4
        %v2620 = vshll.u32 %v2320, 16
        %v2622 = vrot.slane %v2620, 5
        %v2623 = vsel %vm544, %v2618, %v2622
        %v2625 = vshrl.u32 %v2321, 16
        %v2627 = vrot.slane %v2625, 4
        %v2628 = vshll.u32 %v2321, 16
        %v2630 = vrot.slane %v2628, 5
        %v2631 = vor.u32 %v2627, %v2630
        %v2632 = vrot.slane %v2631, 4
        %v2634 = vshll.u32 %v2322, 16
        %v2636 = vrot.slane %v2634, 5
        %v2637 = vsel %vm544, %v2632, %v2636
        %v2638 = vshrl.u32 %v2322, 16
        %v2640 = vrot.slane %v2638, 4
        %v2641 = vor.u32 %v2640, %v2636
        %v2642 = vrot.slane %v2641, 4
        %v2644 = vshll.u32 %v2323, 16
        %v2646 = vrot.slane %v2644, 5
        %v2647 = vsel %vm544, %v2642, %v2646
        %v2649 = vshrl.u32 %v2324, 16
        %v2651 = vrot.slane %v2649, 4
        %v2652 = vshll.u32 %v2324, 16
        %v2654 = vrot.slane %v2652, 5
        %v2655 = vor.u32 %v2651, %v2654
        %v2656 = vrot.slane %v2655, 4
        %v2658 = vshll.u32 %v2325, 16
        %v2660 = vrot.slane %v2658, 5
        %v2661 = vsel %vm544, %v2656, %v2660
        %v2662 = vshrl.u32 %v2325, 16
        %v2664 = vrot.slane %v2662, 4
        %v2665 = vor.u32 %v2664, %v2660
        %v2666 = vrot.slane %v2665, 4
        %v2668 = vshll.u32 %v2326, 16
        %v2670 = vrot.slane %v2668, 5
        %v2671 = vsel %vm544, %v2666, %v2670
        %v2673 = vshrl.u32 %v2327, 16
        %v2675 = vrot.slane %v2673, 4
        %v2676 = vshll.u32 %v2327, 16
        %v2678 = vrot.slane %v2676, 5
        %v2679 = vor.u32 %v2675, %v2678
        %v2680 = vrot.slane %v2679, 4
        %v2682 = vshll.u32 %v2328, 16
        %v2684 = vrot.slane %v2682, 5
        %v2685 = vsel %vm544, %v2680, %v2684
        %v2686 = vshrl.u32 %v2328, 16
        %v2688 = vrot.slane %v2686, 4
        %v2689 = vor.u32 %v2688, %v2684
        %v2690 = vrot.slane %v2689, 4
        %v2692 = vshll.u32 %v2329, 16
        %v2694 = vrot.slane %v2692, 5
        %v2695 = vsel %vm544, %v2690, %v2694
        %v2697 = vshrl.u32 %v2330, 16
        %v2699 = vrot.slane %v2697, 4
        %v2700 = vshll.u32 %v2330, 16
        %v2702 = vrot.slane %v2700, 5
        %v2703 = vor.u32 %v2699, %v2702
        %v2704 = vrot.slane %v2703, 4
        %v2706 = vshll.u32 %v2331, 16
        %v2708 = vrot.slane %v2706, 5
        %v2709 = vsel %vm544, %v2704, %v2708
        %v2710 = vshrl.u32 %v2331, 16
        %v2712 = vrot.slane %v2710, 4
        %v2713 = vor.u32 %v2712, %v2708
        %v2714 = vrot.slane %v2713, 4
        %v2716 = vshll.u32 %v2332, 16
        %v2718 = vrot.slane %v2716, 5
        %v2719 = vsel %vm544, %v2714, %v2718
        %v2721 = vshrl.u32 %v2333, 16
        %v2723 = vrot.slane %v2721, 4
        %v2724 = vshll.u32 %v2333, 16
        %v2726 = vrot.slane %v2724, 5
        %v2727 = vor.u32 %v2723, %v2726
        %v2728 = vrot.slane %v2727, 4
        %v2730 = vshll.u32 %v2334, 16
        %v2732 = vrot.slane %v2730, 5
        %v2733 = vsel %vm544, %v2728, %v2732
        %v2734 = vshrl.u32 %v2334, 16
        %v2736 = vrot.slane %v2734, 4
        %v2737 = vor.u32 %v2736, %v2732
        %v2738 = vrot.slane %v2737, 4
        %v2740 = vshll.u32 %v2335, 16
        %v2742 = vrot.slane %v2740, 5
        %v2743 = vsel %vm544, %v2738, %v2742
        %v2745 = vshrl.u32 %v2336, 16
        %v2747 = vrot.slane %v2745, 4
        %v2748 = vshll.u32 %v2336, 16
        %v2750 = vrot.slane %v2748, 5
        %v2751 = vor.u32 %v2747, %v2750
        %v2752 = vrot.slane %v2751, 4
        %v2754 = vshll.u32 %v2337, 16
        %v2756 = vrot.slane %v2754, 5
        %v2757 = vsel %vm544, %v2752, %v2756
        %v2758 = vshrl.u32 %v2337, 16
        %v2760 = vrot.slane %v2758, 4
        %v2761 = vor.u32 %v2760, %v2756
        %v2762 = vrot.slane %v2761, 4
        %v2764 = vshll.u32 %v2338, 16
        %v2766 = vrot.slane %v2764, 5
        %v2767 = vsel %vm544, %v2762, %v2766
        %v2769 = vshrl.u32 %v2339, 16
        %v2771 = vrot.slane %v2769, 4
        %v2772 = vshll.u32 %v2339, 16
        %v2774 = vrot.slane %v2772, 5
        %v2775 = vor.u32 %v2771, %v2774
        %v2776 = vrot.slane %v2775, 4
        %v2778 = vshll.u32 %v2340, 16
        %v2780 = vrot.slane %v2778, 5
        %v2781 = vsel %vm544, %v2776, %v2780
        %v2782 = vshrl.u32 %v2340, 16
        %v2784 = vrot.slane %v2782, 4
        %v2785 = vor.u32 %v2784, %v2780
        %v2786 = vrot.slane %v2785, 4
        %v2788 = vshll.u32 %v2341, 16
        %v2790 = vrot.slane %v2788, 5
        %v2791 = vsel %vm544, %v2786, %v2790
        %v2792 = vld [vmem:[#allocation2] sm:$0xff]
        %v2793 = vld [vmem:[#allocation2 + $0x8] sm:$0xff]
        %v2794 = vld [vmem:[#allocation2 + $0x10] sm:$0xff]
        %v2795 = vld [vmem:[#allocation2 + $0x18] sm:$0xff]
        %v2796 = vld [vmem:[#allocation2 + $0x20] sm:$0xff]
        %v2797 = vld [vmem:[#allocation2 + $0x28] sm:$0xff]
        %v2798 = vld [vmem:[#allocation2 + $0x30] sm:$0xff]
        %v2799 = vld [vmem:[#allocation2 + $0x38] sm:$0xff]
        %v2800 = vld [vmem:[#allocation2 + $0x40] sm:$0xff]
        %v2801 = vld [vmem:[#allocation2 + $0x48] sm:$0xff]
        %v2802 = vld [vmem:[#allocation2 + $0x50] sm:$0xff]
        %v2803 = vld [vmem:[#allocation2 + $0x58] sm:$0xff]
        %v2804 = vld [vmem:[#allocation2 + $0x60] sm:$0xff]
        %v2805 = vld [vmem:[#allocation2 + $0x68] sm:$0xff]
        %v2806 = vld [vmem:[#allocation2 + $0x70] sm:$0xff]
        %v2807 = vld [vmem:[#allocation2 + $0x78] sm:$0xff]
        %s2808 = scalar_lea.vmem [#allocation6], 448
        %v2809 = vld [vmem:[%s2808] sm:$0xf]
        %v2810 = vld [vmem:[%s2808 + $0x4] sm:$0xf]
        %v2811 = vld [vmem:[%s2808 + $0x8] sm:$0xf]
        %v2812 = vld [vmem:[%s2808 + $0xc] sm:$0xf]
        %v2813 = vld [vmem:[%s2808 + $0x10] sm:$0xf]
        %v2814 = vld [vmem:[%s2808 + $0x14] sm:$0xf]
        %v2815 = vld [vmem:[%s2808 + $0x18] sm:$0xf]
        %v2816 = vld [vmem:[%s2808 + $0x1c] sm:$0xf]
        %v2817 = vld [vmem:[%s2808 + $0x20] sm:$0xf]
        %v2818 = vld [vmem:[%s2808 + $0x24] sm:$0xf]
        %v2819 = vld [vmem:[%s2808 + $0x28] sm:$0xf]
        %v2820 = vld [vmem:[%s2808 + $0x2c] sm:$0xf]
        %v2821 = vld [vmem:[%s2808 + $0x30] sm:$0xf]
        %v2822 = vld [vmem:[%s2808 + $0x34] sm:$0xf]
        %v2823 = vld [vmem:[%s2808 + $0x38] sm:$0xf]
        %v2824 = vld [vmem:[%s2808 + $0x3c] sm:$0xf]
        %v2825 = vunpack.c.l.b16 %v2613
        %v2826 = vunpack.c.l.b16 %v2623
        %v2827 = vunpack.c.l.b16 %v2637
        %v2828 = vunpack.c.l.b16 %v2647
        %v2829 = vunpack.c.l.b16 %v2661
        %v2830 = vunpack.c.l.b16 %v2671
        %v2831 = vunpack.c.l.b16 %v2685
        %v2832 = vunpack.c.l.b16 %v2695
        %v2833 = vunpack.c.l.b16 %v2709
        %v2834 = vunpack.c.l.b16 %v2719
        %v2835 = vunpack.c.l.b16 %v2733
        %v2836 = vunpack.c.l.b16 %v2743
        %v2837 = vunpack.c.l.b16 %v2757
        %v2838 = vunpack.c.l.b16 %v2767
        %v2839 = vunpack.c.l.b16 %v2781
        %v2840 = vunpack.c.l.b16 %v2791
        %v2841 = vpack.c.b16 %v2826, %v2825
        %v2842 = vpack.c.b16 %v2828, %v2827
        %v2843 = vpack.c.b16 %v2830, %v2829
        %v2844 = vpack.c.b16 %v2832, %v2831
        %v2845 = vpack.c.b16 %v2834, %v2833
        %v2846 = vpack.c.b16 %v2836, %v2835
        %v2847 = vpack.c.b16 %v2838, %v2837
        %v2848 = vpack.c.b16 %v2840, %v2839
        %v2873 = vunpack.c.l.b16 %v2809
        %v2874 = vunpack.c.l.b16 %v2810
        %v2875 = vunpack.c.l.b16 %v2811
        %v2876 = vunpack.c.l.b16 %v2812
        %v2877 = vunpack.c.l.b16 %v2813
        %v2878 = vunpack.c.l.b16 %v2814
        %v2879 = vunpack.c.l.b16 %v2815
        %v2880 = vunpack.c.l.b16 %v2816
        %v2881 = vunpack.c.l.b16 %v2817
        %v2882 = vunpack.c.l.b16 %v2818
        %v2883 = vunpack.c.l.b16 %v2819
        %v2884 = vunpack.c.l.b16 %v2820
        %v2885 = vunpack.c.l.b16 %v2821
        %v2886 = vunpack.c.l.b16 %v2822
        %v2887 = vunpack.c.l.b16 %v2823
        %v2888 = vunpack.c.l.b16 %v2824
        %v2889 = vpack.c.b16 %v2874, %v2873
        %v2890 = vpack.c.b16 %v2876, %v2875
        %v2891 = vpack.c.b16 %v2878, %v2877
        %v2892 = vpack.c.b16 %v2880, %v2879
        %v2893 = vpack.c.b16 %v2882, %v2881
        %v2894 = vpack.c.b16 %v2884, %v2883
        %v2895 = vpack.c.b16 %v2886, %v2885
        %v2896 = vpack.c.b16 %v2888, %v2887
        %2905 = vmatprep.subr.bf16.mxu0 0
        %2906 = vmatpush1.bf16.msra.mxu0 %v2889
        %2907 = vmatprep.subr.bf16.mxu0 0
        %2908 = vmatpush1.bf16.msra.mxu0 %v2890
        %2909 = vmatprep.subr.bf16.mxu0 0
        %2910 = vmatpush1.bf16.msra.mxu0 %v2891
        %2911 = vmatprep.subr.bf16.mxu0 0
        %2912 = vmatpush1.bf16.msra.mxu0 %v2892
        %2913 = vmatprep.subr.bf16.mxu0 0
        %2914 = vmatpush1.bf16.msra.mxu0 %v2893
        %2915 = vmatprep.subr.bf16.mxu0 0
        %2916 = vmatpush1.bf16.msra.mxu0 %v2894
        %2917 = vmatprep.subr.bf16.mxu0 0
        %2918 = vmatpush1.bf16.msra.mxu0 %v2895
        %2919 = vmatprep.subr.bf16.mxu0 0
        %2920 = vmatpush1.bf16.msra.mxu0 %v2896
        %2921 = vmatprep.subr.bf16.mxu0 0
        %2922 = vmatpush1.bf16.msra.mxu0 0
        %2923 = vmatprep.subr.bf16.mxu0 0
        %2924 = vmatpush1.bf16.msra.mxu0 0
        %2925 = vmatprep.subr.bf16.mxu0 0
        %2926 = vmatpush1.bf16.msra.mxu0 0
        %2927 = vmatprep.subr.bf16.mxu0 0
        %2928 = vmatpush1.bf16.msra.mxu0 0
        %2929 = vmatprep.subr.bf16.mxu0 0
        %2930 = vmatpush1.bf16.msra.mxu0 0
        %2931 = vmatprep.subr.bf16.mxu0 0
        %2932 = vmatpush1.bf16.msra.mxu0 0
        %2933 = vmatprep.subr.bf16.mxu0 0
        %2934 = vmatpush1.bf16.msra.mxu0 0
        %2935 = vmatprep.subr.bf16.mxu0 0
        %2936 = vmatpush1.bf16.msra.mxu0 0
        %2937 = vmatprep.mubr.bf16.mxu0 0
        %2938 = vmatmul.mubr.bf16.gmra.mrb[0].mxu0 %v2841
        %v2939 = vpop.f32.mrb[0].mxu0
        %v2940 = vadd.f32 0.0, %v2939
        %v2941 = vpop.f32.mrb[0].mxu0
        %v2942 = vpop.f32.mrb[0].mxu0
        %v2943 = vadd.f32 0.0, %v2942
        %v2944 = vpop.f32.mrb[0].mxu0
        %2945 = vmatprep.mubr.bf16.mxu0 0
        %2946 = vmatmul.mubr.bf16.gmra.mrb[0].mxu0 %v2842
        %v2947 = vpop.f32.mrb[0].mxu0
        %v2948 = vadd.f32 0.0, %v2947
        %v2949 = vpop.f32.mrb[0].mxu0
        %v2950 = vpop.f32.mrb[0].mxu0
        %v2951 = vadd.f32 0.0, %v2950
        %v2952 = vpop.f32.mrb[0].mxu0
        %2953 = vmatprep.mubr.bf16.mxu0 0
        %2954 = vmatmul.mubr.bf16.gmra.mrb[0].mxu0 %v2843
        %v2955 = vpop.f32.mrb[0].mxu0
        %v2956 = vadd.f32 0.0, %v2955
        %v2957 = vpop.f32.mrb[0].mxu0
        %v2958 = vpop.f32.mrb[0].mxu0
        %v2959 = vadd.f32 0.0, %v2958
        %v2960 = vpop.f32.mrb[0].mxu0
        %2961 = vmatprep.mubr.bf16.mxu0 0
        %2962 = vmatmul.mubr.bf16.gmra.mrb[0].mxu0 %v2844
        %v2963 = vpop.f32.mrb[0].mxu0
        %v2964 = vadd.f32 0.0, %v2963
        %v2965 = vpop.f32.mrb[0].mxu0
        %v2966 = vpop.f32.mrb[0].mxu0
        %v2967 = vadd.f32 0.0, %v2966
        %v2968 = vpop.f32.mrb[0].mxu0
        %2969 = vmatprep.mubr.bf16.mxu0 0
        %2970 = vmatmul.mubr.bf16.gmra.mrb[0].mxu0 %v2845
        %v2971 = vpop.f32.mrb[0].mxu0
        %v2972 = vadd.f32 0.0, %v2971
        %v2973 = vpop.f32.mrb[0].mxu0
        %v2974 = vpop.f32.mrb[0].mxu0
        %v2975 = vadd.f32 0.0, %v2974
        %v2976 = vpop.f32.mrb[0].mxu0
        %2977 = vmatprep.mubr.bf16.mxu0 0
        %2978 = vmatmul.mubr.bf16.gmra.mrb[0].mxu0 %v2846
        %v2979 = vpop.f32.mrb[0].mxu0
        %v2980 = vadd.f32 0.0, %v2979
        %v2981 = vpop.f32.mrb[0].mxu0
        %v2982 = vpop.f32.mrb[0].mxu0
        %v2983 = vadd.f32 0.0, %v2982
        %v2984 = vpop.f32.mrb[0].mxu0
        %2985 = vmatprep.mubr.bf16.mxu0 0
        %2986 = vmatmul.mubr.bf16.gmra.mrb[0].mxu0 %v2847
        %v2987 = vpop.f32.mrb[0].mxu0
        %v2988 = vadd.f32 0.0, %v2987
        %v2989 = vpop.f32.mrb[0].mxu0
        %v2990 = vpop.f32.mrb[0].mxu0
        %v2991 = vadd.f32 0.0, %v2990
        %v2992 = vpop.f32.mrb[0].mxu0
        %2993 = vmatprep.mubr.bf16.mxu0 0
        %2994 = vmatmul.mubr.bf16.gmra.mrb[0].mxu0 %v2848
        %v2995 = vpop.f32.mrb[0].mxu0
        %v2996 = vadd.f32 0.0, %v2995
        %v2997 = vpop.f32.mrb[0].mxu0
        %v2998 = vpop.f32.mrb[0].mxu0
        %v2999 = vadd.f32 0.0, %v2998
        %v3000 = vpop.f32.mrb[0].mxu0
        %3001 = vdwg.mxu0
        %v3002 = vadd.f32 %v2792, %v2940
        %v3003 = vadd.f32 %v2793, %v2943
        %v3004 = vadd.f32 %v2794, %v2948
        %v3005 = vadd.f32 %v2795, %v2951
        %v3006 = vadd.f32 %v2796, %v2956
        %v3007 = vadd.f32 %v2797, %v2959
        %v3008 = vadd.f32 %v2798, %v2964
        %v3009 = vadd.f32 %v2799, %v2967
        %v3010 = vadd.f32 %v2800, %v2972
        %v3011 = vadd.f32 %v2801, %v2975
        %v3012 = vadd.f32 %v2802, %v2980
        %v3013 = vadd.f32 %v2803, %v2983
        %v3014 = vadd.f32 %v2804, %v2988
        %v3015 = vadd.f32 %v2805, %v2991
        %v3016 = vadd.f32 %v2806, %v2996
        %v3017 = vadd.f32 %v2807, %v2999
        %3018 = vst [vmem:[#allocation2] sm:$0xff] %v3002
        %3019 = vst [vmem:[#allocation2 + $0x8] sm:$0xff] %v3003
        %3020 = vst [vmem:[#allocation2 + $0x10] sm:$0xff] %v3004
        %3021 = vst [vmem:[#allocation2 + $0x18] sm:$0xff] %v3005
        %3022 = vst [vmem:[#allocation2 + $0x20] sm:$0xff] %v3006
        %3023 = vst [vmem:[#allocation2 + $0x28] sm:$0xff] %v3007
        %3024 = vst [vmem:[#allocation2 + $0x30] sm:$0xff] %v3008
        %3025 = vst [vmem:[#allocation2 + $0x38] sm:$0xff] %v3009
        %3026 = vst [vmem:[#allocation2 + $0x40] sm:$0xff] %v3010
        %3027 = vst [vmem:[#allocation2 + $0x48] sm:$0xff] %v3011
        %3028 = vst [vmem:[#allocation2 + $0x50] sm:$0xff] %v3012
        %3029 = vst [vmem:[#allocation2 + $0x58] sm:$0xff] %v3013
        %3030 = vst [vmem:[#allocation2 + $0x60] sm:$0xff] %v3014
        %3031 = vst [vmem:[#allocation2 + $0x68] sm:$0xff] %v3015
        %3032 = vst [vmem:[#allocation2 + $0x70] sm:$0xff] %v3016
        %3033 = vst [vmem:[#allocation2 + $0x78] sm:$0xff] %v3017
        %v3042 = vrot.slane %v2318, 5
        %v3043 = vrot.slane %v3042, 4
        %v3044 = vrot.slane %v2319, 5
        %v3045 = vsel %vm989, %v3043, %v3044
        %v3046 = vrot.slane %v3044, 4
        %v3047 = vrot.slane %v2320, 5
        %v3048 = vsel %vm989, %v3046, %v3047
        %v3049 = vrot.slane %v2321, 5
        %v3050 = vrot.slane %v3049, 4
        %v3051 = vrot.slane %v2322, 5
        %v3052 = vsel %vm989, %v3050, %v3051
        %v3053 = vrot.slane %v3051, 4
        %v3054 = vrot.slane %v2323, 5
        %v3055 = vsel %vm989, %v3053, %v3054
        %v3056 = vrot.slane %v2324, 5
        %v3057 = vrot.slane %v3056, 4
        %v3058 = vrot.slane %v2325, 5
        %v3059 = vsel %vm989, %v3057, %v3058
        %v3060 = vrot.slane %v3058, 4
        %v3061 = vrot.slane %v2326, 5
        %v3062 = vsel %vm989, %v3060, %v3061
        %v3063 = vrot.slane %v2327, 5
        %v3064 = vrot.slane %v3063, 4
        %v3065 = vrot.slane %v2328, 5
        %v3066 = vsel %vm989, %v3064, %v3065
        %v3067 = vrot.slane %v3065, 4
        %v3068 = vrot.slane %v2329, 5
        %v3069 = vsel %vm989, %v3067, %v3068
        %v3070 = vrot.slane %v2330, 5
        %v3071 = vrot.slane %v3070, 4
        %v3072 = vrot.slane %v2331, 5
        %v3073 = vsel %vm989, %v3071, %v3072
        %v3074 = vrot.slane %v3072, 4
        %v3075 = vrot.slane %v2332, 5
        %v3076 = vsel %vm989, %v3074, %v3075
        %v3077 = vrot.slane %v2333, 5
        %v3078 = vrot.slane %v3077, 4
        %v3079 = vrot.slane %v2334, 5
        %v3080 = vsel %vm989, %v3078, %v3079
        %v3081 = vrot.slane %v3079, 4
        %v3082 = vrot.slane %v2335, 5
        %v3083 = vsel %vm989, %v3081, %v3082
        %v3084 = vrot.slane %v2336, 5
        %v3085 = vrot.slane %v3084, 4
        %v3086 = vrot.slane %v2337, 5
        %v3087 = vsel %vm989, %v3085, %v3086
        %v3088 = vrot.slane %v3086, 4
        %v3089 = vrot.slane %v2338, 5
        %v3090 = vsel %vm989, %v3088, %v3089
        %v3091 = vrot.slane %v2339, 5
        %v3092 = vrot.slane %v3091, 4
        %v3093 = vrot.slane %v2340, 5
        %v3094 = vsel %vm989, %v3092, %v3093
        %v3095 = vrot.slane %v3093, 4
        %v3096 = vrot.slane %v2341, 5
        %v3097 = vsel %vm989, %v3095, %v3096
        %v3098 = vld [vmem:[#allocation2] sm:$0xff]
        %v3099 = vld [vmem:[#allocation2 + $0x8] sm:$0xff]
        %v3100 = vld [vmem:[#allocation2 + $0x10] sm:$0xff]
        %v3101 = vld [vmem:[#allocation2 + $0x18] sm:$0xff]
        %v3102 = vld [vmem:[#allocation2 + $0x20] sm:$0xff]
        %v3103 = vld [vmem:[#allocation2 + $0x28] sm:$0xff]
        %v3104 = vld [vmem:[#allocation2 + $0x30] sm:$0xff]
        %v3105 = vld [vmem:[#allocation2 + $0x38] sm:$0xff]
        %v3106 = vld [vmem:[#allocation2 + $0x40] sm:$0xff]
        %v3107 = vld [vmem:[#allocation2 + $0x48] sm:$0xff]
        %v3108 = vld [vmem:[#allocation2 + $0x50] sm:$0xff]
        %v3109 = vld [vmem:[#allocation2 + $0x58] sm:$0xff]
        %v3110 = vld [vmem:[#allocation2 + $0x60] sm:$0xff]
        %v3111 = vld [vmem:[#allocation2 + $0x68] sm:$0xff]
        %v3112 = vld [vmem:[#allocation2 + $0x70] sm:$0xff]
        %v3113 = vld [vmem:[#allocation2 + $0x78] sm:$0xff]
        %s3114 = scalar_lea.vmem [#allocation6], 512
        %v3115 = vld [vmem:[%s3114] sm:$0xf]
        %v3116 = vld [vmem:[%s3114 + $0x4] sm:$0xf]
        %v3117 = vld [vmem:[%s3114 + $0x8] sm:$0xf]
        %v3118 = vld [vmem:[%s3114 + $0xc] sm:$0xf]
        %v3119 = vld [vmem:[%s3114 + $0x10] sm:$0xf]
        %v3120 = vld [vmem:[%s3114 + $0x14] sm:$0xf]
        %v3121 = vld [vmem:[%s3114 + $0x18] sm:$0xf]
        %v3122 = vld [vmem:[%s3114 + $0x1c] sm:$0xf]
        %v3123 = vld [vmem:[%s3114 + $0x20] sm:$0xf]
        %v3124 = vld [vmem:[%s3114 + $0x24] sm:$0xf]
        %v3125 = vld [vmem:[%s3114 + $0x28] sm:$0xf]
        %v3126 = vld [vmem:[%s3114 + $0x2c] sm:$0xf]
        %v3127 = vld [vmem:[%s3114 + $0x30] sm:$0xf]
        %v3128 = vld [vmem:[%s3114 + $0x34] sm:$0xf]
        %v3129 = vld [vmem:[%s3114 + $0x38] sm:$0xf]
        %v3130 = vld [vmem:[%s3114 + $0x3c] sm:$0xf]
        %v3131 = vunpack.c.l.b16 %v3045
        %v3132 = vunpack.c.l.b16 %v3048
        %v3133 = vunpack.c.l.b16 %v3052
        %v3134 = vunpack.c.l.b16 %v3055
        %v3135 = vunpack.c.l.b16 %v3059
        %v3136 = vunpack.c.l.b16 %v3062
        %v3137 = vunpack.c.l.b16 %v3066
        %v3138 = vunpack.c.l.b16 %v3069
        %v3139 = vunpack.c.l.b16 %v3073
        %v3140 = vunpack.c.l.b16 %v3076
        %v3141 = vunpack.c.l.b16 %v3080
        %v3142 = vunpack.c.l.b16 %v3083
        %v3143 = vunpack.c.l.b16 %v3087
        %v3144 = vunpack.c.l.b16 %v3090
        %v3145 = vunpack.c.l.b16 %v3094
        %v3146 = vunpack.c.l.b16 %v3097
        %v3147 = vpack.c.b16 %v3132, %v3131
        %v3148 = vpack.c.b16 %v3134, %v3133
        %v3149 = vpack.c.b16 %v3136, %v3135
        %v3150 = vpack.c.b16 %v3138, %v3137
        %v3151 = vpack.c.b16 %v3140, %v3139
        %v3152 = vpack.c.b16 %v3142, %v3141
        %v3153 = vpack.c.b16 %v3144, %v3143
        %v3154 = vpack.c.b16 %v3146, %v3145
        %v3179 = vunpack.c.l.b16 %v3115
        %v3180 = vunpack.c.l.b16 %v3116
        %v3181 = vunpack.c.l.b16 %v3117
        %v3182 = vunpack.c.l.b16 %v3118
        %v3183 = vunpack.c.l.b16 %v3119
        %v3184 = vunpack.c.l.b16 %v3120
        %v3185 = vunpack.c.l.b16 %v3121
        %v3186 = vunpack.c.l.b16 %v3122
        %v3187 = vunpack.c.l.b16 %v3123
        %v3188 = vunpack.c.l.b16 %v3124
        %v3189 = vunpack.c.l.b16 %v3125
        %v3190 = vunpack.c.l.b16 %v3126
        %v3191 = vunpack.c.l.b16 %v3127
        %v3192 = vunpack.c.l.b16 %v3128
        %v3193 = vunpack.c.l.b16 %v3129
        %v3194 = vunpack.c.l.b16 %v3130
        %v3195 = vpack.c.b16 %v3180, %v3179
        %v3196 = vpack.c.b16 %v3182, %v3181
        %v3197 = vpack.c.b16 %v3184, %v3183
        %v3198 = vpack.c.b16 %v3186, %v3185
        %v3199 = vpack.c.b16 %v3188, %v3187
        %v3200 = vpack.c.b16 %v3190, %v3189
        %v3201 = vpack.c.b16 %v3192, %v3191
        %v3202 = vpack.c.b16 %v3194, %v3193
        %3211 = vmatprep.subr.bf16.mxu0 0
        %3212 = vmatpush1.bf16.msra.mxu0 %v3195
        %3213 = vmatprep.subr.bf16.mxu0 0
        %3214 = vmatpush1.bf16.msra.mxu0 %v3196
        %3215 = vmatprep.subr.bf16.mxu0 0
        %3216 = vmatpush1.bf16.msra.mxu0 %v3197
        %3217 = vmatprep.subr.bf16.mxu0 0
        %3218 = vmatpush1.bf16.msra.mxu0 %v3198
        %3219 = vmatprep.subr.bf16.mxu0 0
        %3220 = vmatpush1.bf16.msra.mxu0 %v3199
        %3221 = vmatprep.subr.bf16.mxu0 0
        %3222 = vmatpush1.bf16.msra.mxu0 %v3200
        %3223 = vmatprep.subr.bf16.mxu0 0
        %3224 = vmatpush1.bf16.msra.mxu0 %v3201
        %3225 = vmatprep.subr.bf16.mxu0 0
        %3226 = vmatpush1.bf16.msra.mxu0 %v3202
        %3227 = vmatprep.subr.bf16.mxu0 0
        %3228 = vmatpush1.bf16.msra.mxu0 0
        %3229 = vmatprep.subr.bf16.mxu0 0
        %3230 = vmatpush1.bf16.msra.mxu0 0
        %3231 = vmatprep.subr.bf16.mxu0 0
        %3232 = vmatpush1.bf16.msra.mxu0 0
        %3233 = vmatprep.subr.bf16.mxu0 0
        %3234 = vmatpush1.bf16.msra.mxu0 0
        %3235 = vmatprep.subr.bf16.mxu0 0
        %3236 = vmatpush1.bf16.msra.mxu0 0
        %3237 = vmatprep.subr.bf16.mxu0 0
        %3238 = vmatpush1.bf16.msra.mxu0 0
        %3239 = vmatprep.subr.bf16.mxu0 0
        %3240 = vmatpush1.bf16.msra.mxu0 0
        %3241 = vmatprep.subr.bf16.mxu0 0
        %3242 = vmatpush1.bf16.msra.mxu0 0
        %3243 = vmatprep.mubr.bf16.mxu0 0
        %3244 = vmatmul.mubr.bf16.gmra.mrb[0].mxu0 %v3147
        %v3245 = vpop.f32.mrb[0].mxu0
        %v3246 = vadd.f32 0.0, %v3245
        %v3247 = vpop.f32.mrb[0].mxu0
        %v3248 = vpop.f32.mrb[0].mxu0
        %v3249 = vadd.f32 0.0, %v3248
        %v3250 = vpop.f32.mrb[0].mxu0
        %3251 = vmatprep.mubr.bf16.mxu0 0
        %3252 = vmatmul.mubr.bf16.gmra.mrb[0].mxu0 %v3148
        %v3253 = vpop.f32.mrb[0].mxu0
        %v3254 = vadd.f32 0.0, %v3253
        %v3255 = vpop.f32.mrb[0].mxu0
        %v3256 = vpop.f32.mrb[0].mxu0
        %v3257 = vadd.f32 0.0, %v3256
        %v3258 = vpop.f32.mrb[0].mxu0
        %3259 = vmatprep.mubr.bf16.mxu0 0
        %3260 = vmatmul.mubr.bf16.gmra.mrb[0].mxu0 %v3149
        %v3261 = vpop.f32.mrb[0].mxu0
        %v3262 = vadd.f32 0.0, %v3261
        %v3263 = vpop.f32.mrb[0].mxu0
        %v3264 = vpop.f32.mrb[0].mxu0
        %v3265 = vadd.f32 0.0, %v3264
        %v3266 = vpop.f32.mrb[0].mxu0
        %3267 = vmatprep.mubr.bf16.mxu0 0
        %3268 = vmatmul.mubr.bf16.gmra.mrb[0].mxu0 %v3150
        %v3269 = vpop.f32.mrb[0].mxu0
        %v3270 = vadd.f32 0.0, %v3269
        %v3271 = vpop.f32.mrb[0].mxu0
        %v3272 = vpop.f32.mrb[0].mxu0
        %v3273 = vadd.f32 0.0, %v3272
        %v3274 = vpop.f32.mrb[0].mxu0
        %3275 = vmatprep.mubr.bf16.mxu0 0
        %3276 = vmatmul.mubr.bf16.gmra.mrb[0].mxu0 %v3151
        %v3277 = vpop.f32.mrb[0].mxu0
        %v3278 = vadd.f32 0.0, %v3277
        %v3279 = vpop.f32.mrb[0].mxu0
        %v3280 = vpop.f32.mrb[0].mxu0
        %v3281 = vadd.f32 0.0, %v3280
        %v3282 = vpop.f32.mrb[0].mxu0
        %3283 = vmatprep.mubr.bf16.mxu0 0
        %3284 = vmatmul.mubr.bf16.gmra.mrb[0].mxu0 %v3152
        %v3285 = vpop.f32.mrb[0].mxu0
        %v3286 = vadd.f32 0.0, %v3285
        %v3287 = vpop.f32.mrb[0].mxu0
        %v3288 = vpop.f32.mrb[0].mxu0
        %v3289 = vadd.f32 0.0, %v3288
        %v3290 = vpop.f32.mrb[0].mxu0
        %3291 = vmatprep.mubr.bf16.mxu0 0
        %3292 = vmatmul.mubr.bf16.gmra.mrb[0].mxu0 %v3153
        %v3293 = vpop.f32.mrb[0].mxu0
        %v3294 = vadd.f32 0.0, %v3293
        %v3295 = vpop.f32.mrb[0].mxu0
        %v3296 = vpop.f32.mrb[0].mxu0
        %v3297 = vadd.f32 0.0, %v3296
        %v3298 = vpop.f32.mrb[0].mxu0
        %3299 = vmatprep.mubr.bf16.mxu0 0
        %3300 = vmatmul.mubr.bf16.gmra.mrb[0].mxu0 %v3154
        %v3301 = vpop.f32.mrb[0].mxu0
        %v3302 = vadd.f32 0.0, %v3301
        %v3303 = vpop.f32.mrb[0].mxu0
        %v3304 = vpop.f32.mrb[0].mxu0
        %v3305 = vadd.f32 0.0, %v3304
        %v3306 = vpop.f32.mrb[0].mxu0
        %3307 = vdwg.mxu0
        %v3308 = vadd.f32 %v3098, %v3246
        %v3309 = vadd.f32 %v3099, %v3249
        %v3310 = vadd.f32 %v3100, %v3254
        %v3311 = vadd.f32 %v3101, %v3257
        %v3312 = vadd.f32 %v3102, %v3262
        %v3313 = vadd.f32 %v3103, %v3265
        %v3314 = vadd.f32 %v3104, %v3270
        %v3315 = vadd.f32 %v3105, %v3273
        %v3316 = vadd.f32 %v3106, %v3278
        %v3317 = vadd.f32 %v3107, %v3281
        %v3318 = vadd.f32 %v3108, %v3286
        %v3319 = vadd.f32 %v3109, %v3289
        %v3320 = vadd.f32 %v3110, %v3294
        %v3321 = vadd.f32 %v3111, %v3297
        %v3322 = vadd.f32 %v3112, %v3302
        %v3323 = vadd.f32 %v3113, %v3305
        %3324 = vst [vmem:[#allocation2] sm:$0xff] %v3308
        %3325 = vst [vmem:[#allocation2 + $0x8] sm:$0xff] %v3309
        %3326 = vst [vmem:[#allocation2 + $0x10] sm:$0xff] %v3310
        %3327 = vst [vmem:[#allocation2 + $0x18] sm:$0xff] %v3311
        %3328 = vst [vmem:[#allocation2 + $0x20] sm:$0xff] %v3312
        %3329 = vst [vmem:[#allocation2 + $0x28] sm:$0xff] %v3313
        %3330 = vst [vmem:[#allocation2 + $0x30] sm:$0xff] %v3314
        %3331 = vst [vmem:[#allocation2 + $0x38] sm:$0xff] %v3315
        %3332 = vst [vmem:[#allocation2 + $0x40] sm:$0xff] %v3316
        %3333 = vst [vmem:[#allocation2 + $0x48] sm:$0xff] %v3317
        %3334 = vst [vmem:[#allocation2 + $0x50] sm:$0xff] %v3318
        %3335 = vst [vmem:[#allocation2 + $0x58] sm:$0xff] %v3319
        %3336 = vst [vmem:[#allocation2 + $0x60] sm:$0xff] %v3320
        %3337 = vst [vmem:[#allocation2 + $0x68] sm:$0xff] %v3321
        %3338 = vst [vmem:[#allocation2 + $0x70] sm:$0xff] %v3322
        %3339 = vst [vmem:[#allocation2 + $0x78] sm:$0xff] %v3323
        %v3340 = vld [vmem:[#allocation2] sm:$0xff]
        %v3341 = vld [vmem:[#allocation2 + $0x8] sm:$0xff]
        %v3342 = vld [vmem:[#allocation2 + $0x10] sm:$0xff]
        %v3343 = vld [vmem:[#allocation2 + $0x18] sm:$0xff]
        %v3344 = vld [vmem:[#allocation2 + $0x20] sm:$0xff]
        %v3345 = vld [vmem:[#allocation2 + $0x28] sm:$0xff]
        %v3346 = vld [vmem:[#allocation2 + $0x30] sm:$0xff]
        %v3347 = vld [vmem:[#allocation2 + $0x38] sm:$0xff]
        %v3348 = vld [vmem:[#allocation2 + $0x40] sm:$0xff]
        %v3349 = vld [vmem:[#allocation2 + $0x48] sm:$0xff]
        %v3350 = vld [vmem:[#allocation2 + $0x50] sm:$0xff]
        %v3351 = vld [vmem:[#allocation2 + $0x58] sm:$0xff]
        %v3352 = vld [vmem:[#allocation2 + $0x60] sm:$0xff]
        %v3353 = vld [vmem:[#allocation2 + $0x68] sm:$0xff]
        %v3354 = vld [vmem:[#allocation2 + $0x70] sm:$0xff]
        %v3355 = vld [vmem:[#allocation2 + $0x78] sm:$0xff]
        %v3356 = vpack.c.bf16 %v3341, %v3340
        %v3357 = vpack.c.bf16 %v3343, %v3342
        %v3358 = vpack.c.bf16 %v3345, %v3344
        %v3359 = vpack.c.bf16 %v3347, %v3346
        %v3360 = vpack.c.bf16 %v3349, %v3348
        %v3361 = vpack.c.bf16 %v3351, %v3350
        %v3362 = vpack.c.bf16 %v3353, %v3352
        %v3363 = vpack.c.bf16 %v3355, %v3354
        %v3372 = vunpack.c.l.b16 %v3356
        %v3373 = vunpack.c.h.b16 %v3356
        %v3374 = vunpack.c.l.b16 %v3357
        %v3375 = vunpack.c.h.b16 %v3357
        %v3376 = vunpack.c.l.b16 %v3358
        %v3377 = vunpack.c.h.b16 %v3358
        %v3378 = vunpack.c.l.b16 %v3359
        %v3379 = vunpack.c.h.b16 %v3359
        %v3380 = vunpack.c.l.b16 %v3360
        %v3381 = vunpack.c.h.b16 %v3360
        %v3382 = vunpack.c.l.b16 %v3361
        %v3383 = vunpack.c.h.b16 %v3361
        %v3384 = vunpack.c.l.b16 %v3362
        %v3385 = vunpack.c.h.b16 %v3362
        %v3386 = vunpack.c.l.b16 %v3363
        %v3387 = vunpack.c.h.b16 %v3363
        %v3388 = vpack.c.b16 %v3372, %v3372
        %v3389 = vpack.c.b16 %v3373, %v3373
        %v3390 = vpack.c.b16 %v3374, %v3374
        %v3391 = vpack.c.b16 %v3375, %v3375
        %v3392 = vpack.c.b16 %v3376, %v3376
        %v3393 = vpack.c.b16 %v3377, %v3377
        %v3394 = vpack.c.b16 %v3378, %v3378
        %v3395 = vpack.c.b16 %v3379, %v3379
        %v3396 = vpack.c.b16 %v3380, %v3380
        %v3397 = vpack.c.b16 %v3381, %v3381
        %v3398 = vpack.c.b16 %v3382, %v3382
        %v3399 = vpack.c.b16 %v3383, %v3383
        %v3400 = vpack.c.b16 %v3384, %v3384
        %v3401 = vpack.c.b16 %v3385, %v3385
        %v3402 = vpack.c.b16 %v3386, %v3386
        %v3403 = vpack.c.b16 %v3387, %v3387
        %3420 = vst [vmem:[%s227] sm:$0xf] %v3388
        %3421 = vst [vmem:[%s227 + $0x4] sm:$0xf] %v3389
        %3422 = vst [vmem:[%s227 + $0x8] sm:$0xf] %v3390
        %3423 = vst [vmem:[%s227 + $0xc] sm:$0xf] %v3391
        %3424 = vst [vmem:[%s227 + $0x10] sm:$0xf] %v3392
        %3425 = vst [vmem:[%s227 + $0x14] sm:$0xf] %v3393
        %3426 = vst [vmem:[%s227 + $0x18] sm:$0xf] %v3394
        %3427 = vst [vmem:[%s227 + $0x1c] sm:$0xf] %v3395
        %3428 = vst [vmem:[%s227 + $0x20] sm:$0xf] %v3396
        %3429 = vst [vmem:[%s227 + $0x24] sm:$0xf] %v3397
        %3430 = vst [vmem:[%s227 + $0x28] sm:$0xf] %v3398
        %3431 = vst [vmem:[%s227 + $0x2c] sm:$0xf] %v3399
        %3432 = vst [vmem:[%s227 + $0x30] sm:$0xf] %v3400
        %3433 = vst [vmem:[%s227 + $0x34] sm:$0xf] %v3401
        %3434 = vst [vmem:[%s227 + $0x38] sm:$0xf] %v3402
        %3435 = vst [vmem:[%s227 + $0x3c] sm:$0xf] %v3403
        %v3436 = vld [vmem:[#allocation2] sm:$0xff]
        %v3437 = vadd.f32 %v3436, 0.0
        %v3438 = vmul.f32 %v3436, %v3436
        %v3439 = vadd.f32 %v3438, 0.0
        %v3440 = vld [vmem:[#allocation2 + $0x8] sm:$0xff]
        %v3441 = vadd.f32 %v3437, %v3440
        %v3442 = vmul.f32 %v3440, %v3440
        %v3443 = vadd.f32 %v3439, %v3442
        %v3444 = vld [vmem:[#allocation2 + $0x10] sm:$0xff]
        %v3445 = vadd.f32 %v3441, %v3444
        %v3446 = vmul.f32 %v3444, %v3444
        %v3447 = vadd.f32 %v3443, %v3446
        %v3448 = vld [vmem:[#allocation2 + $0x18] sm:$0xff]
        %v3449 = vadd.f32 %v3445, %v3448
        %v3450 = vmul.f32 %v3448, %v3448
        %v3451 = vadd.f32 %v3447, %v3450
        %v3452 = vld [vmem:[#allocation2 + $0x20] sm:$0xff]
        %v3453 = vadd.f32 %v3449, %v3452
        %v3454 = vmul.f32 %v3452, %v3452
        %v3455 = vadd.f32 %v3451, %v3454
        %v3456 = vld [vmem:[#allocation2 + $0x28] sm:$0xff]
        %v3457 = vadd.f32 %v3453, %v3456
        %v3458 = vmul.f32 %v3456, %v3456
        %v3459 = vadd.f32 %v3455, %v3458
        %v3460 = vld [vmem:[#allocation2 + $0x30] sm:$0xff]
        %v3461 = vadd.f32 %v3457, %v3460
        %v3462 = vmul.f32 %v3460, %v3460
        %v3463 = vadd.f32 %v3459, %v3462
        %v3464 = vld [vmem:[#allocation2 + $0x38] sm:$0xff]
        %v3465 = vadd.f32 %v3461, %v3464
        %v3466 = vmul.f32 %v3464, %v3464
        %v3467 = vadd.f32 %v3463, %v3466
        %v3468 = vld [vmem:[#allocation2 + $0x40] sm:$0xff]
        %v3469 = vadd.f32 %v3465, %v3468
        %v3470 = vmul.f32 %v3468, %v3468
        %v3471 = vadd.f32 %v3467, %v3470
        %v3472 = vld [vmem:[#allocation2 + $0x48] sm:$0xff]
        %v3473 = vadd.f32 %v3469, %v3472
        %v3474 = vmul.f32 %v3472, %v3472
        %v3475 = vadd.f32 %v3471, %v3474
        %v3476 = vld [vmem:[#allocation2 + $0x50] sm:$0xff]
        %v3477 = vadd.f32 %v3473, %v3476
        %v3478 = vmul.f32 %v3476, %v3476
        %v3479 = vadd.f32 %v3475, %v3478
        %v3480 = vld [vmem:[#allocation2 + $0x58] sm:$0xff]
        %v3481 = vadd.f32 %v3477, %v3480
        %v3482 = vmul.f32 %v3480, %v3480
        %v3483 = vadd.f32 %v3479, %v3482
        %v3484 = vld [vmem:[#allocation2 + $0x60] sm:$0xff]
        %v3485 = vadd.f32 %v3481, %v3484
        %v3486 = vmul.f32 %v3484, %v3484
        %v3487 = vadd.f32 %v3483, %v3486
        %v3488 = vld [vmem:[#allocation2 + $0x68] sm:$0xff]
        %v3489 = vadd.f32 %v3485, %v3488
        %v3490 = vmul.f32 %v3488, %v3488
        %v3491 = vadd.f32 %v3487, %v3490
        %v3492 = vld [vmem:[#allocation2 + $0x70] sm:$0xff]
        %v3493 = vadd.f32 %v3489, %v3492
        %v3494 = vmul.f32 %v3492, %v3492
        %v3495 = vadd.f32 %v3491, %v3494
        %v3496 = vld [vmem:[#allocation2 + $0x78] sm:$0xff]
        %v3497 = vadd.f32 %v3493, %v3496
        %v3498 = vmul.f32 %v3496, %v3496
        %v3499 = vadd.f32 %v3495, %v3498
        %3500 = vst [vmem:[%s234] sm:$0xff] %v3497
        %3501 = vst [vmem:[%s234 + $0x8] sm:$0xff] %v3499
        %s3502 = sand.u32 %s96, 1
        %s3503 = scalar_lea.sflag [#allocation5], %s3502
        %s3504 = sand.u32 %s96, 1
        %s3505 = smul.addr %s3504, 64
        %s3506 = scalar_lea.vmem [#allocation8], %s3505
        %s3507 = sand.u32 %s126, 1
        %s3508 = scalar_lea.sflag [#allocation10], %s3507
        %s3509 = sand.u32 %s126, 1
        %s3510 = smul.addr %s3509, 16
        %s3511 = scalar_lea.vmem [#allocation9], %s3510
        // Predicated region
        $region37: #{residual_block.4} parent=27 // pred_check
          %p3512 = pneg %p106
        $region38: #{residual_block.4} parent=27 // pred_check_branch
          %3514 = sbr.rel (%p3512) target = $region40
        $region39: #{residual_block.4} parent=27 // pred_region
          %s3515 = smul.u32 %s29, 2
          %s3516 = sadd.s32 %s3515, %s30
          %s3517 = smul.u32 16, %s3516
          %s3519 = ssub.s32 1024, 1024
          %3520 = vsyncadd %s3503, %s3519
          %s3521 = smul.addr %s3517, 64
          %s3522 = scalar_lea.hbm %s2, %s3521
          %s3523 = sshll.u32 %s3506, 4
          %s3524 = int_to_ptr.vmem [resolvable:$true] %s3523
          %3529 = dma.vmem_to_hbm [thread:$0]  %s3524, 1024, %s3522, %s3503, 64, 64, 4
        $region40: #{residual_block.4} parent=27 // pred_fallthru
          _
        // Predicated region
        $region41: #{residual_block.4} parent=27 // pred_check
          %p3530 = pneg %p136
        $region42: #{residual_block.4} parent=27 // pred_check_branch
          %3532 = sbr.rel (%p3530) target = $region44
        $region43: #{residual_block.4} parent=27 // pred_region
          %s3533 = smul.u32 %s29, 2
          %s3534 = sadd.s32 %s3533, %s30
          %s3536 = ssub.s32 256, 256
          %3537 = vsyncadd %s3508, %s3536
          %s3538 = smul.addr %s3534, 2
          %s3539 = smul.addr %s3538, 128
          %s3540 = scalar_lea.hbm %s3, %s3539
          %s3541 = sshll.u32 %s3511, 4
          %s3542 = int_to_ptr.vmem [resolvable:$true] %s3541
          %3547 = dma.vmem_to_hbm [thread:$0]  %s3542, 256, %s3540, %s3508, 128, 128, 8
        $region44: #{residual_block.4} parent=27 // pred_fallthru
          _
      $region28: #{residual_block.4} parent=5 // pred_fallthru
        _
      %p3548 = scmp.le.s32.totalorder 2, %s20
      // Predicated region
      $region45: #{residual_block.4} parent=5 // pred_check
        %p3549 = pneg %p3548
      $region46: #{residual_block.4} parent=5 // pred_check_branch
        %3551 = sbr.rel (%p3549) target = $region48
      $region47: #{residual_block.4} parent=5 // pred_region
        %s3552 = ssub.s32 %s20, 2
        // Predicated region
        $region49: #{residual_block.4} parent=47 // pred_check
          %p3553 = pneg %p112
        $region50: #{residual_block.4} parent=47 // pred_check_branch
          %3555 = sbr.rel (%p3553) target = $region52
        $region51: #{residual_block.4} parent=47 // pred_region
          %s3556 = sand.u32 %s97, 1
          %s3557 = scalar_lea.sflag [#allocation5], %s3556
          %s3558 = sand.u32 %s97, 1
          %s3559 = smul.addr %s3558, 64
          %s3560 = scalar_lea.vmem [#allocation8], %s3559
          %3561 = dma.done %s3557, 1024
        $region52: #{residual_block.4} parent=47 // pred_fallthru
          _
        // Predicated region
        $region53: #{residual_block.4} parent=47 // pred_check
          %p3562 = pneg %p142
        $region54: #{residual_block.4} parent=47 // pred_check_branch
          %3564 = sbr.rel (%p3562) target = $region56
        $region55: #{residual_block.4} parent=47 // pred_region
          %s3565 = sand.u32 %s127, 1
          %s3566 = scalar_lea.sflag [#allocation10], %s3565
          %s3567 = sand.u32 %s127, 1
          %s3568 = smul.addr %s3567, 16
          %s3569 = scalar_lea.vmem [#allocation9], %s3568
          %3570 = dma.done %s3566, 256
        $region56: #{residual_block.4} parent=47 // pred_fallthru
          _
      $region48: #{residual_block.4} parent=5 // pred_fallthru
        _
    $region6: #{residual_block.4} parent=1 // loop_footer
      %s24 = sadd.s32 1, %s20
    $region7: #{residual_block.4} parent=1 // loop_footer_branch
      %19 = sbr.rel target = $region3
    $region8: #{residual_block.4} parent=1 // loop_exit
      _
    %3571 = vsyncpa [#allocation4], 1
    %s3572 = scalar_lea.sflag [#allocation4], 1
    %3573 = vsyncpa %s3572, 1
    %3574 = vsyncpa [#allocation7], 1
    %3575 = vsyncpa [#allocation5], 1
    %s3576 = scalar_lea.sflag [#allocation5], 1
    %3577 = vsyncpa %s3576, 1
    %3578 = vsyncpa [#allocation10], 1
    %s3579 = scalar_lea.sflag [#allocation10], 1
    %3580 = vsyncpa %s3579, 1

</llo_original>
